<compile_context>
chip_gen: v7x
topology: tpu7x:2x2x1
jax: 0.10.0
libtpu: 0.0.40
codegen_flags: <defaults>
</compile_context>

<pallas_src>
import functools

import jax
import jax.numpy as jnp
from jax import lax
from jax.experimental import pallas as pl
from jax.experimental.pallas import tpu as pltpu


def _round_up(x, m):
    return ((x + m - 1) // m) * m


def _ll_kernel(z_ref, logp_ref, out_ref, *, tb):
    # z_ref:    (TN, L)          int32   latent codes for this batch tile
    # logp_ref: (L, K)           float32 log-softmax prior (resident across grid)
    # out_ref:  (1, TN//tb, tb)  float32 per-sample log-likelihood, lane-dense
    tn, L = z_ref.shape
    K = logp_ref.shape[1]
    n_sub = tn // tb

    logp = logp_ref[...]                                   # (L, K), loaded once
    k_iota = lax.broadcasted_iota(jnp.int32, (1, K), 1)    # hoisted, (1, K)

    @pl.loop(0, n_sub)
    def _(s):
        base = pl.multiple_of(s * tb, tb)
        z_blk = z_ref[pl.ds(base, tb), :]                  # (tb, L) int32

        # L-first reduction: accumulate into a (tb, K) register-resident
        # accumulator with plain VALU compare/select/add; no 3-D intermediate.
        acc = jnp.zeros((tb, K), jnp.float32)
        for l in range(L):                                 # static unroll (L = 64)
            zl = z_blk[:, l:l + 1]                         # (tb, 1)
            acc = acc + jnp.where(zl == k_iota, logp[l:l + 1, :], 0.0)

        # single lane reduction over K per sub-block (tb/8 XLU reduces total)
        ll = jnp.sum(acc, axis=-1)                         # (tb,)
        out_ref[0, pl.ds(s, 1), :] = ll[None, :].astype(out_ref.dtype)


def advdist_vqvae_forward(z, logits, tn=1024, tb=64):
    """Pallas implementation of AdversarialDistributionVQVAE.forward.

    z:      (N, H, W) int   discrete latent codes
    logits: (H*W, K)  f32   factorized-categorical prior parameters
    tn:     batch tile size (rounded to a multiple of tb; capped so the grid
            has >= 2 steps when possible, for v7x's two TensorCores)
    tb:     in-kernel sub-block size (keeps the (tb, K) accumulator in vregs)
    returns (N,) f32        log-likelihood per sample
    """
    N = z.shape[0]
    L, K = logits.shape
    z_flat = z.reshape(N, -1).astype(jnp.int32)
    assert z_flat.shape[1] == L

    # log-softmax of the tiny (L, K) prior table: plain XLA in the wrapper
    # (saves a kernel launch; numerically stable by construction).
    logp = jax.nn.log_softmax(logits.astype(jnp.float32), axis=-1)

    # --- batch tile selection -------------------------------------------------
    TB = int(tb)
    TN = max(TB, _round_up(min(int(tn), max(N, 1)), TB))
    if N > TB:
        # keep at least 2 grid steps so both TensorCores get work on v7x;
        # harmless on single-core v5e/v6e.
        TN = min(TN, _round_up(pl.cdiv(N, 2), TB))
    N_pad = _round_up(N, TN)
    G = N_pad // TN
    n_sub = TN // TB

    if N_pad != N:
        # pad with code 0 (always a valid index); padded rows are sliced off.
        z_flat = jnp.pad(z_flat, ((0, N_pad - N), (0, 0)))

    kernel = functools.partial(_ll_kernel, tb=TB)

    out = pl.pallas_call(
        kernel,
        out_shape=jax.ShapeDtypeStruct((G, n_sub, TB), jnp.float32),
        grid=(G,),
        in_specs=[
            pl.BlockSpec((TN, L), lambda i: (i, 0)),    # z tile, double-buffered
            pl.BlockSpec((L, K), lambda i: (0, 0)),     # logp resident across grid
        ],
        out_specs=pl.BlockSpec((1, n_sub, TB), lambda i: (i, 0, 0)),
        compiler_params=pltpu.CompilerParams(
            dimension_semantics=("parallel",),          # megacore sharding on v7x
            vmem_limit_bytes=32 * 1024 * 1024,
        ),
    )(z_flat, logp)

    return out.reshape(N_pad)[:N]


def _reference_forward(z, logits):
    N = z.shape[0]
    L, K = logits.shape
    z_flat = z.reshape(N, L)
    logp = jax.nn.log_softmax(logits.astype(jnp.float32), axis=-1)   # (L, K)
    gathered = jnp.take_along_axis(
        jnp.broadcast_to(logp[None, :, :], (N, L, K)),
        z_flat[:, :, None], axis=-1)[..., 0]                          # (N, L)
    return gathered.sum(axis=-1)


# TODO(synk): sample()/train_step()/validation_step() depend on the external
# vqvae decoder, detector and classifier modules (and Gibbs sampling) and are
# not part of forward(); they are intentionally not translated.

if __name__ == "__main__":
    key = jax.random.PRNGKey(0)
    k_logits, k_z, k_z2 = jax.random.split(key, 3)

    # small shapes consistent with a VQ-VAE latent prior
    N = 2                # batch
    H = W = 8            # z_shape = (8, 8)
    K = 128              # codebook size
    L = H * W

    # deterministic "learned" prior parameters (synthetic init, no checkpoint)
    logits = 0.1 * jax.random.normal(k_logits, (L, K), dtype=jnp.float32)
    # discrete latent codes, as produced by vqvae.encode / sampling
    z = jax.random.randint(k_z, (N, H, W), 0, K, dtype=jnp.int32)

    ll = advdist_vqvae_forward(z, logits)
    jax.block_until_ready(ll)
    ref = _reference_forward(z, logits)
    assert ll.shape == (N,)
    assert jnp.allclose(ll, ref, atol=1e-3, rtol=1e-3), (ll, ref)

    # second check: exercises a multi-step grid (G >= 2), batch padding and
    # the multi-sub-block inner loop with the default tile selection.
    N2 = 300
    z2 = jax.random.randint(k_z2, (N2, H, W), 0, K, dtype=jnp.int32)
    ll2 = advdist_vqvae_forward(z2, logits)
    jax.block_until_ready(ll2)
    ref2 = _reference_forward(z2, logits)
    assert ll2.shape == (N2,)
    assert jnp.allclose(ll2, ref2, atol=1e-3, rtol=1e-3), (ll2, ref2)

    print("KERNEL_OK")
</pallas_src>

<mosaic_0001>
module attributes {stable_mosaic.version = 11 : i64} {
  func.func @_ll_kernel(%arg0: i32, %arg1: memref<64x64xi32, #tpu.memory_space<vmem>>, %arg2: memref<64x128xf32, #tpu.memory_space<vmem>>, %arg3: memref<1x1x64xf32, #tpu.memory_space<vmem>>) attributes {dimension_semantics = [#tpu.dimension_semantics<parallel>], iteration_bounds = array<i64: 1>, scalar_prefetch = 0 : i64, scratch_operands = 0 : i64, tpu.core_type = #tpu.core_type<tc>, window_params = [{transform_indices = @transform_0, window_bounds = array<i64: 64, 64>}, {pipeline_mode = #tpu.pipeline_mode<synchronous>, transform_indices = @transform_1, window_bounds = array<i64: 64, 128>}, {transform_indices = @transform_2, window_bounds = array<i64: 1, 1, 64>}]} {
    %c0 = arith.constant 0 : index
    %c0_0 = arith.constant 0 : index
    %0 = vector.load %arg2[%c0, %c0_0] : memref<64x128xf32, #tpu.memory_space<vmem>>, vector<64x128xf32>
    %1 = tpu.iota {dimensions = array<i32: 1>} : vector<1x128xi32>
    %c0_i32 = arith.constant 0 : i32
    %c1_i32 = arith.constant 1 : i32
    %2 = arith.muli %c0_i32, %c1_i32 : i32
    %c0_i32_1 = arith.constant 0 : i32
    %3 = arith.addi %c0_i32_1, %2 : i32
    %c64_i32 = arith.constant 64 : i32
    %4 = arith.muli %3, %c64_i32 : i32
    %5 = tpu.assume_multiple %4, 64 : i32
    %6 = arith.index_cast %5 : i32 to index
    %c0_2 = arith.constant 0 : index
    %7 = vector.load %arg1[%6, %c0_2] : memref<64x64xi32, #tpu.memory_space<vmem>>, vector<64x64xi32>
    %cst = arith.constant 0.000000e+00 : f32
    %8 = vector.broadcast %cst : f32 to vector<64x128xf32>
    %9 = vector.extract_strided_slice %7 {offsets = [0, 0], sizes = [64, 1], strides = [1, 1]} : vector<64x64xi32> to vector<64x1xi32>
    %10 = vector.broadcast %9 : vector<64x1xi32> to vector<64x128xi32>
    %11 = vector.broadcast %1 : vector<1x128xi32> to vector<64x128xi32>
    %12 = arith.cmpi eq, %10, %11 : vector<64x128xi32>
    %13 = vector.extract_strided_slice %0 {offsets = [0, 0], sizes = [1, 128], strides = [1, 1]} : vector<64x128xf32> to vector<1x128xf32>
    %cst_3 = arith.constant 0.000000e+00 : f32
    %14 = vector.shape_cast %13 : vector<1x128xf32> to vector<1x128xf32>
    %15 = vector.broadcast %14 : vector<1x128xf32> to vector<64x128xf32>
    %16 = vector.broadcast %cst_3 : f32 to vector<64x128xf32>
    %17 = arith.select %12, %15, %16 : vector<64x128xi1>, vector<64x128xf32>
    %18 = arith.addf %8, %17 : vector<64x128xf32>
    %19 = vector.extract_strided_slice %7 {offsets = [0, 1], sizes = [64, 1], strides = [1, 1]} : vector<64x64xi32> to vector<64x1xi32>
    %20 = vector.broadcast %19 : vector<64x1xi32> to vector<64x128xi32>
    %21 = vector.broadcast %1 : vector<1x128xi32> to vector<64x128xi32>
    %22 = arith.cmpi eq, %20, %21 : vector<64x128xi32>
    %23 = vector.extract_strided_slice %0 {offsets = [1, 0], sizes = [1, 128], strides = [1, 1]} : vector<64x128xf32> to vector<1x128xf32>
    %cst_4 = arith.constant 0.000000e+00 : f32
    %24 = vector.shape_cast %23 : vector<1x128xf32> to vector<1x128xf32>
    %25 = vector.broadcast %24 : vector<1x128xf32> to vector<64x128xf32>
    %26 = vector.broadcast %cst_4 : f32 to vector<64x128xf32>
    %27 = arith.select %22, %25, %26 : vector<64x128xi1>, vector<64x128xf32>
    %28 = arith.addf %18, %27 : vector<64x128xf32>
    %29 = vector.extract_strided_slice %7 {offsets = [0, 2], sizes = [64, 1], strides = [1, 1]} : vector<64x64xi32> to vector<64x1xi32>
    %30 = vector.broadcast %29 : vector<64x1xi32> to vector<64x128xi32>
    %31 = vector.broadcast %1 : vector<1x128xi32> to vector<64x128xi32>
    %32 = arith.cmpi eq, %30, %31 : vector<64x128xi32>
    %33 = vector.extract_strided_slice %0 {offsets = [2, 0], sizes = [1, 128], strides = [1, 1]} : vector<64x128xf32> to vector<1x128xf32>
    %cst_5 = arith.constant 0.000000e+00 : f32
    %34 = vector.shape_cast %33 : vector<1x128xf32> to vector<1x128xf32>
    %35 = vector.broadcast %34 : vector<1x128xf32> to vector<64x128xf32>
    %36 = vector.broadcast %cst_5 : f32 to vector<64x128xf32>
    %37 = arith.select %32, %35, %36 : vector<64x128xi1>, vector<64x128xf32>
    %38 = arith.addf %28, %37 : vector<64x128xf32>
    %39 = vector.extract_strided_slice %7 {offsets = [0, 3], sizes = [64, 1], strides = [1, 1]} : vector<64x64xi32> to vector<64x1xi32>
    %40 = vector.broadcast %39 : vector<64x1xi32> to vector<64x128xi32>
    %41 = vector.broadcast %1 : vector<1x128xi32> to vector<64x128xi32>
    %42 = arith.cmpi eq, %40, %41 : vector<64x128xi32>
    %43 = vector.extract_strided_slice %0 {offsets = [3, 0], sizes = [1, 128], strides = [1, 1]} : vector<64x128xf32> to vector<1x128xf32>
    %cst_6 = arith.constant 0.000000e+00 : f32
    %44 = vector.shape_cast %43 : vector<1x128xf32> to vector<1x128xf32>
    %45 = vector.broadcast %44 : vector<1x128xf32> to vector<64x128xf32>
    %46 = vector.broadcast %cst_6 : f32 to vector<64x128xf32>
    %47 = arith.select %42, %45, %46 : vector<64x128xi1>, vector<64x128xf32>
    %48 = arith.addf %38, %47 : vector<64x128xf32>
    %49 = vector.extract_strided_slice %7 {offsets = [0, 4], sizes = [64, 1], strides = [1, 1]} : vector<64x64xi32> to vector<64x1xi32>
    %50 = vector.broadcast %49 : vector<64x1xi32> to vector<64x128xi32>
    %51 = vector.broadcast %1 : vector<1x128xi32> to vector<64x128xi32>
    %52 = arith.cmpi eq, %50, %51 : vector<64x128xi32>
    %53 = vector.extract_strided_slice %0 {offsets = [4, 0], sizes = [1, 128], strides = [1, 1]} : vector<64x128xf32> to vector<1x128xf32>
    %cst_7 = arith.constant 0.000000e+00 : f32
    %54 = vector.shape_cast %53 : vector<1x128xf32> to vector<1x128xf32>
    %55 = vector.broadcast %54 : vector<1x128xf32> to vector<64x128xf32>
    %56 = vector.broadcast %cst_7 : f32 to vector<64x128xf32>
    %57 = arith.select %52, %55, %56 : vector<64x128xi1>, vector<64x128xf32>
    %58 = arith.addf %48, %57 : vector<64x128xf32>
    %59 = vector.extract_strided_slice %7 {offsets = [0, 5], sizes = [64, 1], strides = [1, 1]} : vector<64x64xi32> to vector<64x1xi32>
    %60 = vector.broadcast %59 : vector<64x1xi32> to vector<64x128xi32>
    %61 = vector.broadcast %1 : vector<1x128xi32> to vector<64x128xi32>
    %62 = arith.cmpi eq, %60, %61 : vector<64x128xi32>
    %63 = vector.extract_strided_slice %0 {offsets = [5, 0], sizes = [1, 128], strides = [1, 1]} : vector<64x128xf32> to vector<1x128xf32>
    %cst_8 = arith.constant 0.000000e+00 : f32
    %64 = vector.shape_cast %63 : vector<1x128xf32> to vector<1x128xf32>
    %65 = vector.broadcast %64 : vector<1x128xf32> to vector<64x128xf32>
    %66 = vector.broadcast %cst_8 : f32 to vector<64x128xf32>
    %67 = arith.select %62, %65, %66 : vector<64x128xi1>, vector<64x128xf32>
    %68 = arith.addf %58, %67 : vector<64x128xf32>
    %69 = vector.extract_strided_slice %7 {offsets = [0, 6], sizes = [64, 1], strides = [1, 1]} : vector<64x64xi32> to vector<64x1xi32>
    %70 = vector.broadcast %69 : vector<64x1xi32> to vector<64x128xi32>
    %71 = vector.broadcast %1 : vector<1x128xi32> to vector<64x128xi32>
    %72 = arith.cmpi eq, %70, %71 : vector<64x128xi32>
    %73 = vector.extract_strided_slice %0 {offsets = [6, 0], sizes = [1, 128], strides = [1, 1]} : vector<64x128xf32> to vector<1x128xf32>
    %cst_9 = arith.constant 0.000000e+00 : f32
    %74 = vector.shape_cast %73 : vector<1x128xf32> to vector<1x128xf32>
    %75 = vector.broadcast %74 : vector<1x128xf32> to vector<64x128xf32>
    %76 = vector.broadcast %cst_9 : f32 to vector<64x128xf32>
    %77 = arith.select %72, %75, %76 : vector<64x128xi1>, vector<64x128xf32>
    %78 = arith.addf %68, %77 : vector<64x128xf32>
    %79 = vector.extract_strided_slice %7 {offsets = [0, 7], sizes = [64, 1], strides = [1, 1]} : vector<64x64xi32> to vector<64x1xi32>
    %80 = vector.broadcast %79 : vector<64x1xi32> to vector<64x128xi32>
    %81 = vector.broadcast %1 : vector<1x128xi32> to vector<64x128xi32>
    %82 = arith.cmpi eq, %80, %81 : vector<64x128xi32>
    %83 = vector.extract_strided_slice %0 {offsets = [7, 0], sizes = [1, 128], strides = [1, 1]} : vector<64x128xf32> to vector<1x128xf32>
    %cst_10 = arith.constant 0.000000e+00 : f32
    %84 = vector.shape_cast %83 : vector<1x128xf32> to vector<1x128xf32>
    %85 = vector.broadcast %84 : vector<1x128xf32> to vector<64x128xf32>
    %86 = vector.broadcast %cst_10 : f32 to vector<64x128xf32>
    %87 = arith.select %82, %85, %86 : vector<64x128xi1>, vector<64x128xf32>
    %88 = arith.addf %78, %87 : vector<64x128xf32>
    %89 = vector.extract_strided_slice %7 {offsets = [0, 8], sizes = [64, 1], strides = [1, 1]} : vector<64x64xi32> to vector<64x1xi32>
    %90 = vector.broadcast %89 : vector<64x1xi32> to vector<64x128xi32>
    %91 = vector.broadcast %1 : vector<1x128xi32> to vector<64x128xi32>
    %92 = arith.cmpi eq, %90, %91 : vector<64x128xi32>
    %93 = vector.extract_strided_slice %0 {offsets = [8, 0], sizes = [1, 128], strides = [1, 1]} : vector<64x128xf32> to vector<1x128xf32>
    %cst_11 = arith.constant 0.000000e+00 : f32
    %94 = vector.shape_cast %93 : vector<1x128xf32> to vector<1x128xf32>
    %95 = vector.broadcast %94 : vector<1x128xf32> to vector<64x128xf32>
    %96 = vector.broadcast %cst_11 : f32 to vector<64x128xf32>
    %97 = arith.select %92, %95, %96 : vector<64x128xi1>, vector<64x128xf32>
    %98 = arith.addf %88, %97 : vector<64x128xf32>
    %99 = vector.extract_strided_slice %7 {offsets = [0, 9], sizes = [64, 1], strides = [1, 1]} : vector<64x64xi32> to vector<64x1xi32>
    %100 = vector.broadcast %99 : vector<64x1xi32> to vector<64x128xi32>
    %101 = vector.broadcast %1 : vector<1x128xi32> to vector<64x128xi32>
    %102 = arith.cmpi eq, %100, %101 : vector<64x128xi32>
    %103 = vector.extract_strided_slice %0 {offsets = [9, 0], sizes = [1, 128], strides = [1, 1]} : vector<64x128xf32> to vector<1x128xf32>
    %cst_12 = arith.constant 0.000000e+00 : f32
    %104 = vector.shape_cast %103 : vector<1x128xf32> to vector<1x128xf32>
    %105 = vector.broadcast %104 : vector<1x128xf32> to vector<64x128xf32>
    %106 = vector.broadcast %cst_12 : f32 to vector<64x128xf32>
    %107 = arith.select %102, %105, %106 : vector<64x128xi1>, vector<64x128xf32>
    %108 = arith.addf %98, %107 : vector<64x128xf32>
    %109 = vector.extract_strided_slice %7 {offsets = [0, 10], sizes = [64, 1], strides = [1, 1]} : vector<64x64xi32> to vector<64x1xi32>
    %110 = vector.broadcast %109 : vector<64x1xi32> to vector<64x128xi32>
    %111 = vector.broadcast %1 : vector<1x128xi32> to vector<64x128xi32>
    %112 = arith.cmpi eq, %110, %111 : vector<64x128xi32>
    %113 = vector.extract_strided_slice %0 {offsets = [10, 0], sizes = [1, 128], strides = [1, 1]} : vector<64x128xf32> to vector<1x128xf32>
    %cst_13 = arith.constant 0.000000e+00 : f32
    %114 = vector.shape_cast %113 : vector<1x128xf32> to vector<1x128xf32>
    %115 = vector.broadcast %114 : vector<1x128xf32> to vector<64x128xf32>
    %116 = vector.broadcast %cst_13 : f32 to vector<64x128xf32>
    %117 = arith.select %112, %115, %116 : vector<64x128xi1>, vector<64x128xf32>
    %118 = arith.addf %108, %117 : vector<64x128xf32>
    %119 = vector.extract_strided_slice %7 {offsets = [0, 11], sizes = [64, 1], strides = [1, 1]} : vector<64x64xi32> to vector<64x1xi32>
    %120 = vector.broadcast %119 : vector<64x1xi32> to vector<64x128xi32>
    %121 = vector.broadcast %1 : vector<1x128xi32> to vector<64x128xi32>
    %122 = arith.cmpi eq, %120, %121 : vector<64x128xi32>
    %123 = vector.extract_strided_slice %0 {offsets = [11, 0], sizes = [1, 128], strides = [1, 1]} : vector<64x128xf32> to vector<1x128xf32>
    %cst_14 = arith.constant 0.000000e+00 : f32
    %124 = vector.shape_cast %123 : vector<1x128xf32> to vector<1x128xf32>
    %125 = vector.broadcast %124 : vector<1x128xf32> to vector<64x128xf32>
    %126 = vector.broadcast %cst_14 : f32 to vector<64x128xf32>
    %127 = arith.select %122, %125, %126 : vector<64x128xi1>, vector<64x128xf32>
    %128 = arith.addf %118, %127 : vector<64x128xf32>
    %129 = vector.extract_strided_slice %7 {offsets = [0, 12], sizes = [64, 1], strides = [1, 1]} : vector<64x64xi32> to vector<64x1xi32>
    %130 = vector.broadcast %129 : vector<64x1xi32> to vector<64x128xi32>
    %131 = vector.broadcast %1 : vector<1x128xi32> to vector<64x128xi32>
    %132 = arith.cmpi eq, %130, %131 : vector<64x128xi32>
    %133 = vector.extract_strided_slice %0 {offsets = [12, 0], sizes = [1, 128], strides = [1, 1]} : vector<64x128xf32> to vector<1x128xf32>
    %cst_15 = arith.constant 0.000000e+00 : f32
    %134 = vector.shape_cast %133 : vector<1x128xf32> to vector<1x128xf32>
    %135 = vector.broadcast %134 : vector<1x128xf32> to vector<64x128xf32>
    %136 = vector.broadcast %cst_15 : f32 to vector<64x128xf32>
    %137 = arith.select %132, %135, %136 : vector<64x128xi1>, vector<64x128xf32>
    %138 = arith.addf %128, %137 : vector<64x128xf32>
    %139 = vector.extract_strided_slice %7 {offsets = [0, 13], sizes = [64, 1], strides = [1, 1]} : vector<64x64xi32> to vector<64x1xi32>
    %140 = vector.broadcast %139 : vector<64x1xi32> to vector<64x128xi32>
    %141 = vector.broadcast %1 : vector<1x128xi32> to vector<64x128xi32>
    %142 = arith.cmpi eq, %140, %141 : vector<64x128xi32>
    %143 = vector.extract_strided_slice %0 {offsets = [13, 0], sizes = [1, 128], strides = [1, 1]} : vector<64x128xf32> to vector<1x128xf32>
    %cst_16 = arith.constant 0.000000e+00 : f32
    %144 = vector.shape_cast %143 : vector<1x128xf32> to vector<1x128xf32>
    %145 = vector.broadcast %144 : vector<1x128xf32> to vector<64x128xf32>
    %146 = vector.broadcast %cst_16 : f32 to vector<64x128xf32>
    %147 = arith.select %142, %145, %146 : vector<64x128xi1>, vector<64x128xf32>
    %148 = arith.addf %138, %147 : vector<64x128xf32>
    %149 = vector.extract_strided_slice %7 {offsets = [0, 14], sizes = [64, 1], strides = [1, 1]} : vector<64x64xi32> to vector<64x1xi32>
    %150 = vector.broadcast %149 : vector<64x1xi32> to vector<64x128xi32>
    %151 = vector.broadcast %1 : vector<1x128xi32> to vector<64x128xi32>
    %152 = arith.cmpi eq, %150, %151 : vector<64x128xi32>
    %153 = vector.extract_strided_slice %0 {offsets = [14, 0], sizes = [1, 128], strides = [1, 1]} : vector<64x128xf32> to vector<1x128xf32>
    %cst_17 = arith.constant 0.000000e+00 : f32
    %154 = vector.shape_cast %153 : vector<1x128xf32> to vector<1x128xf32>
    %155 = vector.broadcast %154 : vector<1x128xf32> to vector<64x128xf32>
    %156 = vector.broadcast %cst_17 : f32 to vector<64x128xf32>
    %157 = arith.select %152, %155, %156 : vector<64x128xi1>, vector<64x128xf32>
    %158 = arith.addf %148, %157 : vector<64x128xf32>
    %159 = vector.extract_strided_slice %7 {offsets = [0, 15], sizes = [64, 1], strides = [1, 1]} : vector<64x64xi32> to vector<64x1xi32>
    %160 = vector.broadcast %159 : vector<64x1xi32> to vector<64x128xi32>
    %161 = vector.broadcast %1 : vector<1x128xi32> to vector<64x128xi32>
    %162 = arith.cmpi eq, %160, %161 : vector<64x128xi32>
    %163 = vector.extract_strided_slice %0 {offsets = [15, 0], sizes = [1, 128], strides = [1, 1]} : vector<64x128xf32> to vector<1x128xf32>
    %cst_18 = arith.constant 0.000000e+00 : f32
    %164 = vector.shape_cast %163 : vector<1x128xf32> to vector<1x128xf32>
    %165 = vector.broadcast %164 : vector<1x128xf32> to vector<64x128xf32>
    %166 = vector.broadcast %cst_18 : f32 to vector<64x128xf32>
    %167 = arith.select %162, %165, %166 : vector<64x128xi1>, vector<64x128xf32>
    %168 = arith.addf %158, %167 : vector<64x128xf32>
    %169 = vector.extract_strided_slice %7 {offsets = [0, 16], sizes = [64, 1], strides = [1, 1]} : vector<64x64xi32> to vector<64x1xi32>
    %170 = vector.broadcast %169 : vector<64x1xi32> to vector<64x128xi32>
    %171 = vector.broadcast %1 : vector<1x128xi32> to vector<64x128xi32>
    %172 = arith.cmpi eq, %170, %171 : vector<64x128xi32>
    %173 = vector.extract_strided_slice %0 {offsets = [16, 0], sizes = [1, 128], strides = [1, 1]} : vector<64x128xf32> to vector<1x128xf32>
    %cst_19 = arith.constant 0.000000e+00 : f32
    %174 = vector.shape_cast %173 : vector<1x128xf32> to vector<1x128xf32>
    %175 = vector.broadcast %174 : vector<1x128xf32> to vector<64x128xf32>
    %176 = vector.broadcast %cst_19 : f32 to vector<64x128xf32>
    %177 = arith.select %172, %175, %176 : vector<64x128xi1>, vector<64x128xf32>
    %178 = arith.addf %168, %177 : vector<64x128xf32>
    %179 = vector.extract_strided_slice %7 {offsets = [0, 17], sizes = [64, 1], strides = [1, 1]} : vector<64x64xi32> to vector<64x1xi32>
    %180 = vector.broadcast %179 : vector<64x1xi32> to vector<64x128xi32>
    %181 = vector.broadcast %1 : vector<1x128xi32> to vector<64x128xi32>
    %182 = arith.cmpi eq, %180, %181 : vector<64x128xi32>
    %183 = vector.extract_strided_slice %0 {offsets = [17, 0], sizes = [1, 128], strides = [1, 1]} : vector<64x128xf32> to vector<1x128xf32>
    %cst_20 = arith.constant 0.000000e+00 : f32
    %184 = vector.shape_cast %183 : vector<1x128xf32> to vector<1x128xf32>
    %185 = vector.broadcast %184 : vector<1x128xf32> to vector<64x128xf32>
    %186 = vector.broadcast %cst_20 : f32 to vector<64x128xf32>
    %187 = arith.select %182, %185, %186 : vector<64x128xi1>, vector<64x128xf32>
    %188 = arith.addf %178, %187 : vector<64x128xf32>
    %189 = vector.extract_strided_slice %7 {offsets = [0, 18], sizes = [64, 1], strides = [1, 1]} : vector<64x64xi32> to vector<64x1xi32>
    %190 = vector.broadcast %189 : vector<64x1xi32> to vector<64x128xi32>
    %191 = vector.broadcast %1 : vector<1x128xi32> to vector<64x128xi32>
    %192 = arith.cmpi eq, %190, %191 : vector<64x128xi32>
    %193 = vector.extract_strided_slice %0 {offsets = [18, 0], sizes = [1, 128], strides = [1, 1]} : vector<64x128xf32> to vector<1x128xf32>
    %cst_21 = arith.constant 0.000000e+00 : f32
    %194 = vector.shape_cast %193 : vector<1x128xf32> to vector<1x128xf32>
    %195 = vector.broadcast %194 : vector<1x128xf32> to vector<64x128xf32>
    %196 = vector.broadcast %cst_21 : f32 to vector<64x128xf32>
    %197 = arith.select %192, %195, %196 : vector<64x128xi1>, vector<64x128xf32>
    %198 = arith.addf %188, %197 : vector<64x128xf32>
    %199 = vector.extract_strided_slice %7 {offsets = [0, 19], sizes = [64, 1], strides = [1, 1]} : vector<64x64xi32> to vector<64x1xi32>
    %200 = vector.broadcast %199 : vector<64x1xi32> to vector<64x128xi32>
    %201 = vector.broadcast %1 : vector<1x128xi32> to vector<64x128xi32>
    %202 = arith.cmpi eq, %200, %201 : vector<64x128xi32>
    %203 = vector.extract_strided_slice %0 {offsets = [19, 0], sizes = [1, 128], strides = [1, 1]} : vector<64x128xf32> to vector<1x128xf32>
    %cst_22 = arith.constant 0.000000e+00 : f32
    %204 = vector.shape_cast %203 : vector<1x128xf32> to vector<1x128xf32>
    %205 = vector.broadcast %204 : vector<1x128xf32> to vector<64x128xf32>
    %206 = vector.broadcast %cst_22 : f32 to vector<64x128xf32>
    %207 = arith.select %202, %205, %206 : vector<64x128xi1>, vector<64x128xf32>
    %208 = arith.addf %198, %207 : vector<64x128xf32>
    %209 = vector.extract_strided_slice %7 {offsets = [0, 20], sizes = [64, 1], strides = [1, 1]} : vector<64x64xi32> to vector<64x1xi32>
    %210 = vector.broadcast %209 : vector<64x1xi32> to vector<64x128xi32>
    %211 = vector.broadcast %1 : vector<1x128xi32> to vector<64x128xi32>
    %212 = arith.cmpi eq, %210, %211 : vector<64x128xi32>
    %213 = vector.extract_strided_slice %0 {offsets = [20, 0], sizes = [1, 128], strides = [1, 1]} : vector<64x128xf32> to vector<1x128xf32>
    %cst_23 = arith.constant 0.000000e+00 : f32
    %214 = vector.shape_cast %213 : vector<1x128xf32> to vector<1x128xf32>
    %215 = vector.broadcast %214 : vector<1x128xf32> to vector<64x128xf32>
    %216 = vector.broadcast %cst_23 : f32 to vector<64x128xf32>
    %217 = arith.select %212, %215, %216 : vector<64x128xi1>, vector<64x128xf32>
    %218 = arith.addf %208, %217 : vector<64x128xf32>
    %219 = vector.extract_strided_slice %7 {offsets = [0, 21], sizes = [64, 1], strides = [1, 1]} : vector<64x64xi32> to vector<64x1xi32>
    %220 = vector.broadcast %219 : vector<64x1xi32> to vector<64x128xi32>
    %221 = vector.broadcast %1 : vector<1x128xi32> to vector<64x128xi32>
    %222 = arith.cmpi eq, %220, %221 : vector<64x128xi32>
    %223 = vector.extract_strided_slice %0 {offsets = [21, 0], sizes = [1, 128], strides = [1, 1]} : vector<64x128xf32> to vector<1x128xf32>
    %cst_24 = arith.constant 0.000000e+00 : f32
    %224 = vector.shape_cast %223 : vector<1x128xf32> to vector<1x128xf32>
    %225 = vector.broadcast %224 : vector<1x128xf32> to vector<64x128xf32>
    %226 = vector.broadcast %cst_24 : f32 to vector<64x128xf32>
    %227 = arith.select %222, %225, %226 : vector<64x128xi1>, vector<64x128xf32>
    %228 = arith.addf %218, %227 : vector<64x128xf32>
    %229 = vector.extract_strided_slice %7 {offsets = [0, 22], sizes = [64, 1], strides = [1, 1]} : vector<64x64xi32> to vector<64x1xi32>
    %230 = vector.broadcast %229 : vector<64x1xi32> to vector<64x128xi32>
    %231 = vector.broadcast %1 : vector<1x128xi32> to vector<64x128xi32>
    %232 = arith.cmpi eq, %230, %231 : vector<64x128xi32>
    %233 = vector.extract_strided_slice %0 {offsets = [22, 0], sizes = [1, 128], strides = [1, 1]} : vector<64x128xf32> to vector<1x128xf32>
    %cst_25 = arith.constant 0.000000e+00 : f32
    %234 = vector.shape_cast %233 : vector<1x128xf32> to vector<1x128xf32>
    %235 = vector.broadcast %234 : vector<1x128xf32> to vector<64x128xf32>
    %236 = vector.broadcast %cst_25 : f32 to vector<64x128xf32>
    %237 = arith.select %232, %235, %236 : vector<64x128xi1>, vector<64x128xf32>
    %238 = arith.addf %228, %237 : vector<64x128xf32>
    %239 = vector.extract_strided_slice %7 {offsets = [0, 23], sizes = [64, 1], strides = [1, 1]} : vector<64x64xi32> to vector<64x1xi32>
    %240 = vector.broadcast %239 : vector<64x1xi32> to vector<64x128xi32>
    %241 = vector.broadcast %1 : vector<1x128xi32> to vector<64x128xi32>
    %242 = arith.cmpi eq, %240, %241 : vector<64x128xi32>
    %243 = vector.extract_strided_slice %0 {offsets = [23, 0], sizes = [1, 128], strides = [1, 1]} : vector<64x128xf32> to vector<1x128xf32>
    %cst_26 = arith.constant 0.000000e+00 : f32
    %244 = vector.shape_cast %243 : vector<1x128xf32> to vector<1x128xf32>
    %245 = vector.broadcast %244 : vector<1x128xf32> to vector<64x128xf32>
    %246 = vector.broadcast %cst_26 : f32 to vector<64x128xf32>
    %247 = arith.select %242, %245, %246 : vector<64x128xi1>, vector<64x128xf32>
    %248 = arith.addf %238, %247 : vector<64x128xf32>
    %249 = vector.extract_strided_slice %7 {offsets = [0, 24], sizes = [64, 1], strides = [1, 1]} : vector<64x64xi32> to vector<64x1xi32>
    %250 = vector.broadcast %249 : vector<64x1xi32> to vector<64x128xi32>
    %251 = vector.broadcast %1 : vector<1x128xi32> to vector<64x128xi32>
    %252 = arith.cmpi eq, %250, %251 : vector<64x128xi32>
    %253 = vector.extract_strided_slice %0 {offsets = [24, 0], sizes = [1, 128], strides = [1, 1]} : vector<64x128xf32> to vector<1x128xf32>
    %cst_27 = arith.constant 0.000000e+00 : f32
    %254 = vector.shape_cast %253 : vector<1x128xf32> to vector<1x128xf32>
    %255 = vector.broadcast %254 : vector<1x128xf32> to vector<64x128xf32>
    %256 = vector.broadcast %cst_27 : f32 to vector<64x128xf32>
    %257 = arith.select %252, %255, %256 : vector<64x128xi1>, vector<64x128xf32>
    %258 = arith.addf %248, %257 : vector<64x128xf32>
    %259 = vector.extract_strided_slice %7 {offsets = [0, 25], sizes = [64, 1], strides = [1, 1]} : vector<64x64xi32> to vector<64x1xi32>
    %260 = vector.broadcast %259 : vector<64x1xi32> to vector<64x128xi32>
    %261 = vector.broadcast %1 : vector<1x128xi32> to vector<64x128xi32>
    %262 = arith.cmpi eq, %260, %261 : vector<64x128xi32>
    %263 = vector.extract_strided_slice %0 {offsets = [25, 0], sizes = [1, 128], strides = [1, 1]} : vector<64x128xf32> to vector<1x128xf32>
    %cst_28 = arith.constant 0.000000e+00 : f32
    %264 = vector.shape_cast %263 : vector<1x128xf32> to vector<1x128xf32>
    %265 = vector.broadcast %264 : vector<1x128xf32> to vector<64x128xf32>
    %266 = vector.broadcast %cst_28 : f32 to vector<64x128xf32>
    %267 = arith.select %262, %265, %266 : vector<64x128xi1>, vector<64x128xf32>
    %268 = arith.addf %258, %267 : vector<64x128xf32>
    %269 = vector.extract_strided_slice %7 {offsets = [0, 26], sizes = [64, 1], strides = [1, 1]} : vector<64x64xi32> to vector<64x1xi32>
    %270 = vector.broadcast %269 : vector<64x1xi32> to vector<64x128xi32>
    %271 = vector.broadcast %1 : vector<1x128xi32> to vector<64x128xi32>
    %272 = arith.cmpi eq, %270, %271 : vector<64x128xi32>
    %273 = vector.extract_strided_slice %0 {offsets = [26, 0], sizes = [1, 128], strides = [1, 1]} : vector<64x128xf32> to vector<1x128xf32>
    %cst_29 = arith.constant 0.000000e+00 : f32
    %274 = vector.shape_cast %273 : vector<1x128xf32> to vector<1x128xf32>
    %275 = vector.broadcast %274 : vector<1x128xf32> to vector<64x128xf32>
    %276 = vector.broadcast %cst_29 : f32 to vector<64x128xf32>
    %277 = arith.select %272, %275, %276 : vector<64x128xi1>, vector<64x128xf32>
    %278 = arith.addf %268, %277 : vector<64x128xf32>
    %279 = vector.extract_strided_slice %7 {offsets = [0, 27], sizes = [64, 1], strides = [1, 1]} : vector<64x64xi32> to vector<64x1xi32>
    %280 = vector.broadcast %279 : vector<64x1xi32> to vector<64x128xi32>
    %281 = vector.broadcast %1 : vector<1x128xi32> to vector<64x128xi32>
    %282 = arith.cmpi eq, %280, %281 : vector<64x128xi32>
    %283 = vector.extract_strided_slice %0 {offsets = [27, 0], sizes = [1, 128], strides = [1, 1]} : vector<64x128xf32> to vector<1x128xf32>
    %cst_30 = arith.constant 0.000000e+00 : f32
    %284 = vector.shape_cast %283 : vector<1x128xf32> to vector<1x128xf32>
    %285 = vector.broadcast %284 : vector<1x128xf32> to vector<64x128xf32>
    %286 = vector.broadcast %cst_30 : f32 to vector<64x128xf32>
    %287 = arith.select %282, %285, %286 : vector<64x128xi1>, vector<64x128xf32>
    %288 = arith.addf %278, %287 : vector<64x128xf32>
    %289 = vector.extract_strided_slice %7 {offsets = [0, 28], sizes = [64, 1], strides = [1, 1]} : vector<64x64xi32> to vector<64x1xi32>
    %290 = vector.broadcast %289 : vector<64x1xi32> to vector<64x128xi32>
    %291 = vector.broadcast %1 : vector<1x128xi32> to vector<64x128xi32>
    %292 = arith.cmpi eq, %290, %291 : vector<64x128xi32>
    %293 = vector.extract_strided_slice %0 {offsets = [28, 0], sizes = [1, 128], strides = [1, 1]} : vector<64x128xf32> to vector<1x128xf32>
    %cst_31 = arith.constant 0.000000e+00 : f32
    %294 = vector.shape_cast %293 : vector<1x128xf32> to vector<1x128xf32>
    %295 = vector.broadcast %294 : vector<1x128xf32> to vector<64x128xf32>
    %296 = vector.broadcast %cst_31 : f32 to vector<64x128xf32>
    %297 = arith.select %292, %295, %296 : vector<64x128xi1>, vector<64x128xf32>
    %298 = arith.addf %288, %297 : vector<64x128xf32>
    %299 = vector.extract_strided_slice %7 {offsets = [0, 29], sizes = [64, 1], strides = [1, 1]} : vector<64x64xi32> to vector<64x1xi32>
    %300 = vector.broadcast %299 : vector<64x1xi32> to vector<64x128xi32>
    %301 = vector.broadcast %1 : vector<1x128xi32> to vector<64x128xi32>
    %302 = arith.cmpi eq, %300, %301 : vector<64x128xi32>
    %303 = vector.extract_strided_slice %0 {offsets = [29, 0], sizes = [1, 128], strides = [1, 1]} : vector<64x128xf32> to vector<1x128xf32>
    %cst_32 = arith.constant 0.000000e+00 : f32
    %304 = vector.shape_cast %303 : vector<1x128xf32> to vector<1x128xf32>
    %305 = vector.broadcast %304 : vector<1x128xf32> to vector<64x128xf32>
    %306 = vector.broadcast %cst_32 : f32 to vector<64x128xf32>
    %307 = arith.select %302, %305, %306 : vector<64x128xi1>, vector<64x128xf32>
    %308 = arith.addf %298, %307 : vector<64x128xf32>
    %309 = vector.extract_strided_slice %7 {offsets = [0, 30], sizes = [64, 1], strides = [1, 1]} : vector<64x64xi32> to vector<64x1xi32>
    %310 = vector.broadcast %309 : vector<64x1xi32> to vector<64x128xi32>
    %311 = vector.broadcast %1 : vector<1x128xi32> to vector<64x128xi32>
    %312 = arith.cmpi eq, %310, %311 : vector<64x128xi32>
    %313 = vector.extract_strided_slice %0 {offsets = [30, 0], sizes = [1, 128], strides = [1, 1]} : vector<64x128xf32> to vector<1x128xf32>
    %cst_33 = arith.constant 0.000000e+00 : f32
    %314 = vector.shape_cast %313 : vector<1x128xf32> to vector<1x128xf32>
    %315 = vector.broadcast %314 : vector<1x128xf32> to vector<64x128xf32>
    %316 = vector.broadcast %cst_33 : f32 to vector<64x128xf32>
    %317 = arith.select %312, %315, %316 : vector<64x128xi1>, vector<64x128xf32>
    %318 = arith.addf %308, %317 : vector<64x128xf32>
    %319 = vector.extract_strided_slice %7 {offsets = [0, 31], sizes = [64, 1], strides = [1, 1]} : vector<64x64xi32> to vector<64x1xi32>
    %320 = vector.broadcast %319 : vector<64x1xi32> to vector<64x128xi32>
    %321 = vector.broadcast %1 : vector<1x128xi32> to vector<64x128xi32>
    %322 = arith.cmpi eq, %320, %321 : vector<64x128xi32>
    %323 = vector.extract_strided_slice %0 {offsets = [31, 0], sizes = [1, 128], strides = [1, 1]} : vector<64x128xf32> to vector<1x128xf32>
    %cst_34 = arith.constant 0.000000e+00 : f32
    %324 = vector.shape_cast %323 : vector<1x128xf32> to vector<1x128xf32>
    %325 = vector.broadcast %324 : vector<1x128xf32> to vector<64x128xf32>
    %326 = vector.broadcast %cst_34 : f32 to vector<64x128xf32>
    %327 = arith.select %322, %325, %326 : vector<64x128xi1>, vector<64x128xf32>
    %328 = arith.addf %318, %327 : vector<64x128xf32>
    %329 = vector.extract_strided_slice %7 {offsets = [0, 32], sizes = [64, 1], strides = [1, 1]} : vector<64x64xi32> to vector<64x1xi32>
    %330 = vector.broadcast %329 : vector<64x1xi32> to vector<64x128xi32>
    %331 = vector.broadcast %1 : vector<1x128xi32> to vector<64x128xi32>
    %332 = arith.cmpi eq, %330, %331 : vector<64x128xi32>
    %333 = vector.extract_strided_slice %0 {offsets = [32, 0], sizes = [1, 128], strides = [1, 1]} : vector<64x128xf32> to vector<1x128xf32>
    %cst_35 = arith.constant 0.000000e+00 : f32
    %334 = vector.shape_cast %333 : vector<1x128xf32> to vector<1x128xf32>
    %335 = vector.broadcast %334 : vector<1x128xf32> to vector<64x128xf32>
    %336 = vector.broadcast %cst_35 : f32 to vector<64x128xf32>
    %337 = arith.select %332, %335, %336 : vector<64x128xi1>, vector<64x128xf32>
    %338 = arith.addf %328, %337 : vector<64x128xf32>
    %339 = vector.extract_strided_slice %7 {offsets = [0, 33], sizes = [64, 1], strides = [1, 1]} : vector<64x64xi32> to vector<64x1xi32>
    %340 = vector.broadcast %339 : vector<64x1xi32> to vector<64x128xi32>
    %341 = vector.broadcast %1 : vector<1x128xi32> to vector<64x128xi32>
    %342 = arith.cmpi eq, %340, %341 : vector<64x128xi32>
    %343 = vector.extract_strided_slice %0 {offsets = [33, 0], sizes = [1, 128], strides = [1, 1]} : vector<64x128xf32> to vector<1x128xf32>
    %cst_36 = arith.constant 0.000000e+00 : f32
    %344 = vector.shape_cast %343 : vector<1x128xf32> to vector<1x128xf32>
    %345 = vector.broadcast %344 : vector<1x128xf32> to vector<64x128xf32>
    %346 = vector.broadcast %cst_36 : f32 to vector<64x128xf32>
    %347 = arith.select %342, %345, %346 : vector<64x128xi1>, vector<64x128xf32>
    %348 = arith.addf %338, %347 : vector<64x128xf32>
    %349 = vector.extract_strided_slice %7 {offsets = [0, 34], sizes = [64, 1], strides = [1, 1]} : vector<64x64xi32> to vector<64x1xi32>
    %350 = vector.broadcast %349 : vector<64x1xi32> to vector<64x128xi32>
    %351 = vector.broadcast %1 : vector<1x128xi32> to vector<64x128xi32>
    %352 = arith.cmpi eq, %350, %351 : vector<64x128xi32>
    %353 = vector.extract_strided_slice %0 {offsets = [34, 0], sizes = [1, 128], strides = [1, 1]} : vector<64x128xf32> to vector<1x128xf32>
    %cst_37 = arith.constant 0.000000e+00 : f32
    %354 = vector.shape_cast %353 : vector<1x128xf32> to vector<1x128xf32>
    %355 = vector.broadcast %354 : vector<1x128xf32> to vector<64x128xf32>
    %356 = vector.broadcast %cst_37 : f32 to vector<64x128xf32>
    %357 = arith.select %352, %355, %356 : vector<64x128xi1>, vector<64x128xf32>
    %358 = arith.addf %348, %357 : vector<64x128xf32>
    %359 = vector.extract_strided_slice %7 {offsets = [0, 35], sizes = [64, 1], strides = [1, 1]} : vector<64x64xi32> to vector<64x1xi32>
    %360 = vector.broadcast %359 : vector<64x1xi32> to vector<64x128xi32>
    %361 = vector.broadcast %1 : vector<1x128xi32> to vector<64x128xi32>
    %362 = arith.cmpi eq, %360, %361 : vector<64x128xi32>
    %363 = vector.extract_strided_slice %0 {offsets = [35, 0], sizes = [1, 128], strides = [1, 1]} : vector<64x128xf32> to vector<1x128xf32>
    %cst_38 = arith.constant 0.000000e+00 : f32
    %364 = vector.shape_cast %363 : vector<1x128xf32> to vector<1x128xf32>
    %365 = vector.broadcast %364 : vector<1x128xf32> to vector<64x128xf32>
    %366 = vector.broadcast %cst_38 : f32 to vector<64x128xf32>
    %367 = arith.select %362, %365, %366 : vector<64x128xi1>, vector<64x128xf32>
    %368 = arith.addf %358, %367 : vector<64x128xf32>
    %369 = vector.extract_strided_slice %7 {offsets = [0, 36], sizes = [64, 1], strides = [1, 1]} : vector<64x64xi32> to vector<64x1xi32>
    %370 = vector.broadcast %369 : vector<64x1xi32> to vector<64x128xi32>
    %371 = vector.broadcast %1 : vector<1x128xi32> to vector<64x128xi32>
    %372 = arith.cmpi eq, %370, %371 : vector<64x128xi32>
    %373 = vector.extract_strided_slice %0 {offsets = [36, 0], sizes = [1, 128], strides = [1, 1]} : vector<64x128xf32> to vector<1x128xf32>
    %cst_39 = arith.constant 0.000000e+00 : f32
    %374 = vector.shape_cast %373 : vector<1x128xf32> to vector<1x128xf32>
    %375 = vector.broadcast %374 : vector<1x128xf32> to vector<64x128xf32>
    %376 = vector.broadcast %cst_39 : f32 to vector<64x128xf32>
    %377 = arith.select %372, %375, %376 : vector<64x128xi1>, vector<64x128xf32>
    %378 = arith.addf %368, %377 : vector<64x128xf32>
    %379 = vector.extract_strided_slice %7 {offsets = [0, 37], sizes = [64, 1], strides = [1, 1]} : vector<64x64xi32> to vector<64x1xi32>
    %380 = vector.broadcast %379 : vector<64x1xi32> to vector<64x128xi32>
    %381 = vector.broadcast %1 : vector<1x128xi32> to vector<64x128xi32>
    %382 = arith.cmpi eq, %380, %381 : vector<64x128xi32>
    %383 = vector.extract_strided_slice %0 {offsets = [37, 0], sizes = [1, 128], strides = [1, 1]} : vector<64x128xf32> to vector<1x128xf32>
    %cst_40 = arith.constant 0.000000e+00 : f32
    %384 = vector.shape_cast %383 : vector<1x128xf32> to vector<1x128xf32>
    %385 = vector.broadcast %384 : vector<1x128xf32> to vector<64x128xf32>
    %386 = vector.broadcast %cst_40 : f32 to vector<64x128xf32>
    %387 = arith.select %382, %385, %386 : vector<64x128xi1>, vector<64x128xf32>
    %388 = arith.addf %378, %387 : vector<64x128xf32>
    %389 = vector.extract_strided_slice %7 {offsets = [0, 38], sizes = [64, 1], strides = [1, 1]} : vector<64x64xi32> to vector<64x1xi32>
    %390 = vector.broadcast %389 : vector<64x1xi32> to vector<64x128xi32>
    %391 = vector.broadcast %1 : vector<1x128xi32> to vector<64x128xi32>
    %392 = arith.cmpi eq, %390, %391 : vector<64x128xi32>
    %393 = vector.extract_strided_slice %0 {offsets = [38, 0], sizes = [1, 128], strides = [1, 1]} : vector<64x128xf32> to vector<1x128xf32>
    %cst_41 = arith.constant 0.000000e+00 : f32
    %394 = vector.shape_cast %393 : vector<1x128xf32> to vector<1x128xf32>
    %395 = vector.broadcast %394 : vector<1x128xf32> to vector<64x128xf32>
    %396 = vector.broadcast %cst_41 : f32 to vector<64x128xf32>
    %397 = arith.select %392, %395, %396 : vector<64x128xi1>, vector<64x128xf32>
    %398 = arith.addf %388, %397 : vector<64x128xf32>
    %399 = vector.extract_strided_slice %7 {offsets = [0, 39], sizes = [64, 1], strides = [1, 1]} : vector<64x64xi32> to vector<64x1xi32>
    %400 = vector.broadcast %399 : vector<64x1xi32> to vector<64x128xi32>
    %401 = vector.broadcast %1 : vector<1x128xi32> to vector<64x128xi32>
    %402 = arith.cmpi eq, %400, %401 : vector<64x128xi32>
    %403 = vector.extract_strided_slice %0 {offsets = [39, 0], sizes = [1, 128], strides = [1, 1]} : vector<64x128xf32> to vector<1x128xf32>
    %cst_42 = arith.constant 0.000000e+00 : f32
    %404 = vector.shape_cast %403 : vector<1x128xf32> to vector<1x128xf32>
    %405 = vector.broadcast %404 : vector<1x128xf32> to vector<64x128xf32>
    %406 = vector.broadcast %cst_42 : f32 to vector<64x128xf32>
    %407 = arith.select %402, %405, %406 : vector<64x128xi1>, vector<64x128xf32>
    %408 = arith.addf %398, %407 : vector<64x128xf32>
    %409 = vector.extract_strided_slice %7 {offsets = [0, 40], sizes = [64, 1], strides = [1, 1]} : vector<64x64xi32> to vector<64x1xi32>
    %410 = vector.broadcast %409 : vector<64x1xi32> to vector<64x128xi32>
    %411 = vector.broadcast %1 : vector<1x128xi32> to vector<64x128xi32>
    %412 = arith.cmpi eq, %410, %411 : vector<64x128xi32>
    %413 = vector.extract_strided_slice %0 {offsets = [40, 0], sizes = [1, 128], strides = [1, 1]} : vector<64x128xf32> to vector<1x128xf32>
    %cst_43 = arith.constant 0.000000e+00 : f32
    %414 = vector.shape_cast %413 : vector<1x128xf32> to vector<1x128xf32>
    %415 = vector.broadcast %414 : vector<1x128xf32> to vector<64x128xf32>
    %416 = vector.broadcast %cst_43 : f32 to vector<64x128xf32>
    %417 = arith.select %412, %415, %416 : vector<64x128xi1>, vector<64x128xf32>
    %418 = arith.addf %408, %417 : vector<64x128xf32>
    %419 = vector.extract_strided_slice %7 {offsets = [0, 41], sizes = [64, 1], strides = [1, 1]} : vector<64x64xi32> to vector<64x1xi32>
    %420 = vector.broadcast %419 : vector<64x1xi32> to vector<64x128xi32>
    %421 = vector.broadcast %1 : vector<1x128xi32> to vector<64x128xi32>
    %422 = arith.cmpi eq, %420, %421 : vector<64x128xi32>
    %423 = vector.extract_strided_slice %0 {offsets = [41, 0], sizes = [1, 128], strides = [1, 1]} : vector<64x128xf32> to vector<1x128xf32>
    %cst_44 = arith.constant 0.000000e+00 : f32
    %424 = vector.shape_cast %423 : vector<1x128xf32> to vector<1x128xf32>
    %425 = vector.broadcast %424 : vector<1x128xf32> to vector<64x128xf32>
    %426 = vector.broadcast %cst_44 : f32 to vector<64x128xf32>
    %427 = arith.select %422, %425, %426 : vector<64x128xi1>, vector<64x128xf32>
    %428 = arith.addf %418, %427 : vector<64x128xf32>
    %429 = vector.extract_strided_slice %7 {offsets = [0, 42], sizes = [64, 1], strides = [1, 1]} : vector<64x64xi32> to vector<64x1xi32>
    %430 = vector.broadcast %429 : vector<64x1xi32> to vector<64x128xi32>
    %431 = vector.broadcast %1 : vector<1x128xi32> to vector<64x128xi32>
    %432 = arith.cmpi eq, %430, %431 : vector<64x128xi32>
    %433 = vector.extract_strided_slice %0 {offsets = [42, 0], sizes = [1, 128], strides = [1, 1]} : vector<64x128xf32> to vector<1x128xf32>
    %cst_45 = arith.constant 0.000000e+00 : f32
    %434 = vector.shape_cast %433 : vector<1x128xf32> to vector<1x128xf32>
    %435 = vector.broadcast %434 : vector<1x128xf32> to vector<64x128xf32>
    %436 = vector.broadcast %cst_45 : f32 to vector<64x128xf32>
    %437 = arith.select %432, %435, %436 : vector<64x128xi1>, vector<64x128xf32>
    %438 = arith.addf %428, %437 : vector<64x128xf32>
    %439 = vector.extract_strided_slice %7 {offsets = [0, 43], sizes = [64, 1], strides = [1, 1]} : vector<64x64xi32> to vector<64x1xi32>
    %440 = vector.broadcast %439 : vector<64x1xi32> to vector<64x128xi32>
    %441 = vector.broadcast %1 : vector<1x128xi32> to vector<64x128xi32>
    %442 = arith.cmpi eq, %440, %441 : vector<64x128xi32>
    %443 = vector.extract_strided_slice %0 {offsets = [43, 0], sizes = [1, 128], strides = [1, 1]} : vector<64x128xf32> to vector<1x128xf32>
    %cst_46 = arith.constant 0.000000e+00 : f32
    %444 = vector.shape_cast %443 : vector<1x128xf32> to vector<1x128xf32>
    %445 = vector.broadcast %444 : vector<1x128xf32> to vector<64x128xf32>
    %446 = vector.broadcast %cst_46 : f32 to vector<64x128xf32>
    %447 = arith.select %442, %445, %446 : vector<64x128xi1>, vector<64x128xf32>
    %448 = arith.addf %438, %447 : vector<64x128xf32>
    %449 = vector.extract_strided_slice %7 {offsets = [0, 44], sizes = [64, 1], strides = [1, 1]} : vector<64x64xi32> to vector<64x1xi32>
    %450 = vector.broadcast %449 : vector<64x1xi32> to vector<64x128xi32>
    %451 = vector.broadcast %1 : vector<1x128xi32> to vector<64x128xi32>
    %452 = arith.cmpi eq, %450, %451 : vector<64x128xi32>
    %453 = vector.extract_strided_slice %0 {offsets = [44, 0], sizes = [1, 128], strides = [1, 1]} : vector<64x128xf32> to vector<1x128xf32>
    %cst_47 = arith.constant 0.000000e+00 : f32
    %454 = vector.shape_cast %453 : vector<1x128xf32> to vector<1x128xf32>
    %455 = vector.broadcast %454 : vector<1x128xf32> to vector<64x128xf32>
    %456 = vector.broadcast %cst_47 : f32 to vector<64x128xf32>
    %457 = arith.select %452, %455, %456 : vector<64x128xi1>, vector<64x128xf32>
    %458 = arith.addf %448, %457 : vector<64x128xf32>
    %459 = vector.extract_strided_slice %7 {offsets = [0, 45], sizes = [64, 1], strides = [1, 1]} : vector<64x64xi32> to vector<64x1xi32>
    %460 = vector.broadcast %459 : vector<64x1xi32> to vector<64x128xi32>
    %461 = vector.broadcast %1 : vector<1x128xi32> to vector<64x128xi32>
    %462 = arith.cmpi eq, %460, %461 : vector<64x128xi32>
    %463 = vector.extract_strided_slice %0 {offsets = [45, 0], sizes = [1, 128], strides = [1, 1]} : vector<64x128xf32> to vector<1x128xf32>
    %cst_48 = arith.constant 0.000000e+00 : f32
    %464 = vector.shape_cast %463 : vector<1x128xf32> to vector<1x128xf32>
    %465 = vector.broadcast %464 : vector<1x128xf32> to vector<64x128xf32>
    %466 = vector.broadcast %cst_48 : f32 to vector<64x128xf32>
    %467 = arith.select %462, %465, %466 : vector<64x128xi1>, vector<64x128xf32>
    %468 = arith.addf %458, %467 : vector<64x128xf32>
    %469 = vector.extract_strided_slice %7 {offsets = [0, 46], sizes = [64, 1], strides = [1, 1]} : vector<64x64xi32> to vector<64x1xi32>
    %470 = vector.broadcast %469 : vector<64x1xi32> to vector<64x128xi32>
    %471 = vector.broadcast %1 : vector<1x128xi32> to vector<64x128xi32>
    %472 = arith.cmpi eq, %470, %471 : vector<64x128xi32>
    %473 = vector.extract_strided_slice %0 {offsets = [46, 0], sizes = [1, 128], strides = [1, 1]} : vector<64x128xf32> to vector<1x128xf32>
    %cst_49 = arith.constant 0.000000e+00 : f32
    %474 = vector.shape_cast %473 : vector<1x128xf32> to vector<1x128xf32>
    %475 = vector.broadcast %474 : vector<1x128xf32> to vector<64x128xf32>
    %476 = vector.broadcast %cst_49 : f32 to vector<64x128xf32>
    %477 = arith.select %472, %475, %476 : vector<64x128xi1>, vector<64x128xf32>
    %478 = arith.addf %468, %477 : vector<64x128xf32>
    %479 = vector.extract_strided_slice %7 {offsets = [0, 47], sizes = [64, 1], strides = [1, 1]} : vector<64x64xi32> to vector<64x1xi32>
    %480 = vector.broadcast %479 : vector<64x1xi32> to vector<64x128xi32>
    %481 = vector.broadcast %1 : vector<1x128xi32> to vector<64x128xi32>
    %482 = arith.cmpi eq, %480, %481 : vector<64x128xi32>
    %483 = vector.extract_strided_slice %0 {offsets = [47, 0], sizes = [1, 128], strides = [1, 1]} : vector<64x128xf32> to vector<1x128xf32>
    %cst_50 = arith.constant 0.000000e+00 : f32
    %484 = vector.shape_cast %483 : vector<1x128xf32> to vector<1x128xf32>
    %485 = vector.broadcast %484 : vector<1x128xf32> to vector<64x128xf32>
    %486 = vector.broadcast %cst_50 : f32 to vector<64x128xf32>
    %487 = arith.select %482, %485, %486 : vector<64x128xi1>, vector<64x128xf32>
    %488 = arith.addf %478, %487 : vector<64x128xf32>
    %489 = vector.extract_strided_slice %7 {offsets = [0, 48], sizes = [64, 1], strides = [1, 1]} : vector<64x64xi32> to vector<64x1xi32>
    %490 = vector.broadcast %489 : vector<64x1xi32> to vector<64x128xi32>
    %491 = vector.broadcast %1 : vector<1x128xi32> to vector<64x128xi32>
    %492 = arith.cmpi eq, %490, %491 : vector<64x128xi32>
    %493 = vector.extract_strided_slice %0 {offsets = [48, 0], sizes = [1, 128], strides = [1, 1]} : vector<64x128xf32> to vector<1x128xf32>
    %cst_51 = arith.constant 0.000000e+00 : f32
    %494 = vector.shape_cast %493 : vector<1x128xf32> to vector<1x128xf32>
    %495 = vector.broadcast %494 : vector<1x128xf32> to vector<64x128xf32>
    %496 = vector.broadcast %cst_51 : f32 to vector<64x128xf32>
    %497 = arith.select %492, %495, %496 : vector<64x128xi1>, vector<64x128xf32>
    %498 = arith.addf %488, %497 : vector<64x128xf32>
    %499 = vector.extract_strided_slice %7 {offsets = [0, 49], sizes = [64, 1], strides = [1, 1]} : vector<64x64xi32> to vector<64x1xi32>
    %500 = vector.broadcast %499 : vector<64x1xi32> to vector<64x128xi32>
    %501 = vector.broadcast %1 : vector<1x128xi32> to vector<64x128xi32>
    %502 = arith.cmpi eq, %500, %501 : vector<64x128xi32>
    %503 = vector.extract_strided_slice %0 {offsets = [49, 0], sizes = [1, 128], strides = [1, 1]} : vector<64x128xf32> to vector<1x128xf32>
    %cst_52 = arith.constant 0.000000e+00 : f32
    %504 = vector.shape_cast %503 : vector<1x128xf32> to vector<1x128xf32>
    %505 = vector.broadcast %504 : vector<1x128xf32> to vector<64x128xf32>
    %506 = vector.broadcast %cst_52 : f32 to vector<64x128xf32>
    %507 = arith.select %502, %505, %506 : vector<64x128xi1>, vector<64x128xf32>
    %508 = arith.addf %498, %507 : vector<64x128xf32>
    %509 = vector.extract_strided_slice %7 {offsets = [0, 50], sizes = [64, 1], strides = [1, 1]} : vector<64x64xi32> to vector<64x1xi32>
    %510 = vector.broadcast %509 : vector<64x1xi32> to vector<64x128xi32>
    %511 = vector.broadcast %1 : vector<1x128xi32> to vector<64x128xi32>
    %512 = arith.cmpi eq, %510, %511 : vector<64x128xi32>
    %513 = vector.extract_strided_slice %0 {offsets = [50, 0], sizes = [1, 128], strides = [1, 1]} : vector<64x128xf32> to vector<1x128xf32>
    %cst_53 = arith.constant 0.000000e+00 : f32
    %514 = vector.shape_cast %513 : vector<1x128xf32> to vector<1x128xf32>
    %515 = vector.broadcast %514 : vector<1x128xf32> to vector<64x128xf32>
    %516 = vector.broadcast %cst_53 : f32 to vector<64x128xf32>
    %517 = arith.select %512, %515, %516 : vector<64x128xi1>, vector<64x128xf32>
    %518 = arith.addf %508, %517 : vector<64x128xf32>
    %519 = vector.extract_strided_slice %7 {offsets = [0, 51], sizes = [64, 1], strides = [1, 1]} : vector<64x64xi32> to vector<64x1xi32>
    %520 = vector.broadcast %519 : vector<64x1xi32> to vector<64x128xi32>
    %521 = vector.broadcast %1 : vector<1x128xi32> to vector<64x128xi32>
    %522 = arith.cmpi eq, %520, %521 : vector<64x128xi32>
    %523 = vector.extract_strided_slice %0 {offsets = [51, 0], sizes = [1, 128], strides = [1, 1]} : vector<64x128xf32> to vector<1x128xf32>
    %cst_54 = arith.constant 0.000000e+00 : f32
    %524 = vector.shape_cast %523 : vector<1x128xf32> to vector<1x128xf32>
    %525 = vector.broadcast %524 : vector<1x128xf32> to vector<64x128xf32>
    %526 = vector.broadcast %cst_54 : f32 to vector<64x128xf32>
    %527 = arith.select %522, %525, %526 : vector<64x128xi1>, vector<64x128xf32>
    %528 = arith.addf %518, %527 : vector<64x128xf32>
    %529 = vector.extract_strided_slice %7 {offsets = [0, 52], sizes = [64, 1], strides = [1, 1]} : vector<64x64xi32> to vector<64x1xi32>
    %530 = vector.broadcast %529 : vector<64x1xi32> to vector<64x128xi32>
    %531 = vector.broadcast %1 : vector<1x128xi32> to vector<64x128xi32>
    %532 = arith.cmpi eq, %530, %531 : vector<64x128xi32>
    %533 = vector.extract_strided_slice %0 {offsets = [52, 0], sizes = [1, 128], strides = [1, 1]} : vector<64x128xf32> to vector<1x128xf32>
    %cst_55 = arith.constant 0.000000e+00 : f32
    %534 = vector.shape_cast %533 : vector<1x128xf32> to vector<1x128xf32>
    %535 = vector.broadcast %534 : vector<1x128xf32> to vector<64x128xf32>
    %536 = vector.broadcast %cst_55 : f32 to vector<64x128xf32>
    %537 = arith.select %532, %535, %536 : vector<64x128xi1>, vector<64x128xf32>
    %538 = arith.addf %528, %537 : vector<64x128xf32>
    %539 = vector.extract_strided_slice %7 {offsets = [0, 53], sizes = [64, 1], strides = [1, 1]} : vector<64x64xi32> to vector<64x1xi32>
    %540 = vector.broadcast %539 : vector<64x1xi32> to vector<64x128xi32>
    %541 = vector.broadcast %1 : vector<1x128xi32> to vector<64x128xi32>
    %542 = arith.cmpi eq, %540, %541 : vector<64x128xi32>
    %543 = vector.extract_strided_slice %0 {offsets = [53, 0], sizes = [1, 128], strides = [1, 1]} : vector<64x128xf32> to vector<1x128xf32>
    %cst_56 = arith.constant 0.000000e+00 : f32
    %544 = vector.shape_cast %543 : vector<1x128xf32> to vector<1x128xf32>
    %545 = vector.broadcast %544 : vector<1x128xf32> to vector<64x128xf32>
    %546 = vector.broadcast %cst_56 : f32 to vector<64x128xf32>
    %547 = arith.select %542, %545, %546 : vector<64x128xi1>, vector<64x128xf32>
    %548 = arith.addf %538, %547 : vector<64x128xf32>
    %549 = vector.extract_strided_slice %7 {offsets = [0, 54], sizes = [64, 1], strides = [1, 1]} : vector<64x64xi32> to vector<64x1xi32>
    %550 = vector.broadcast %549 : vector<64x1xi32> to vector<64x128xi32>
    %551 = vector.broadcast %1 : vector<1x128xi32> to vector<64x128xi32>
    %552 = arith.cmpi eq, %550, %551 : vector<64x128xi32>
    %553 = vector.extract_strided_slice %0 {offsets = [54, 0], sizes = [1, 128], strides = [1, 1]} : vector<64x128xf32> to vector<1x128xf32>
    %cst_57 = arith.constant 0.000000e+00 : f32
    %554 = vector.shape_cast %553 : vector<1x128xf32> to vector<1x128xf32>
    %555 = vector.broadcast %554 : vector<1x128xf32> to vector<64x128xf32>
    %556 = vector.broadcast %cst_57 : f32 to vector<64x128xf32>
    %557 = arith.select %552, %555, %556 : vector<64x128xi1>, vector<64x128xf32>
    %558 = arith.addf %548, %557 : vector<64x128xf32>
    %559 = vector.extract_strided_slice %7 {offsets = [0, 55], sizes = [64, 1], strides = [1, 1]} : vector<64x64xi32> to vector<64x1xi32>
    %560 = vector.broadcast %559 : vector<64x1xi32> to vector<64x128xi32>
    %561 = vector.broadcast %1 : vector<1x128xi32> to vector<64x128xi32>
    %562 = arith.cmpi eq, %560, %561 : vector<64x128xi32>
    %563 = vector.extract_strided_slice %0 {offsets = [55, 0], sizes = [1, 128], strides = [1, 1]} : vector<64x128xf32> to vector<1x128xf32>
    %cst_58 = arith.constant 0.000000e+00 : f32
    %564 = vector.shape_cast %563 : vector<1x128xf32> to vector<1x128xf32>
    %565 = vector.broadcast %564 : vector<1x128xf32> to vector<64x128xf32>
    %566 = vector.broadcast %cst_58 : f32 to vector<64x128xf32>
    %567 = arith.select %562, %565, %566 : vector<64x128xi1>, vector<64x128xf32>
    %568 = arith.addf %558, %567 : vector<64x128xf32>
    %569 = vector.extract_strided_slice %7 {offsets = [0, 56], sizes = [64, 1], strides = [1, 1]} : vector<64x64xi32> to vector<64x1xi32>
    %570 = vector.broadcast %569 : vector<64x1xi32> to vector<64x128xi32>
    %571 = vector.broadcast %1 : vector<1x128xi32> to vector<64x128xi32>
    %572 = arith.cmpi eq, %570, %571 : vector<64x128xi32>
    %573 = vector.extract_strided_slice %0 {offsets = [56, 0], sizes = [1, 128], strides = [1, 1]} : vector<64x128xf32> to vector<1x128xf32>
    %cst_59 = arith.constant 0.000000e+00 : f32
    %574 = vector.shape_cast %573 : vector<1x128xf32> to vector<1x128xf32>
    %575 = vector.broadcast %574 : vector<1x128xf32> to vector<64x128xf32>
    %576 = vector.broadcast %cst_59 : f32 to vector<64x128xf32>
    %577 = arith.select %572, %575, %576 : vector<64x128xi1>, vector<64x128xf32>
    %578 = arith.addf %568, %577 : vector<64x128xf32>
    %579 = vector.extract_strided_slice %7 {offsets = [0, 57], sizes = [64, 1], strides = [1, 1]} : vector<64x64xi32> to vector<64x1xi32>
    %580 = vector.broadcast %579 : vector<64x1xi32> to vector<64x128xi32>
    %581 = vector.broadcast %1 : vector<1x128xi32> to vector<64x128xi32>
    %582 = arith.cmpi eq, %580, %581 : vector<64x128xi32>
    %583 = vector.extract_strided_slice %0 {offsets = [57, 0], sizes = [1, 128], strides = [1, 1]} : vector<64x128xf32> to vector<1x128xf32>
    %cst_60 = arith.constant 0.000000e+00 : f32
    %584 = vector.shape_cast %583 : vector<1x128xf32> to vector<1x128xf32>
    %585 = vector.broadcast %584 : vector<1x128xf32> to vector<64x128xf32>
    %586 = vector.broadcast %cst_60 : f32 to vector<64x128xf32>
    %587 = arith.select %582, %585, %586 : vector<64x128xi1>, vector<64x128xf32>
    %588 = arith.addf %578, %587 : vector<64x128xf32>
    %589 = vector.extract_strided_slice %7 {offsets = [0, 58], sizes = [64, 1], strides = [1, 1]} : vector<64x64xi32> to vector<64x1xi32>
    %590 = vector.broadcast %589 : vector<64x1xi32> to vector<64x128xi32>
    %591 = vector.broadcast %1 : vector<1x128xi32> to vector<64x128xi32>
    %592 = arith.cmpi eq, %590, %591 : vector<64x128xi32>
    %593 = vector.extract_strided_slice %0 {offsets = [58, 0], sizes = [1, 128], strides = [1, 1]} : vector<64x128xf32> to vector<1x128xf32>
    %cst_61 = arith.constant 0.000000e+00 : f32
    %594 = vector.shape_cast %593 : vector<1x128xf32> to vector<1x128xf32>
    %595 = vector.broadcast %594 : vector<1x128xf32> to vector<64x128xf32>
    %596 = vector.broadcast %cst_61 : f32 to vector<64x128xf32>
    %597 = arith.select %592, %595, %596 : vector<64x128xi1>, vector<64x128xf32>
    %598 = arith.addf %588, %597 : vector<64x128xf32>
    %599 = vector.extract_strided_slice %7 {offsets = [0, 59], sizes = [64, 1], strides = [1, 1]} : vector<64x64xi32> to vector<64x1xi32>
    %600 = vector.broadcast %599 : vector<64x1xi32> to vector<64x128xi32>
    %601 = vector.broadcast %1 : vector<1x128xi32> to vector<64x128xi32>
    %602 = arith.cmpi eq, %600, %601 : vector<64x128xi32>
    %603 = vector.extract_strided_slice %0 {offsets = [59, 0], sizes = [1, 128], strides = [1, 1]} : vector<64x128xf32> to vector<1x128xf32>
    %cst_62 = arith.constant 0.000000e+00 : f32
    %604 = vector.shape_cast %603 : vector<1x128xf32> to vector<1x128xf32>
    %605 = vector.broadcast %604 : vector<1x128xf32> to vector<64x128xf32>
    %606 = vector.broadcast %cst_62 : f32 to vector<64x128xf32>
    %607 = arith.select %602, %605, %606 : vector<64x128xi1>, vector<64x128xf32>
    %608 = arith.addf %598, %607 : vector<64x128xf32>
    %609 = vector.extract_strided_slice %7 {offsets = [0, 60], sizes = [64, 1], strides = [1, 1]} : vector<64x64xi32> to vector<64x1xi32>
    %610 = vector.broadcast %609 : vector<64x1xi32> to vector<64x128xi32>
    %611 = vector.broadcast %1 : vector<1x128xi32> to vector<64x128xi32>
    %612 = arith.cmpi eq, %610, %611 : vector<64x128xi32>
    %613 = vector.extract_strided_slice %0 {offsets = [60, 0], sizes = [1, 128], strides = [1, 1]} : vector<64x128xf32> to vector<1x128xf32>
    %cst_63 = arith.constant 0.000000e+00 : f32
    %614 = vector.shape_cast %613 : vector<1x128xf32> to vector<1x128xf32>
    %615 = vector.broadcast %614 : vector<1x128xf32> to vector<64x128xf32>
    %616 = vector.broadcast %cst_63 : f32 to vector<64x128xf32>
    %617 = arith.select %612, %615, %616 : vector<64x128xi1>, vector<64x128xf32>
    %618 = arith.addf %608, %617 : vector<64x128xf32>
    %619 = vector.extract_strided_slice %7 {offsets = [0, 61], sizes = [64, 1], strides = [1, 1]} : vector<64x64xi32> to vector<64x1xi32>
    %620 = vector.broadcast %619 : vector<64x1xi32> to vector<64x128xi32>
    %621 = vector.broadcast %1 : vector<1x128xi32> to vector<64x128xi32>
    %622 = arith.cmpi eq, %620, %621 : vector<64x128xi32>
    %623 = vector.extract_strided_slice %0 {offsets = [61, 0], sizes = [1, 128], strides = [1, 1]} : vector<64x128xf32> to vector<1x128xf32>
    %cst_64 = arith.constant 0.000000e+00 : f32
    %624 = vector.shape_cast %623 : vector<1x128xf32> to vector<1x128xf32>
    %625 = vector.broadcast %624 : vector<1x128xf32> to vector<64x128xf32>
    %626 = vector.broadcast %cst_64 : f32 to vector<64x128xf32>
    %627 = arith.select %622, %625, %626 : vector<64x128xi1>, vector<64x128xf32>
    %628 = arith.addf %618, %627 : vector<64x128xf32>
    %629 = vector.extract_strided_slice %7 {offsets = [0, 62], sizes = [64, 1], strides = [1, 1]} : vector<64x64xi32> to vector<64x1xi32>
    %630 = vector.broadcast %629 : vector<64x1xi32> to vector<64x128xi32>
    %631 = vector.broadcast %1 : vector<1x128xi32> to vector<64x128xi32>
    %632 = arith.cmpi eq, %630, %631 : vector<64x128xi32>
    %633 = vector.extract_strided_slice %0 {offsets = [62, 0], sizes = [1, 128], strides = [1, 1]} : vector<64x128xf32> to vector<1x128xf32>
    %cst_65 = arith.constant 0.000000e+00 : f32
    %634 = vector.shape_cast %633 : vector<1x128xf32> to vector<1x128xf32>
    %635 = vector.broadcast %634 : vector<1x128xf32> to vector<64x128xf32>
    %636 = vector.broadcast %cst_65 : f32 to vector<64x128xf32>
    %637 = arith.select %632, %635, %636 : vector<64x128xi1>, vector<64x128xf32>
    %638 = arith.addf %628, %637 : vector<64x128xf32>
    %639 = vector.extract_strided_slice %7 {offsets = [0, 63], sizes = [64, 1], strides = [1, 1]} : vector<64x64xi32> to vector<64x1xi32>
    %640 = vector.broadcast %639 : vector<64x1xi32> to vector<64x128xi32>
    %641 = vector.broadcast %1 : vector<1x128xi32> to vector<64x128xi32>
    %642 = arith.cmpi eq, %640, %641 : vector<64x128xi32>
    %643 = vector.extract_strided_slice %0 {offsets = [63, 0], sizes = [1, 128], strides = [1, 1]} : vector<64x128xf32> to vector<1x128xf32>
    %cst_66 = arith.constant 0.000000e+00 : f32
    %644 = vector.shape_cast %643 : vector<1x128xf32> to vector<1x128xf32>
    %645 = vector.broadcast %644 : vector<1x128xf32> to vector<64x128xf32>
    %646 = vector.broadcast %cst_66 : f32 to vector<64x128xf32>
    %647 = arith.select %642, %645, %646 : vector<64x128xi1>, vector<64x128xf32>
    %648 = arith.addf %638, %647 : vector<64x128xf32>
    %cst_67 = arith.constant dense<0.000000e+00> : vector<64xf32>
    %649 = vector.multi_reduction <add>, %648, %cst_67 [1] : vector<64x128xf32> to vector<64xf32>
    %650 = vector.shape_cast %649 : vector<64xf32> to vector<1x64xf32>
    %c0_68 = arith.constant 0 : index
    %651 = arith.index_cast %3 : i32 to index
    %c0_69 = arith.constant 0 : index
    %652 = vector.load %arg3[%c0_68, %651, %c0_69] : memref<1x1x64xf32, #tpu.memory_space<vmem>>, vector<1x1x64xf32>
    %653 = vector.shape_cast %652 : vector<1x1x64xf32> to vector<1x64xf32>
    %654 = vector.shape_cast %650 : vector<1x64xf32> to vector<1x1x64xf32>
    tpu.vector_store %arg3[%c0_68, %651, %c0_69], %654 {strides = array<i32>} : memref<1x1x64xf32, #tpu.memory_space<vmem>>, vector<1x1x64xf32>,
    %c1_i32_70 = arith.constant 1 : i32
    return
  }
  func.func @transform_0(%arg0: i32) -> (i32, i32) {
    %c0_i32 = arith.constant 0 : i32
    %c0_i32_0 = arith.constant 0 : i32
    return %arg0, %c0_i32 : i32, i32
  }
  func.func @transform_1(%arg0: i32) -> (i32, i32) {
    %c0_i32 = arith.constant 0 : i32
    %c0_i32_0 = arith.constant 0 : i32
    %c0_i32_1 = arith.constant 0 : i32
    return %c0_i32, %c0_i32_0 : i32, i32
  }
  func.func @transform_2(%arg0: i32) -> (i32, i32, i32) {
    %c0_i32 = arith.constant 0 : i32
    %c0_i32_0 = arith.constant 0 : i32
    %c0_i32_1 = arith.constant 0 : i32
    return %arg0, %c0_i32, %c0_i32_0 : i32, i32, i32
  }
}

</mosaic_0001>

<llo_original>
// kernel: tpu_custom_call.1
$region0: #{tpu_custom_call.1}
  #allocation0 [shape = 'u32[]', space=smem, size = 0x4, offset = 0x4, fixed_abs, tag = 'smem constant byte address 0x4 - core index']
  #allocation1 [shape = 'u32[144,128]{1,0:T(1,128)}', space=vmem, size = 0x12000, scoped, tag = 'internal scratch']
  %s0 = inlined_call_operand.hbm [shape: s32[64,64], index: 0, kind: input, shape index: {}]
  %s1 = inlined_call_operand.hbm [shape: f32[64,128], index: 1, kind: input, shape index: {}]
  %s2 = inlined_call_operand.hbm [shape: f32[1,1,64], index: 2, kind: output, shape index: {}]
  %s3 = sld [smem:[#allocation0]]
  $region26: #{tpu_custom_call.1} parent=0
    _
  %s5 = ssub.s32 1, %s3
  %s6 = scalar_select 0, %s5, %s3
  $region1: #{tpu_custom_call.1} parent=0
    #allocation2 [shape = 'u8[32768]{0}', space=vmem, size = 0x8000, scoped, tag = 'input window, operand 0, single buffered']
    #allocation3 [shape = 's32[1]{0}', space=sflag, size = 0x4, scoped, tag = 'scoped memory for tpu_custom_call.1']
    #allocation4 [shape = 's32[1]{0}', space=sflag, size = 0x4, scoped, tag = 'scoped memory for tpu_custom_call.1']
    #allocation5 [shape = 'u8[32768]{0}', space=vmem, size = 0x8000, scoped, tag = 'input window, operand 1, single buffered']
    #allocation6 [shape = 's32[1]{0}', space=sflag, size = 0x4, scoped, tag = 'scoped memory for tpu_custom_call.1']
    #allocation7 [shape = 'u8[512]{0}', space=vmem, size = 0x400, scoped, tag = 'output window, operand 0, single buffered']
    %7 = vsyncpa [#allocation3], 0
    %8 = vsyncpa [#allocation6], 0
    %9 = vsyncpa [#allocation4], 0
    // Predicated region
    $region2: #{tpu_custom_call.1} parent=1 // pred_check
      _
    $region3: #{tpu_custom_call.1} parent=1 // pred_check_branch
      %11 = sbr.rel (0) target = $region5
    $region4: #{tpu_custom_call.1} parent=1 // pred_region
      %s13 = ssub.s32 1024, 1024
      %14 = vsyncadd [#allocation3], %s13
      %s15 = sshll.u32 [#allocation2], 4
      %s16 = int_to_ptr.vmem [resolvable:$true] %s15
      %21 = dma.hbm_to_vmem [thread:$0]  %s0, 1024, %s16, [#allocation3], 128, 128, 8
    $region5: #{tpu_custom_call.1} parent=1 // pred_fallthru
      _
    // Predicated region
    $region6: #{tpu_custom_call.1} parent=1 // pred_check
      _
    $region7: #{tpu_custom_call.1} parent=1 // pred_check_branch
      %23 = sbr.rel (0) target = $region9
    $region8: #{tpu_custom_call.1} parent=1 // pred_region
      %s25 = ssub.s32 1024, 1024
      %26 = vsyncadd [#allocation6], %s25
      %s27 = sshll.u32 [#allocation5], 4
      %s28 = int_to_ptr.vmem [resolvable:$true] %s27
      %33 = dma.hbm_to_vmem [thread:$0]  %s1, 1024, %s28, [#allocation6], 128, 128, 8
    $region9: #{tpu_custom_call.1} parent=1 // pred_fallthru
      _
    // Predicated region
    $region10: #{tpu_custom_call.1} parent=1 // pred_check
      _
    $region11: #{tpu_custom_call.1} parent=1 // pred_check_branch
      %35 = sbr.rel (0) target = $region13
    $region12: #{tpu_custom_call.1} parent=1 // pred_region
      %36 = dma.done [#allocation3], 1024
    $region13: #{tpu_custom_call.1} parent=1 // pred_fallthru
      _
    // Predicated region
    $region14: #{tpu_custom_call.1} parent=1 // pred_check
      _
    $region15: #{tpu_custom_call.1} parent=1 // pred_check_branch
      %38 = sbr.rel (0) target = $region17
    $region16: #{tpu_custom_call.1} parent=1 // pred_region
      %39 = dma.done [#allocation6], 1024
    $region17: #{tpu_custom_call.1} parent=1 // pred_fallthru
      _
    %v40 = vld [vmem:[#allocation5] sm:$0xff]
    %v41 = vld [vmem:[#allocation5 + $0x8] sm:$0xff]
    %v42 = vld [vmem:[#allocation5 + $0x10] sm:$0xff]
    %v43 = vld [vmem:[#allocation5 + $0x18] sm:$0xff]
    %v44 = vld [vmem:[#allocation5 + $0x20] sm:$0xff]
    %v45 = vld [vmem:[#allocation5 + $0x28] sm:$0xff]
    %v46 = vld [vmem:[#allocation5 + $0x30] sm:$0xff]
    %v47 = vld [vmem:[#allocation5 + $0x38] sm:$0xff]
    %v48 = vlaneseq
    %v49 = vand.u32 %v48, 127
    %v50 = vld [vmem:[#allocation2] sm:$0xff]
    %v51 = vld [vmem:[#allocation2 + $0x8] sm:$0xff]
    %v52 = vld [vmem:[#allocation2 + $0x10] sm:$0xff]
    %v53 = vld [vmem:[#allocation2 + $0x18] sm:$0xff]
    %v54 = vld [vmem:[#allocation2 + $0x20] sm:$0xff]
    %v55 = vld [vmem:[#allocation2 + $0x28] sm:$0xff]
    %v56 = vld [vmem:[#allocation2 + $0x30] sm:$0xff]
    %v57 = vld [vmem:[#allocation2 + $0x38] sm:$0xff]
    %58 = vset.pattern.permute.xlu0 0
    %59 = vperm.xlu0 %58, %v50
    %v60 = vpop.permute.xlu0 %59
    %61 = vset.pattern.permute.xlu0 0
    %62 = vperm.xlu0 %61, %v51
    %v63 = vpop.permute.xlu0 %62
    %64 = vset.pattern.permute.xlu0 0
    %65 = vperm.xlu0 %64, %v52
    %v66 = vpop.permute.xlu0 %65
    %67 = vset.pattern.permute.xlu0 0
    %68 = vperm.xlu0 %67, %v53
    %v69 = vpop.permute.xlu0 %68
    %70 = vset.pattern.permute.xlu0 0
    %71 = vperm.xlu0 %70, %v54
    %v72 = vpop.permute.xlu0 %71
    %73 = vset.pattern.permute.xlu0 0
    %74 = vperm.xlu0 %73, %v55
    %v75 = vpop.permute.xlu0 %74
    %76 = vset.pattern.permute.xlu0 0
    %77 = vperm.xlu0 %76, %v56
    %v78 = vpop.permute.xlu0 %77
    %79 = vset.pattern.permute.xlu0 0
    %80 = vperm.xlu0 %79, %v57
    %v81 = vpop.permute.xlu0 %80
    %vm82 = vcmp.eq.s32.totalorder %v60, %v49
    %vm83 = vcmp.eq.s32.totalorder %v63, %v49
    %vm84 = vcmp.eq.s32.totalorder %v66, %v49
    %vm85 = vcmp.eq.s32.totalorder %v69, %v49
    %vm86 = vcmp.eq.s32.totalorder %v72, %v49
    %vm87 = vcmp.eq.s32.totalorder %v75, %v49
    %vm88 = vcmp.eq.s32.totalorder %v78, %v49
    %vm89 = vcmp.eq.s32.totalorder %v81, %v49
    %v90 = vlaneseq
    %v91 = vshrl.u32 %v90, 7
    %v92 = vsub.s32 0, %v91
    %v93 = vrot.slane %v40, %v92
    %v94 = vsel %vm82, %v93, 0.0
    %v95 = vsel %vm83, %v93, 0.0
    %v96 = vsel %vm84, %v93, 0.0
    %v97 = vsel %vm85, %v93, 0.0
    %v98 = vsel %vm86, %v93, 0.0
    %v99 = vsel %vm87, %v93, 0.0
    %v100 = vsel %vm88, %v93, 0.0
    %v101 = vsel %vm89, %v93, 0.0
    %v102 = vadd.f32 %v94, 0.0
    %v103 = vadd.f32 %v95, 0.0
    %v104 = vadd.f32 %v96, 0.0
    %v105 = vadd.f32 %v97, 0.0
    %v106 = vadd.f32 %v98, 0.0
    %v107 = vadd.f32 %v99, 0.0
    %v108 = vadd.f32 %v100, 0.0
    %v109 = vadd.f32 %v101, 0.0
    %110 = vset.pattern.permute.xlu0 1
    %111 = vperm.xlu0 %110, %v50
    %v112 = vpop.permute.xlu0 %111
    %113 = vset.pattern.permute.xlu0 1
    %114 = vperm.xlu0 %113, %v51
    %v115 = vpop.permute.xlu0 %114
    %116 = vset.pattern.permute.xlu0 1
    %117 = vperm.xlu0 %116, %v52
    %v118 = vpop.permute.xlu0 %117
    %119 = vset.pattern.permute.xlu0 1
    %120 = vperm.xlu0 %119, %v53
    %v121 = vpop.permute.xlu0 %120
    %122 = vset.pattern.permute.xlu0 1
    %123 = vperm.xlu0 %122, %v54
    %v124 = vpop.permute.xlu0 %123
    %125 = vset.pattern.permute.xlu0 1
    %126 = vperm.xlu0 %125, %v55
    %v127 = vpop.permute.xlu0 %126
    %128 = vset.pattern.permute.xlu0 1
    %129 = vperm.xlu0 %128, %v56
    %v130 = vpop.permute.xlu0 %129
    %131 = vset.pattern.permute.xlu0 1
    %132 = vperm.xlu0 %131, %v57
    %v133 = vpop.permute.xlu0 %132
    %vm134 = vcmp.eq.s32.totalorder %v112, %v49
    %vm135 = vcmp.eq.s32.totalorder %v115, %v49
    %vm136 = vcmp.eq.s32.totalorder %v118, %v49
    %vm137 = vcmp.eq.s32.totalorder %v121, %v49
    %vm138 = vcmp.eq.s32.totalorder %v124, %v49
    %vm139 = vcmp.eq.s32.totalorder %v127, %v49
    %vm140 = vcmp.eq.s32.totalorder %v130, %v49
    %vm141 = vcmp.eq.s32.totalorder %v133, %v49
    %v142 = vlaneseq
    %v143 = vshrl.u32 %v142, 7
    %v144 = vsub.s32 1, %v143
    %v145 = vrot.slane %v40, %v144
    %v146 = vsel %vm134, %v145, 0.0
    %v147 = vsel %vm135, %v145, 0.0
    %v148 = vsel %vm136, %v145, 0.0
    %v149 = vsel %vm137, %v145, 0.0
    %v150 = vsel %vm138, %v145, 0.0
    %v151 = vsel %vm139, %v145, 0.0
    %v152 = vsel %vm140, %v145, 0.0
    %v153 = vsel %vm141, %v145, 0.0
    %v154 = vadd.f32 %v102, %v146
    %v155 = vadd.f32 %v103, %v147
    %v156 = vadd.f32 %v104, %v148
    %v157 = vadd.f32 %v105, %v149
    %v158 = vadd.f32 %v106, %v150
    %v159 = vadd.f32 %v107, %v151
    %v160 = vadd.f32 %v108, %v152
    %v161 = vadd.f32 %v109, %v153
    %162 = vset.pattern.permute.xlu0 2
    %163 = vperm.xlu0 %162, %v50
    %v164 = vpop.permute.xlu0 %163
    %165 = vset.pattern.permute.xlu0 2
    %166 = vperm.xlu0 %165, %v51
    %v167 = vpop.permute.xlu0 %166
    %168 = vset.pattern.permute.xlu0 2
    %169 = vperm.xlu0 %168, %v52
    %v170 = vpop.permute.xlu0 %169
    %171 = vset.pattern.permute.xlu0 2
    %172 = vperm.xlu0 %171, %v53
    %v173 = vpop.permute.xlu0 %172
    %174 = vset.pattern.permute.xlu0 2
    %175 = vperm.xlu0 %174, %v54
    %v176 = vpop.permute.xlu0 %175
    %177 = vset.pattern.permute.xlu0 2
    %178 = vperm.xlu0 %177, %v55
    %v179 = vpop.permute.xlu0 %178
    %180 = vset.pattern.permute.xlu0 2
    %181 = vperm.xlu0 %180, %v56
    %v182 = vpop.permute.xlu0 %181
    %183 = vset.pattern.permute.xlu0 2
    %184 = vperm.xlu0 %183, %v57
    %v185 = vpop.permute.xlu0 %184
    %vm186 = vcmp.eq.s32.totalorder %v164, %v49
    %vm187 = vcmp.eq.s32.totalorder %v167, %v49
    %vm188 = vcmp.eq.s32.totalorder %v170, %v49
    %vm189 = vcmp.eq.s32.totalorder %v173, %v49
    %vm190 = vcmp.eq.s32.totalorder %v176, %v49
    %vm191 = vcmp.eq.s32.totalorder %v179, %v49
    %vm192 = vcmp.eq.s32.totalorder %v182, %v49
    %vm193 = vcmp.eq.s32.totalorder %v185, %v49
    %v194 = vlaneseq
    %v195 = vshrl.u32 %v194, 7
    %v196 = vsub.s32 2, %v195
    %v197 = vrot.slane %v40, %v196
    %v198 = vsel %vm186, %v197, 0.0
    %v199 = vsel %vm187, %v197, 0.0
    %v200 = vsel %vm188, %v197, 0.0
    %v201 = vsel %vm189, %v197, 0.0
    %v202 = vsel %vm190, %v197, 0.0
    %v203 = vsel %vm191, %v197, 0.0
    %v204 = vsel %vm192, %v197, 0.0
    %v205 = vsel %vm193, %v197, 0.0
    %v206 = vadd.f32 %v154, %v198
    %v207 = vadd.f32 %v155, %v199
    %v208 = vadd.f32 %v156, %v200
    %v209 = vadd.f32 %v157, %v201
    %v210 = vadd.f32 %v158, %v202
    %v211 = vadd.f32 %v159, %v203
    %v212 = vadd.f32 %v160, %v204
    %v213 = vadd.f32 %v161, %v205
    %214 = vset.pattern.permute.xlu0 3
    %215 = vperm.xlu0 %214, %v50
    %v216 = vpop.permute.xlu0 %215
    %217 = vset.pattern.permute.xlu0 3
    %218 = vperm.xlu0 %217, %v51
    %v219 = vpop.permute.xlu0 %218
    %220 = vset.pattern.permute.xlu0 3
    %221 = vperm.xlu0 %220, %v52
    %v222 = vpop.permute.xlu0 %221
    %223 = vset.pattern.permute.xlu0 3
    %224 = vperm.xlu0 %223, %v53
    %v225 = vpop.permute.xlu0 %224
    %226 = vset.pattern.permute.xlu0 3
    %227 = vperm.xlu0 %226, %v54
    %v228 = vpop.permute.xlu0 %227
    %229 = vset.pattern.permute.xlu0 3
    %230 = vperm.xlu0 %229, %v55
    %v231 = vpop.permute.xlu0 %230
    %232 = vset.pattern.permute.xlu0 3
    %233 = vperm.xlu0 %232, %v56
    %v234 = vpop.permute.xlu0 %233
    %235 = vset.pattern.permute.xlu0 3
    %236 = vperm.xlu0 %235, %v57
    %v237 = vpop.permute.xlu0 %236
    %vm238 = vcmp.eq.s32.totalorder %v216, %v49
    %vm239 = vcmp.eq.s32.totalorder %v219, %v49
    %vm240 = vcmp.eq.s32.totalorder %v222, %v49
    %vm241 = vcmp.eq.s32.totalorder %v225, %v49
    %vm242 = vcmp.eq.s32.totalorder %v228, %v49
    %vm243 = vcmp.eq.s32.totalorder %v231, %v49
    %vm244 = vcmp.eq.s32.totalorder %v234, %v49
    %vm245 = vcmp.eq.s32.totalorder %v237, %v49
    %v246 = vlaneseq
    %v247 = vshrl.u32 %v246, 7
    %v248 = vsub.s32 3, %v247
    %v249 = vrot.slane %v40, %v248
    %v250 = vsel %vm238, %v249, 0.0
    %v251 = vsel %vm239, %v249, 0.0
    %v252 = vsel %vm240, %v249, 0.0
    %v253 = vsel %vm241, %v249, 0.0
    %v254 = vsel %vm242, %v249, 0.0
    %v255 = vsel %vm243, %v249, 0.0
    %v256 = vsel %vm244, %v249, 0.0
    %v257 = vsel %vm245, %v249, 0.0
    %v258 = vadd.f32 %v206, %v250
    %v259 = vadd.f32 %v207, %v251
    %v260 = vadd.f32 %v208, %v252
    %v261 = vadd.f32 %v209, %v253
    %v262 = vadd.f32 %v210, %v254
    %v263 = vadd.f32 %v211, %v255
    %v264 = vadd.f32 %v212, %v256
    %v265 = vadd.f32 %v213, %v257
    %266 = vset.pattern.permute.xlu0 4
    %267 = vperm.xlu0 %266, %v50
    %v268 = vpop.permute.xlu0 %267
    %269 = vset.pattern.permute.xlu0 4
    %270 = vperm.xlu0 %269, %v51
    %v271 = vpop.permute.xlu0 %270
    %272 = vset.pattern.permute.xlu0 4
    %273 = vperm.xlu0 %272, %v52
    %v274 = vpop.permute.xlu0 %273
    %275 = vset.pattern.permute.xlu0 4
    %276 = vperm.xlu0 %275, %v53
    %v277 = vpop.permute.xlu0 %276
    %278 = vset.pattern.permute.xlu0 4
    %279 = vperm.xlu0 %278, %v54
    %v280 = vpop.permute.xlu0 %279
    %281 = vset.pattern.permute.xlu0 4
    %282 = vperm.xlu0 %281, %v55
    %v283 = vpop.permute.xlu0 %282
    %284 = vset.pattern.permute.xlu0 4
    %285 = vperm.xlu0 %284, %v56
    %v286 = vpop.permute.xlu0 %285
    %287 = vset.pattern.permute.xlu0 4
    %288 = vperm.xlu0 %287, %v57
    %v289 = vpop.permute.xlu0 %288
    %vm290 = vcmp.eq.s32.totalorder %v268, %v49
    %vm291 = vcmp.eq.s32.totalorder %v271, %v49
    %vm292 = vcmp.eq.s32.totalorder %v274, %v49
    %vm293 = vcmp.eq.s32.totalorder %v277, %v49
    %vm294 = vcmp.eq.s32.totalorder %v280, %v49
    %vm295 = vcmp.eq.s32.totalorder %v283, %v49
    %vm296 = vcmp.eq.s32.totalorder %v286, %v49
    %vm297 = vcmp.eq.s32.totalorder %v289, %v49
    %v298 = vlaneseq
    %v299 = vshrl.u32 %v298, 7
    %v300 = vsub.s32 4, %v299
    %v301 = vrot.slane %v40, %v300
    %v302 = vsel %vm290, %v301, 0.0
    %v303 = vsel %vm291, %v301, 0.0
    %v304 = vsel %vm292, %v301, 0.0
    %v305 = vsel %vm293, %v301, 0.0
    %v306 = vsel %vm294, %v301, 0.0
    %v307 = vsel %vm295, %v301, 0.0
    %v308 = vsel %vm296, %v301, 0.0
    %v309 = vsel %vm297, %v301, 0.0
    %v310 = vadd.f32 %v258, %v302
    %v311 = vadd.f32 %v259, %v303
    %v312 = vadd.f32 %v260, %v304
    %v313 = vadd.f32 %v261, %v305
    %v314 = vadd.f32 %v262, %v306
    %v315 = vadd.f32 %v263, %v307
    %v316 = vadd.f32 %v264, %v308
    %v317 = vadd.f32 %v265, %v309
    %318 = vset.pattern.permute.xlu0 5
    %319 = vperm.xlu0 %318, %v50
    %v320 = vpop.permute.xlu0 %319
    %321 = vset.pattern.permute.xlu0 5
    %322 = vperm.xlu0 %321, %v51
    %v323 = vpop.permute.xlu0 %322
    %324 = vset.pattern.permute.xlu0 5
    %325 = vperm.xlu0 %324, %v52
    %v326 = vpop.permute.xlu0 %325
    %327 = vset.pattern.permute.xlu0 5
    %328 = vperm.xlu0 %327, %v53
    %v329 = vpop.permute.xlu0 %328
    %330 = vset.pattern.permute.xlu0 5
    %331 = vperm.xlu0 %330, %v54
    %v332 = vpop.permute.xlu0 %331
    %333 = vset.pattern.permute.xlu0 5
    %334 = vperm.xlu0 %333, %v55
    %v335 = vpop.permute.xlu0 %334
    %336 = vset.pattern.permute.xlu0 5
    %337 = vperm.xlu0 %336, %v56
    %v338 = vpop.permute.xlu0 %337
    %339 = vset.pattern.permute.xlu0 5
    %340 = vperm.xlu0 %339, %v57
    %v341 = vpop.permute.xlu0 %340
    %vm342 = vcmp.eq.s32.totalorder %v320, %v49
    %vm343 = vcmp.eq.s32.totalorder %v323, %v49
    %vm344 = vcmp.eq.s32.totalorder %v326, %v49
    %vm345 = vcmp.eq.s32.totalorder %v329, %v49
    %vm346 = vcmp.eq.s32.totalorder %v332, %v49
    %vm347 = vcmp.eq.s32.totalorder %v335, %v49
    %vm348 = vcmp.eq.s32.totalorder %v338, %v49
    %vm349 = vcmp.eq.s32.totalorder %v341, %v49
    %v350 = vlaneseq
    %v351 = vshrl.u32 %v350, 7
    %v352 = vsub.s32 5, %v351
    %v353 = vrot.slane %v40, %v352
    %v354 = vsel %vm342, %v353, 0.0
    %v355 = vsel %vm343, %v353, 0.0
    %v356 = vsel %vm344, %v353, 0.0
    %v357 = vsel %vm345, %v353, 0.0
    %v358 = vsel %vm346, %v353, 0.0
    %v359 = vsel %vm347, %v353, 0.0
    %v360 = vsel %vm348, %v353, 0.0
    %v361 = vsel %vm349, %v353, 0.0
    %v362 = vadd.f32 %v310, %v354
    %v363 = vadd.f32 %v311, %v355
    %v364 = vadd.f32 %v312, %v356
    %v365 = vadd.f32 %v313, %v357
    %v366 = vadd.f32 %v314, %v358
    %v367 = vadd.f32 %v315, %v359
    %v368 = vadd.f32 %v316, %v360
    %v369 = vadd.f32 %v317, %v361
    %370 = vset.pattern.permute.xlu0 6
    %371 = vperm.xlu0 %370, %v50
    %v372 = vpop.permute.xlu0 %371
    %373 = vset.pattern.permute.xlu0 6
    %374 = vperm.xlu0 %373, %v51
    %v375 = vpop.permute.xlu0 %374
    %376 = vset.pattern.permute.xlu0 6
    %377 = vperm.xlu0 %376, %v52
    %v378 = vpop.permute.xlu0 %377
    %379 = vset.pattern.permute.xlu0 6
    %380 = vperm.xlu0 %379, %v53
    %v381 = vpop.permute.xlu0 %380
    %382 = vset.pattern.permute.xlu0 6
    %383 = vperm.xlu0 %382, %v54
    %v384 = vpop.permute.xlu0 %383
    %385 = vset.pattern.permute.xlu0 6
    %386 = vperm.xlu0 %385, %v55
    %v387 = vpop.permute.xlu0 %386
    %388 = vset.pattern.permute.xlu0 6
    %389 = vperm.xlu0 %388, %v56
    %v390 = vpop.permute.xlu0 %389
    %391 = vset.pattern.permute.xlu0 6
    %392 = vperm.xlu0 %391, %v57
    %v393 = vpop.permute.xlu0 %392
    %vm394 = vcmp.eq.s32.totalorder %v372, %v49
    %vm395 = vcmp.eq.s32.totalorder %v375, %v49
    %vm396 = vcmp.eq.s32.totalorder %v378, %v49
    %vm397 = vcmp.eq.s32.totalorder %v381, %v49
    %vm398 = vcmp.eq.s32.totalorder %v384, %v49
    %vm399 = vcmp.eq.s32.totalorder %v387, %v49
    %vm400 = vcmp.eq.s32.totalorder %v390, %v49
    %vm401 = vcmp.eq.s32.totalorder %v393, %v49
    %v402 = vlaneseq
    %v403 = vshrl.u32 %v402, 7
    %v404 = vsub.s32 6, %v403
    %v405 = vrot.slane %v40, %v404
    %v406 = vsel %vm394, %v405, 0.0
    %v407 = vsel %vm395, %v405, 0.0
    %v408 = vsel %vm396, %v405, 0.0
    %v409 = vsel %vm397, %v405, 0.0
    %v410 = vsel %vm398, %v405, 0.0
    %v411 = vsel %vm399, %v405, 0.0
    %v412 = vsel %vm400, %v405, 0.0
    %v413 = vsel %vm401, %v405, 0.0
    %v414 = vadd.f32 %v362, %v406
    %v415 = vadd.f32 %v363, %v407
    %v416 = vadd.f32 %v364, %v408
    %v417 = vadd.f32 %v365, %v409
    %v418 = vadd.f32 %v366, %v410
    %v419 = vadd.f32 %v367, %v411
    %v420 = vadd.f32 %v368, %v412
    %v421 = vadd.f32 %v369, %v413
    %422 = vset.pattern.permute.xlu0 7
    %423 = vperm.xlu0 %422, %v50
    %v424 = vpop.permute.xlu0 %423
    %425 = vset.pattern.permute.xlu0 7
    %426 = vperm.xlu0 %425, %v51
    %v427 = vpop.permute.xlu0 %426
    %428 = vset.pattern.permute.xlu0 7
    %429 = vperm.xlu0 %428, %v52
    %v430 = vpop.permute.xlu0 %429
    %431 = vset.pattern.permute.xlu0 7
    %432 = vperm.xlu0 %431, %v53
    %v433 = vpop.permute.xlu0 %432
    %434 = vset.pattern.permute.xlu0 7
    %435 = vperm.xlu0 %434, %v54
    %v436 = vpop.permute.xlu0 %435
    %437 = vset.pattern.permute.xlu0 7
    %438 = vperm.xlu0 %437, %v55
    %v439 = vpop.permute.xlu0 %438
    %440 = vset.pattern.permute.xlu0 7
    %441 = vperm.xlu0 %440, %v56
    %v442 = vpop.permute.xlu0 %441
    %443 = vset.pattern.permute.xlu0 7
    %444 = vperm.xlu0 %443, %v57
    %v445 = vpop.permute.xlu0 %444
    %vm446 = vcmp.eq.s32.totalorder %v424, %v49
    %vm447 = vcmp.eq.s32.totalorder %v427, %v49
    %vm448 = vcmp.eq.s32.totalorder %v430, %v49
    %vm449 = vcmp.eq.s32.totalorder %v433, %v49
    %vm450 = vcmp.eq.s32.totalorder %v436, %v49
    %vm451 = vcmp.eq.s32.totalorder %v439, %v49
    %vm452 = vcmp.eq.s32.totalorder %v442, %v49
    %vm453 = vcmp.eq.s32.totalorder %v445, %v49
    %v454 = vlaneseq
    %v455 = vshrl.u32 %v454, 7
    %v456 = vsub.s32 7, %v455
    %v457 = vrot.slane %v40, %v456
    %v458 = vsel %vm446, %v457, 0.0
    %v459 = vsel %vm447, %v457, 0.0
    %v460 = vsel %vm448, %v457, 0.0
    %v461 = vsel %vm449, %v457, 0.0
    %v462 = vsel %vm450, %v457, 0.0
    %v463 = vsel %vm451, %v457, 0.0
    %v464 = vsel %vm452, %v457, 0.0
    %v465 = vsel %vm453, %v457, 0.0
    %v466 = vadd.f32 %v414, %v458
    %v467 = vadd.f32 %v415, %v459
    %v468 = vadd.f32 %v416, %v460
    %v469 = vadd.f32 %v417, %v461
    %v470 = vadd.f32 %v418, %v462
    %v471 = vadd.f32 %v419, %v463
    %v472 = vadd.f32 %v420, %v464
    %v473 = vadd.f32 %v421, %v465
    %474 = vset.pattern.permute.xlu0 8
    %475 = vperm.xlu0 %474, %v50
    %v476 = vpop.permute.xlu0 %475
    %477 = vset.pattern.permute.xlu0 8
    %478 = vperm.xlu0 %477, %v51
    %v479 = vpop.permute.xlu0 %478
    %480 = vset.pattern.permute.xlu0 8
    %481 = vperm.xlu0 %480, %v52
    %v482 = vpop.permute.xlu0 %481
    %483 = vset.pattern.permute.xlu0 8
    %484 = vperm.xlu0 %483, %v53
    %v485 = vpop.permute.xlu0 %484
    %486 = vset.pattern.permute.xlu0 8
    %487 = vperm.xlu0 %486, %v54
    %v488 = vpop.permute.xlu0 %487
    %489 = vset.pattern.permute.xlu0 8
    %490 = vperm.xlu0 %489, %v55
    %v491 = vpop.permute.xlu0 %490
    %492 = vset.pattern.permute.xlu0 8
    %493 = vperm.xlu0 %492, %v56
    %v494 = vpop.permute.xlu0 %493
    %495 = vset.pattern.permute.xlu0 8
    %496 = vperm.xlu0 %495, %v57
    %v497 = vpop.permute.xlu0 %496
    %vm498 = vcmp.eq.s32.totalorder %v476, %v49
    %vm499 = vcmp.eq.s32.totalorder %v479, %v49
    %vm500 = vcmp.eq.s32.totalorder %v482, %v49
    %vm501 = vcmp.eq.s32.totalorder %v485, %v49
    %vm502 = vcmp.eq.s32.totalorder %v488, %v49
    %vm503 = vcmp.eq.s32.totalorder %v491, %v49
    %vm504 = vcmp.eq.s32.totalorder %v494, %v49
    %vm505 = vcmp.eq.s32.totalorder %v497, %v49
    %v506 = vlaneseq
    %v507 = vshrl.u32 %v506, 7
    %v508 = vsub.s32 0, %v507
    %v509 = vrot.slane %v41, %v508
    %v510 = vsel %vm498, %v509, 0.0
    %v511 = vsel %vm499, %v509, 0.0
    %v512 = vsel %vm500, %v509, 0.0
    %v513 = vsel %vm501, %v509, 0.0
    %v514 = vsel %vm502, %v509, 0.0
    %v515 = vsel %vm503, %v509, 0.0
    %v516 = vsel %vm504, %v509, 0.0
    %v517 = vsel %vm505, %v509, 0.0
    %v518 = vadd.f32 %v466, %v510
    %v519 = vadd.f32 %v467, %v511
    %v520 = vadd.f32 %v468, %v512
    %v521 = vadd.f32 %v469, %v513
    %v522 = vadd.f32 %v470, %v514
    %v523 = vadd.f32 %v471, %v515
    %v524 = vadd.f32 %v472, %v516
    %v525 = vadd.f32 %v473, %v517
    %526 = vset.pattern.permute.xlu0 9
    %527 = vperm.xlu0 %526, %v50
    %v528 = vpop.permute.xlu0 %527
    %529 = vset.pattern.permute.xlu0 9
    %530 = vperm.xlu0 %529, %v51
    %v531 = vpop.permute.xlu0 %530
    %532 = vset.pattern.permute.xlu0 9
    %533 = vperm.xlu0 %532, %v52
    %v534 = vpop.permute.xlu0 %533
    %535 = vset.pattern.permute.xlu0 9
    %536 = vperm.xlu0 %535, %v53
    %v537 = vpop.permute.xlu0 %536
    %538 = vset.pattern.permute.xlu0 9
    %539 = vperm.xlu0 %538, %v54
    %v540 = vpop.permute.xlu0 %539
    %541 = vset.pattern.permute.xlu0 9
    %542 = vperm.xlu0 %541, %v55
    %v543 = vpop.permute.xlu0 %542
    %544 = vset.pattern.permute.xlu0 9
    %545 = vperm.xlu0 %544, %v56
    %v546 = vpop.permute.xlu0 %545
    %547 = vset.pattern.permute.xlu0 9
    %548 = vperm.xlu0 %547, %v57
    %v549 = vpop.permute.xlu0 %548
    %vm550 = vcmp.eq.s32.totalorder %v528, %v49
    %vm551 = vcmp.eq.s32.totalorder %v531, %v49
    %vm552 = vcmp.eq.s32.totalorder %v534, %v49
    %vm553 = vcmp.eq.s32.totalorder %v537, %v49
    %vm554 = vcmp.eq.s32.totalorder %v540, %v49
    %vm555 = vcmp.eq.s32.totalorder %v543, %v49
    %vm556 = vcmp.eq.s32.totalorder %v546, %v49
    %vm557 = vcmp.eq.s32.totalorder %v549, %v49
    %v558 = vlaneseq
    %v559 = vshrl.u32 %v558, 7
    %v560 = vsub.s32 1, %v559
    %v561 = vrot.slane %v41, %v560
    %v562 = vsel %vm550, %v561, 0.0
    %v563 = vsel %vm551, %v561, 0.0
    %v564 = vsel %vm552, %v561, 0.0
    %v565 = vsel %vm553, %v561, 0.0
    %v566 = vsel %vm554, %v561, 0.0
    %v567 = vsel %vm555, %v561, 0.0
    %v568 = vsel %vm556, %v561, 0.0
    %v569 = vsel %vm557, %v561, 0.0
    %v570 = vadd.f32 %v518, %v562
    %v571 = vadd.f32 %v519, %v563
    %v572 = vadd.f32 %v520, %v564
    %v573 = vadd.f32 %v521, %v565
    %v574 = vadd.f32 %v522, %v566
    %v575 = vadd.f32 %v523, %v567
    %v576 = vadd.f32 %v524, %v568
    %v577 = vadd.f32 %v525, %v569
    %578 = vset.pattern.permute.xlu0 10
    %579 = vperm.xlu0 %578, %v50
    %v580 = vpop.permute.xlu0 %579
    %581 = vset.pattern.permute.xlu0 10
    %582 = vperm.xlu0 %581, %v51
    %v583 = vpop.permute.xlu0 %582
    %584 = vset.pattern.permute.xlu0 10
    %585 = vperm.xlu0 %584, %v52
    %v586 = vpop.permute.xlu0 %585
    %587 = vset.pattern.permute.xlu0 10
    %588 = vperm.xlu0 %587, %v53
    %v589 = vpop.permute.xlu0 %588
    %590 = vset.pattern.permute.xlu0 10
    %591 = vperm.xlu0 %590, %v54
    %v592 = vpop.permute.xlu0 %591
    %593 = vset.pattern.permute.xlu0 10
    %594 = vperm.xlu0 %593, %v55
    %v595 = vpop.permute.xlu0 %594
    %596 = vset.pattern.permute.xlu0 10
    %597 = vperm.xlu0 %596, %v56
    %v598 = vpop.permute.xlu0 %597
    %599 = vset.pattern.permute.xlu0 10
    %600 = vperm.xlu0 %599, %v57
    %v601 = vpop.permute.xlu0 %600
    %vm602 = vcmp.eq.s32.totalorder %v580, %v49
    %vm603 = vcmp.eq.s32.totalorder %v583, %v49
    %vm604 = vcmp.eq.s32.totalorder %v586, %v49
    %vm605 = vcmp.eq.s32.totalorder %v589, %v49
    %vm606 = vcmp.eq.s32.totalorder %v592, %v49
    %vm607 = vcmp.eq.s32.totalorder %v595, %v49
    %vm608 = vcmp.eq.s32.totalorder %v598, %v49
    %vm609 = vcmp.eq.s32.totalorder %v601, %v49
    %v610 = vlaneseq
    %v611 = vshrl.u32 %v610, 7
    %v612 = vsub.s32 2, %v611
    %v613 = vrot.slane %v41, %v612
    %v614 = vsel %vm602, %v613, 0.0
    %v615 = vsel %vm603, %v613, 0.0
    %v616 = vsel %vm604, %v613, 0.0
    %v617 = vsel %vm605, %v613, 0.0
    %v618 = vsel %vm606, %v613, 0.0
    %v619 = vsel %vm607, %v613, 0.0
    %v620 = vsel %vm608, %v613, 0.0
    %v621 = vsel %vm609, %v613, 0.0
    %v622 = vadd.f32 %v570, %v614
    %v623 = vadd.f32 %v571, %v615
    %v624 = vadd.f32 %v572, %v616
    %v625 = vadd.f32 %v573, %v617
    %v626 = vadd.f32 %v574, %v618
    %v627 = vadd.f32 %v575, %v619
    %v628 = vadd.f32 %v576, %v620
    %v629 = vadd.f32 %v577, %v621
    %630 = vset.pattern.permute.xlu0 11
    %631 = vperm.xlu0 %630, %v50
    %v632 = vpop.permute.xlu0 %631
    %633 = vset.pattern.permute.xlu0 11
    %634 = vperm.xlu0 %633, %v51
    %v635 = vpop.permute.xlu0 %634
    %636 = vset.pattern.permute.xlu0 11
    %637 = vperm.xlu0 %636, %v52
    %v638 = vpop.permute.xlu0 %637
    %639 = vset.pattern.permute.xlu0 11
    %640 = vperm.xlu0 %639, %v53
    %v641 = vpop.permute.xlu0 %640
    %642 = vset.pattern.permute.xlu0 11
    %643 = vperm.xlu0 %642, %v54
    %v644 = vpop.permute.xlu0 %643
    %645 = vset.pattern.permute.xlu0 11
    %646 = vperm.xlu0 %645, %v55
    %v647 = vpop.permute.xlu0 %646
    %648 = vset.pattern.permute.xlu0 11
    %649 = vperm.xlu0 %648, %v56
    %v650 = vpop.permute.xlu0 %649
    %651 = vset.pattern.permute.xlu0 11
    %652 = vperm.xlu0 %651, %v57
    %v653 = vpop.permute.xlu0 %652
    %vm654 = vcmp.eq.s32.totalorder %v632, %v49
    %vm655 = vcmp.eq.s32.totalorder %v635, %v49
    %vm656 = vcmp.eq.s32.totalorder %v638, %v49
    %vm657 = vcmp.eq.s32.totalorder %v641, %v49
    %vm658 = vcmp.eq.s32.totalorder %v644, %v49
    %vm659 = vcmp.eq.s32.totalorder %v647, %v49
    %vm660 = vcmp.eq.s32.totalorder %v650, %v49
    %vm661 = vcmp.eq.s32.totalorder %v653, %v49
    %v662 = vlaneseq
    %v663 = vshrl.u32 %v662, 7
    %v664 = vsub.s32 3, %v663
    %v665 = vrot.slane %v41, %v664
    %v666 = vsel %vm654, %v665, 0.0
    %v667 = vsel %vm655, %v665, 0.0
    %v668 = vsel %vm656, %v665, 0.0
    %v669 = vsel %vm657, %v665, 0.0
    %v670 = vsel %vm658, %v665, 0.0
    %v671 = vsel %vm659, %v665, 0.0
    %v672 = vsel %vm660, %v665, 0.0
    %v673 = vsel %vm661, %v665, 0.0
    %v674 = vadd.f32 %v622, %v666
    %v675 = vadd.f32 %v623, %v667
    %v676 = vadd.f32 %v624, %v668
    %v677 = vadd.f32 %v625, %v669
    %v678 = vadd.f32 %v626, %v670
    %v679 = vadd.f32 %v627, %v671
    %v680 = vadd.f32 %v628, %v672
    %v681 = vadd.f32 %v629, %v673
    %682 = vset.pattern.permute.xlu0 12
    %683 = vperm.xlu0 %682, %v50
    %v684 = vpop.permute.xlu0 %683
    %685 = vset.pattern.permute.xlu0 12
    %686 = vperm.xlu0 %685, %v51
    %v687 = vpop.permute.xlu0 %686
    %688 = vset.pattern.permute.xlu0 12
    %689 = vperm.xlu0 %688, %v52
    %v690 = vpop.permute.xlu0 %689
    %691 = vset.pattern.permute.xlu0 12
    %692 = vperm.xlu0 %691, %v53
    %v693 = vpop.permute.xlu0 %692
    %694 = vset.pattern.permute.xlu0 12
    %695 = vperm.xlu0 %694, %v54
    %v696 = vpop.permute.xlu0 %695
    %697 = vset.pattern.permute.xlu0 12
    %698 = vperm.xlu0 %697, %v55
    %v699 = vpop.permute.xlu0 %698
    %700 = vset.pattern.permute.xlu0 12
    %701 = vperm.xlu0 %700, %v56
    %v702 = vpop.permute.xlu0 %701
    %703 = vset.pattern.permute.xlu0 12
    %704 = vperm.xlu0 %703, %v57
    %v705 = vpop.permute.xlu0 %704
    %vm706 = vcmp.eq.s32.totalorder %v684, %v49
    %vm707 = vcmp.eq.s32.totalorder %v687, %v49
    %vm708 = vcmp.eq.s32.totalorder %v690, %v49
    %vm709 = vcmp.eq.s32.totalorder %v693, %v49
    %vm710 = vcmp.eq.s32.totalorder %v696, %v49
    %vm711 = vcmp.eq.s32.totalorder %v699, %v49
    %vm712 = vcmp.eq.s32.totalorder %v702, %v49
    %vm713 = vcmp.eq.s32.totalorder %v705, %v49
    %v714 = vlaneseq
    %v715 = vshrl.u32 %v714, 7
    %v716 = vsub.s32 4, %v715
    %v717 = vrot.slane %v41, %v716
    %v718 = vsel %vm706, %v717, 0.0
    %v719 = vsel %vm707, %v717, 0.0
    %v720 = vsel %vm708, %v717, 0.0
    %v721 = vsel %vm709, %v717, 0.0
    %v722 = vsel %vm710, %v717, 0.0
    %v723 = vsel %vm711, %v717, 0.0
    %v724 = vsel %vm712, %v717, 0.0
    %v725 = vsel %vm713, %v717, 0.0
    %v726 = vadd.f32 %v674, %v718
    %v727 = vadd.f32 %v675, %v719
    %v728 = vadd.f32 %v676, %v720
    %v729 = vadd.f32 %v677, %v721
    %v730 = vadd.f32 %v678, %v722
    %v731 = vadd.f32 %v679, %v723
    %v732 = vadd.f32 %v680, %v724
    %v733 = vadd.f32 %v681, %v725
    %734 = vset.pattern.permute.xlu0 13
    %735 = vperm.xlu0 %734, %v50
    %v736 = vpop.permute.xlu0 %735
    %737 = vset.pattern.permute.xlu0 13
    %738 = vperm.xlu0 %737, %v51
    %v739 = vpop.permute.xlu0 %738
    %740 = vset.pattern.permute.xlu0 13
    %741 = vperm.xlu0 %740, %v52
    %v742 = vpop.permute.xlu0 %741
    %743 = vset.pattern.permute.xlu0 13
    %744 = vperm.xlu0 %743, %v53
    %v745 = vpop.permute.xlu0 %744
    %746 = vset.pattern.permute.xlu0 13
    %747 = vperm.xlu0 %746, %v54
    %v748 = vpop.permute.xlu0 %747
    %749 = vset.pattern.permute.xlu0 13
    %750 = vperm.xlu0 %749, %v55
    %v751 = vpop.permute.xlu0 %750
    %752 = vset.pattern.permute.xlu0 13
    %753 = vperm.xlu0 %752, %v56
    %v754 = vpop.permute.xlu0 %753
    %755 = vset.pattern.permute.xlu0 13
    %756 = vperm.xlu0 %755, %v57
    %v757 = vpop.permute.xlu0 %756
    %vm758 = vcmp.eq.s32.totalorder %v736, %v49
    %vm759 = vcmp.eq.s32.totalorder %v739, %v49
    %vm760 = vcmp.eq.s32.totalorder %v742, %v49
    %vm761 = vcmp.eq.s32.totalorder %v745, %v49
    %vm762 = vcmp.eq.s32.totalorder %v748, %v49
    %vm763 = vcmp.eq.s32.totalorder %v751, %v49
    %vm764 = vcmp.eq.s32.totalorder %v754, %v49
    %vm765 = vcmp.eq.s32.totalorder %v757, %v49
    %v766 = vlaneseq
    %v767 = vshrl.u32 %v766, 7
    %v768 = vsub.s32 5, %v767
    %v769 = vrot.slane %v41, %v768
    %v770 = vsel %vm758, %v769, 0.0
    %v771 = vsel %vm759, %v769, 0.0
    %v772 = vsel %vm760, %v769, 0.0
    %v773 = vsel %vm761, %v769, 0.0
    %v774 = vsel %vm762, %v769, 0.0
    %v775 = vsel %vm763, %v769, 0.0
    %v776 = vsel %vm764, %v769, 0.0
    %v777 = vsel %vm765, %v769, 0.0
    %v778 = vadd.f32 %v726, %v770
    %v779 = vadd.f32 %v727, %v771
    %v780 = vadd.f32 %v728, %v772
    %v781 = vadd.f32 %v729, %v773
    %v782 = vadd.f32 %v730, %v774
    %v783 = vadd.f32 %v731, %v775
    %v784 = vadd.f32 %v732, %v776
    %v785 = vadd.f32 %v733, %v777
    %786 = vset.pattern.permute.xlu0 14
    %787 = vperm.xlu0 %786, %v50
    %v788 = vpop.permute.xlu0 %787
    %789 = vset.pattern.permute.xlu0 14
    %790 = vperm.xlu0 %789, %v51
    %v791 = vpop.permute.xlu0 %790
    %792 = vset.pattern.permute.xlu0 14
    %793 = vperm.xlu0 %792, %v52
    %v794 = vpop.permute.xlu0 %793
    %795 = vset.pattern.permute.xlu0 14
    %796 = vperm.xlu0 %795, %v53
    %v797 = vpop.permute.xlu0 %796
    %798 = vset.pattern.permute.xlu0 14
    %799 = vperm.xlu0 %798, %v54
    %v800 = vpop.permute.xlu0 %799
    %801 = vset.pattern.permute.xlu0 14
    %802 = vperm.xlu0 %801, %v55
    %v803 = vpop.permute.xlu0 %802
    %804 = vset.pattern.permute.xlu0 14
    %805 = vperm.xlu0 %804, %v56
    %v806 = vpop.permute.xlu0 %805
    %807 = vset.pattern.permute.xlu0 14
    %808 = vperm.xlu0 %807, %v57
    %v809 = vpop.permute.xlu0 %808
    %vm810 = vcmp.eq.s32.totalorder %v788, %v49
    %vm811 = vcmp.eq.s32.totalorder %v791, %v49
    %vm812 = vcmp.eq.s32.totalorder %v794, %v49
    %vm813 = vcmp.eq.s32.totalorder %v797, %v49
    %vm814 = vcmp.eq.s32.totalorder %v800, %v49
    %vm815 = vcmp.eq.s32.totalorder %v803, %v49
    %vm816 = vcmp.eq.s32.totalorder %v806, %v49
    %vm817 = vcmp.eq.s32.totalorder %v809, %v49
    %v818 = vlaneseq
    %v819 = vshrl.u32 %v818, 7
    %v820 = vsub.s32 6, %v819
    %v821 = vrot.slane %v41, %v820
    %v822 = vsel %vm810, %v821, 0.0
    %v823 = vsel %vm811, %v821, 0.0
    %v824 = vsel %vm812, %v821, 0.0
    %v825 = vsel %vm813, %v821, 0.0
    %v826 = vsel %vm814, %v821, 0.0
    %v827 = vsel %vm815, %v821, 0.0
    %v828 = vsel %vm816, %v821, 0.0
    %v829 = vsel %vm817, %v821, 0.0
    %v830 = vadd.f32 %v778, %v822
    %v831 = vadd.f32 %v779, %v823
    %v832 = vadd.f32 %v780, %v824
    %v833 = vadd.f32 %v781, %v825
    %v834 = vadd.f32 %v782, %v826
    %v835 = vadd.f32 %v783, %v827
    %v836 = vadd.f32 %v784, %v828
    %v837 = vadd.f32 %v785, %v829
    %838 = vset.pattern.permute.xlu0 15
    %839 = vperm.xlu0 %838, %v50
    %v840 = vpop.permute.xlu0 %839
    %841 = vset.pattern.permute.xlu0 15
    %842 = vperm.xlu0 %841, %v51
    %v843 = vpop.permute.xlu0 %842
    %844 = vset.pattern.permute.xlu0 15
    %845 = vperm.xlu0 %844, %v52
    %v846 = vpop.permute.xlu0 %845
    %847 = vset.pattern.permute.xlu0 15
    %848 = vperm.xlu0 %847, %v53
    %v849 = vpop.permute.xlu0 %848
    %850 = vset.pattern.permute.xlu0 15
    %851 = vperm.xlu0 %850, %v54
    %v852 = vpop.permute.xlu0 %851
    %853 = vset.pattern.permute.xlu0 15
    %854 = vperm.xlu0 %853, %v55
    %v855 = vpop.permute.xlu0 %854
    %856 = vset.pattern.permute.xlu0 15
    %857 = vperm.xlu0 %856, %v56
    %v858 = vpop.permute.xlu0 %857
    %859 = vset.pattern.permute.xlu0 15
    %860 = vperm.xlu0 %859, %v57
    %v861 = vpop.permute.xlu0 %860
    %vm862 = vcmp.eq.s32.totalorder %v840, %v49
    %vm863 = vcmp.eq.s32.totalorder %v843, %v49
    %vm864 = vcmp.eq.s32.totalorder %v846, %v49
    %vm865 = vcmp.eq.s32.totalorder %v849, %v49
    %vm866 = vcmp.eq.s32.totalorder %v852, %v49
    %vm867 = vcmp.eq.s32.totalorder %v855, %v49
    %vm868 = vcmp.eq.s32.totalorder %v858, %v49
    %vm869 = vcmp.eq.s32.totalorder %v861, %v49
    %v870 = vlaneseq
    %v871 = vshrl.u32 %v870, 7
    %v872 = vsub.s32 7, %v871
    %v873 = vrot.slane %v41, %v872
    %v874 = vsel %vm862, %v873, 0.0
    %v875 = vsel %vm863, %v873, 0.0
    %v876 = vsel %vm864, %v873, 0.0
    %v877 = vsel %vm865, %v873, 0.0
    %v878 = vsel %vm866, %v873, 0.0
    %v879 = vsel %vm867, %v873, 0.0
    %v880 = vsel %vm868, %v873, 0.0
    %v881 = vsel %vm869, %v873, 0.0
    %v882 = vadd.f32 %v830, %v874
    %v883 = vadd.f32 %v831, %v875
    %v884 = vadd.f32 %v832, %v876
    %v885 = vadd.f32 %v833, %v877
    %v886 = vadd.f32 %v834, %v878
    %v887 = vadd.f32 %v835, %v879
    %v888 = vadd.f32 %v836, %v880
    %v889 = vadd.f32 %v837, %v881
    %890 = vset.pattern.permute.xlu0 16
    %891 = vperm.xlu0 %890, %v50
    %v892 = vpop.permute.xlu0 %891
    %893 = vset.pattern.permute.xlu0 16
    %894 = vperm.xlu0 %893, %v51
    %v895 = vpop.permute.xlu0 %894
    %896 = vset.pattern.permute.xlu0 16
    %897 = vperm.xlu0 %896, %v52
    %v898 = vpop.permute.xlu0 %897
    %899 = vset.pattern.permute.xlu0 16
    %900 = vperm.xlu0 %899, %v53
    %v901 = vpop.permute.xlu0 %900
    %902 = vset.pattern.permute.xlu0 16
    %903 = vperm.xlu0 %902, %v54
    %v904 = vpop.permute.xlu0 %903
    %905 = vset.pattern.permute.xlu0 16
    %906 = vperm.xlu0 %905, %v55
    %v907 = vpop.permute.xlu0 %906
    %908 = vset.pattern.permute.xlu0 16
    %909 = vperm.xlu0 %908, %v56
    %v910 = vpop.permute.xlu0 %909
    %911 = vset.pattern.permute.xlu0 16
    %912 = vperm.xlu0 %911, %v57
    %v913 = vpop.permute.xlu0 %912
    %vm914 = vcmp.eq.s32.totalorder %v892, %v49
    %vm915 = vcmp.eq.s32.totalorder %v895, %v49
    %vm916 = vcmp.eq.s32.totalorder %v898, %v49
    %vm917 = vcmp.eq.s32.totalorder %v901, %v49
    %vm918 = vcmp.eq.s32.totalorder %v904, %v49
    %vm919 = vcmp.eq.s32.totalorder %v907, %v49
    %vm920 = vcmp.eq.s32.totalorder %v910, %v49
    %vm921 = vcmp.eq.s32.totalorder %v913, %v49
    %v922 = vlaneseq
    %v923 = vshrl.u32 %v922, 7
    %v924 = vsub.s32 0, %v923
    %v925 = vrot.slane %v42, %v924
    %v926 = vsel %vm914, %v925, 0.0
    %v927 = vsel %vm915, %v925, 0.0
    %v928 = vsel %vm916, %v925, 0.0
    %v929 = vsel %vm917, %v925, 0.0
    %v930 = vsel %vm918, %v925, 0.0
    %v931 = vsel %vm919, %v925, 0.0
    %v932 = vsel %vm920, %v925, 0.0
    %v933 = vsel %vm921, %v925, 0.0
    %v934 = vadd.f32 %v882, %v926
    %v935 = vadd.f32 %v883, %v927
    %v936 = vadd.f32 %v884, %v928
    %v937 = vadd.f32 %v885, %v929
    %v938 = vadd.f32 %v886, %v930
    %v939 = vadd.f32 %v887, %v931
    %v940 = vadd.f32 %v888, %v932
    %v941 = vadd.f32 %v889, %v933
    %942 = vset.pattern.permute.xlu0 17
    %943 = vperm.xlu0 %942, %v50
    %v944 = vpop.permute.xlu0 %943
    %945 = vset.pattern.permute.xlu0 17
    %946 = vperm.xlu0 %945, %v51
    %v947 = vpop.permute.xlu0 %946
    %948 = vset.pattern.permute.xlu0 17
    %949 = vperm.xlu0 %948, %v52
    %v950 = vpop.permute.xlu0 %949
    %951 = vset.pattern.permute.xlu0 17
    %952 = vperm.xlu0 %951, %v53
    %v953 = vpop.permute.xlu0 %952
    %954 = vset.pattern.permute.xlu0 17
    %955 = vperm.xlu0 %954, %v54
    %v956 = vpop.permute.xlu0 %955
    %957 = vset.pattern.permute.xlu0 17
    %958 = vperm.xlu0 %957, %v55
    %v959 = vpop.permute.xlu0 %958
    %960 = vset.pattern.permute.xlu0 17
    %961 = vperm.xlu0 %960, %v56
    %v962 = vpop.permute.xlu0 %961
    %963 = vset.pattern.permute.xlu0 17
    %964 = vperm.xlu0 %963, %v57
    %v965 = vpop.permute.xlu0 %964
    %vm966 = vcmp.eq.s32.totalorder %v944, %v49
    %vm967 = vcmp.eq.s32.totalorder %v947, %v49
    %vm968 = vcmp.eq.s32.totalorder %v950, %v49
    %vm969 = vcmp.eq.s32.totalorder %v953, %v49
    %vm970 = vcmp.eq.s32.totalorder %v956, %v49
    %vm971 = vcmp.eq.s32.totalorder %v959, %v49
    %vm972 = vcmp.eq.s32.totalorder %v962, %v49
    %vm973 = vcmp.eq.s32.totalorder %v965, %v49
    %v974 = vlaneseq
    %v975 = vshrl.u32 %v974, 7
    %v976 = vsub.s32 1, %v975
    %v977 = vrot.slane %v42, %v976
    %v978 = vsel %vm966, %v977, 0.0
    %v979 = vsel %vm967, %v977, 0.0
    %v980 = vsel %vm968, %v977, 0.0
    %v981 = vsel %vm969, %v977, 0.0
    %v982 = vsel %vm970, %v977, 0.0
    %v983 = vsel %vm971, %v977, 0.0
    %v984 = vsel %vm972, %v977, 0.0
    %v985 = vsel %vm973, %v977, 0.0
    %v986 = vadd.f32 %v934, %v978
    %v987 = vadd.f32 %v935, %v979
    %v988 = vadd.f32 %v936, %v980
    %v989 = vadd.f32 %v937, %v981
    %v990 = vadd.f32 %v938, %v982
    %v991 = vadd.f32 %v939, %v983
    %v992 = vadd.f32 %v940, %v984
    %v993 = vadd.f32 %v941, %v985
    %994 = vset.pattern.permute.xlu0 18
    %995 = vperm.xlu0 %994, %v50
    %v996 = vpop.permute.xlu0 %995
    %997 = vset.pattern.permute.xlu0 18
    %998 = vperm.xlu0 %997, %v51
    %v999 = vpop.permute.xlu0 %998
    %1000 = vset.pattern.permute.xlu0 18
    %1001 = vperm.xlu0 %1000, %v52
    %v1002 = vpop.permute.xlu0 %1001
    %1003 = vset.pattern.permute.xlu0 18
    %1004 = vperm.xlu0 %1003, %v53
    %v1005 = vpop.permute.xlu0 %1004
    %1006 = vset.pattern.permute.xlu0 18
    %1007 = vperm.xlu0 %1006, %v54
    %v1008 = vpop.permute.xlu0 %1007
    %1009 = vset.pattern.permute.xlu0 18
    %1010 = vperm.xlu0 %1009, %v55
    %v1011 = vpop.permute.xlu0 %1010
    %1012 = vset.pattern.permute.xlu0 18
    %1013 = vperm.xlu0 %1012, %v56
    %v1014 = vpop.permute.xlu0 %1013
    %1015 = vset.pattern.permute.xlu0 18
    %1016 = vperm.xlu0 %1015, %v57
    %v1017 = vpop.permute.xlu0 %1016
    %vm1018 = vcmp.eq.s32.totalorder %v996, %v49
    %vm1019 = vcmp.eq.s32.totalorder %v999, %v49
    %vm1020 = vcmp.eq.s32.totalorder %v1002, %v49
    %vm1021 = vcmp.eq.s32.totalorder %v1005, %v49
    %vm1022 = vcmp.eq.s32.totalorder %v1008, %v49
    %vm1023 = vcmp.eq.s32.totalorder %v1011, %v49
    %vm1024 = vcmp.eq.s32.totalorder %v1014, %v49
    %vm1025 = vcmp.eq.s32.totalorder %v1017, %v49
    %v1026 = vlaneseq
    %v1027 = vshrl.u32 %v1026, 7
    %v1028 = vsub.s32 2, %v1027
    %v1029 = vrot.slane %v42, %v1028
    %v1030 = vsel %vm1018, %v1029, 0.0
    %v1031 = vsel %vm1019, %v1029, 0.0
    %v1032 = vsel %vm1020, %v1029, 0.0
    %v1033 = vsel %vm1021, %v1029, 0.0
    %v1034 = vsel %vm1022, %v1029, 0.0
    %v1035 = vsel %vm1023, %v1029, 0.0
    %v1036 = vsel %vm1024, %v1029, 0.0
    %v1037 = vsel %vm1025, %v1029, 0.0
    %v1038 = vadd.f32 %v986, %v1030
    %v1039 = vadd.f32 %v987, %v1031
    %v1040 = vadd.f32 %v988, %v1032
    %v1041 = vadd.f32 %v989, %v1033
    %v1042 = vadd.f32 %v990, %v1034
    %v1043 = vadd.f32 %v991, %v1035
    %v1044 = vadd.f32 %v992, %v1036
    %v1045 = vadd.f32 %v993, %v1037
    %1046 = vset.pattern.permute.xlu0 19
    %1047 = vperm.xlu0 %1046, %v50
    %v1048 = vpop.permute.xlu0 %1047
    %1049 = vset.pattern.permute.xlu0 19
    %1050 = vperm.xlu0 %1049, %v51
    %v1051 = vpop.permute.xlu0 %1050
    %1052 = vset.pattern.permute.xlu0 19
    %1053 = vperm.xlu0 %1052, %v52
    %v1054 = vpop.permute.xlu0 %1053
    %1055 = vset.pattern.permute.xlu0 19
    %1056 = vperm.xlu0 %1055, %v53
    %v1057 = vpop.permute.xlu0 %1056
    %1058 = vset.pattern.permute.xlu0 19
    %1059 = vperm.xlu0 %1058, %v54
    %v1060 = vpop.permute.xlu0 %1059
    %1061 = vset.pattern.permute.xlu0 19
    %1062 = vperm.xlu0 %1061, %v55
    %v1063 = vpop.permute.xlu0 %1062
    %1064 = vset.pattern.permute.xlu0 19
    %1065 = vperm.xlu0 %1064, %v56
    %v1066 = vpop.permute.xlu0 %1065
    %1067 = vset.pattern.permute.xlu0 19
    %1068 = vperm.xlu0 %1067, %v57
    %v1069 = vpop.permute.xlu0 %1068
    %vm1070 = vcmp.eq.s32.totalorder %v1048, %v49
    %vm1071 = vcmp.eq.s32.totalorder %v1051, %v49
    %vm1072 = vcmp.eq.s32.totalorder %v1054, %v49
    %vm1073 = vcmp.eq.s32.totalorder %v1057, %v49
    %vm1074 = vcmp.eq.s32.totalorder %v1060, %v49
    %vm1075 = vcmp.eq.s32.totalorder %v1063, %v49
    %vm1076 = vcmp.eq.s32.totalorder %v1066, %v49
    %vm1077 = vcmp.eq.s32.totalorder %v1069, %v49
    %v1078 = vlaneseq
    %v1079 = vshrl.u32 %v1078, 7
    %v1080 = vsub.s32 3, %v1079
    %v1081 = vrot.slane %v42, %v1080
    %v1082 = vsel %vm1070, %v1081, 0.0
    %v1083 = vsel %vm1071, %v1081, 0.0
    %v1084 = vsel %vm1072, %v1081, 0.0
    %v1085 = vsel %vm1073, %v1081, 0.0
    %v1086 = vsel %vm1074, %v1081, 0.0
    %v1087 = vsel %vm1075, %v1081, 0.0
    %v1088 = vsel %vm1076, %v1081, 0.0
    %v1089 = vsel %vm1077, %v1081, 0.0
    %v1090 = vadd.f32 %v1038, %v1082
    %v1091 = vadd.f32 %v1039, %v1083
    %v1092 = vadd.f32 %v1040, %v1084
    %v1093 = vadd.f32 %v1041, %v1085
    %v1094 = vadd.f32 %v1042, %v1086
    %v1095 = vadd.f32 %v1043, %v1087
    %v1096 = vadd.f32 %v1044, %v1088
    %v1097 = vadd.f32 %v1045, %v1089
    %1098 = vset.pattern.permute.xlu0 20
    %1099 = vperm.xlu0 %1098, %v50
    %v1100 = vpop.permute.xlu0 %1099
    %1101 = vset.pattern.permute.xlu0 20
    %1102 = vperm.xlu0 %1101, %v51
    %v1103 = vpop.permute.xlu0 %1102
    %1104 = vset.pattern.permute.xlu0 20
    %1105 = vperm.xlu0 %1104, %v52
    %v1106 = vpop.permute.xlu0 %1105
    %1107 = vset.pattern.permute.xlu0 20
    %1108 = vperm.xlu0 %1107, %v53
    %v1109 = vpop.permute.xlu0 %1108
    %1110 = vset.pattern.permute.xlu0 20
    %1111 = vperm.xlu0 %1110, %v54
    %v1112 = vpop.permute.xlu0 %1111
    %1113 = vset.pattern.permute.xlu0 20
    %1114 = vperm.xlu0 %1113, %v55
    %v1115 = vpop.permute.xlu0 %1114
    %1116 = vset.pattern.permute.xlu0 20
    %1117 = vperm.xlu0 %1116, %v56
    %v1118 = vpop.permute.xlu0 %1117
    %1119 = vset.pattern.permute.xlu0 20
    %1120 = vperm.xlu0 %1119, %v57
    %v1121 = vpop.permute.xlu0 %1120
    %vm1122 = vcmp.eq.s32.totalorder %v1100, %v49
    %vm1123 = vcmp.eq.s32.totalorder %v1103, %v49
    %vm1124 = vcmp.eq.s32.totalorder %v1106, %v49
    %vm1125 = vcmp.eq.s32.totalorder %v1109, %v49
    %vm1126 = vcmp.eq.s32.totalorder %v1112, %v49
    %vm1127 = vcmp.eq.s32.totalorder %v1115, %v49
    %vm1128 = vcmp.eq.s32.totalorder %v1118, %v49
    %vm1129 = vcmp.eq.s32.totalorder %v1121, %v49
    %v1130 = vlaneseq
    %v1131 = vshrl.u32 %v1130, 7
    %v1132 = vsub.s32 4, %v1131
    %v1133 = vrot.slane %v42, %v1132
    %v1134 = vsel %vm1122, %v1133, 0.0
    %v1135 = vsel %vm1123, %v1133, 0.0
    %v1136 = vsel %vm1124, %v1133, 0.0
    %v1137 = vsel %vm1125, %v1133, 0.0
    %v1138 = vsel %vm1126, %v1133, 0.0
    %v1139 = vsel %vm1127, %v1133, 0.0
    %v1140 = vsel %vm1128, %v1133, 0.0
    %v1141 = vsel %vm1129, %v1133, 0.0
    %v1142 = vadd.f32 %v1090, %v1134
    %v1143 = vadd.f32 %v1091, %v1135
    %v1144 = vadd.f32 %v1092, %v1136
    %v1145 = vadd.f32 %v1093, %v1137
    %v1146 = vadd.f32 %v1094, %v1138
    %v1147 = vadd.f32 %v1095, %v1139
    %v1148 = vadd.f32 %v1096, %v1140
    %v1149 = vadd.f32 %v1097, %v1141
    %1150 = vset.pattern.permute.xlu0 21
    %1151 = vperm.xlu0 %1150, %v50
    %v1152 = vpop.permute.xlu0 %1151
    %1153 = vset.pattern.permute.xlu0 21
    %1154 = vperm.xlu0 %1153, %v51
    %v1155 = vpop.permute.xlu0 %1154
    %1156 = vset.pattern.permute.xlu0 21
    %1157 = vperm.xlu0 %1156, %v52
    %v1158 = vpop.permute.xlu0 %1157
    %1159 = vset.pattern.permute.xlu0 21
    %1160 = vperm.xlu0 %1159, %v53
    %v1161 = vpop.permute.xlu0 %1160
    %1162 = vset.pattern.permute.xlu0 21
    %1163 = vperm.xlu0 %1162, %v54
    %v1164 = vpop.permute.xlu0 %1163
    %1165 = vset.pattern.permute.xlu0 21
    %1166 = vperm.xlu0 %1165, %v55
    %v1167 = vpop.permute.xlu0 %1166
    %1168 = vset.pattern.permute.xlu0 21
    %1169 = vperm.xlu0 %1168, %v56
    %v1170 = vpop.permute.xlu0 %1169
    %1171 = vset.pattern.permute.xlu0 21
    %1172 = vperm.xlu0 %1171, %v57
    %v1173 = vpop.permute.xlu0 %1172
    %vm1174 = vcmp.eq.s32.totalorder %v1152, %v49
    %vm1175 = vcmp.eq.s32.totalorder %v1155, %v49
    %vm1176 = vcmp.eq.s32.totalorder %v1158, %v49
    %vm1177 = vcmp.eq.s32.totalorder %v1161, %v49
    %vm1178 = vcmp.eq.s32.totalorder %v1164, %v49
    %vm1179 = vcmp.eq.s32.totalorder %v1167, %v49
    %vm1180 = vcmp.eq.s32.totalorder %v1170, %v49
    %vm1181 = vcmp.eq.s32.totalorder %v1173, %v49
    %v1182 = vlaneseq
    %v1183 = vshrl.u32 %v1182, 7
    %v1184 = vsub.s32 5, %v1183
    %v1185 = vrot.slane %v42, %v1184
    %v1186 = vsel %vm1174, %v1185, 0.0
    %v1187 = vsel %vm1175, %v1185, 0.0
    %v1188 = vsel %vm1176, %v1185, 0.0
    %v1189 = vsel %vm1177, %v1185, 0.0
    %v1190 = vsel %vm1178, %v1185, 0.0
    %v1191 = vsel %vm1179, %v1185, 0.0
    %v1192 = vsel %vm1180, %v1185, 0.0
    %v1193 = vsel %vm1181, %v1185, 0.0
    %v1194 = vadd.f32 %v1142, %v1186
    %v1195 = vadd.f32 %v1143, %v1187
    %v1196 = vadd.f32 %v1144, %v1188
    %v1197 = vadd.f32 %v1145, %v1189
    %v1198 = vadd.f32 %v1146, %v1190
    %v1199 = vadd.f32 %v1147, %v1191
    %v1200 = vadd.f32 %v1148, %v1192
    %v1201 = vadd.f32 %v1149, %v1193
    %1202 = vset.pattern.permute.xlu0 22
    %1203 = vperm.xlu0 %1202, %v50
    %v1204 = vpop.permute.xlu0 %1203
    %1205 = vset.pattern.permute.xlu0 22
    %1206 = vperm.xlu0 %1205, %v51
    %v1207 = vpop.permute.xlu0 %1206
    %1208 = vset.pattern.permute.xlu0 22
    %1209 = vperm.xlu0 %1208, %v52
    %v1210 = vpop.permute.xlu0 %1209
    %1211 = vset.pattern.permute.xlu0 22
    %1212 = vperm.xlu0 %1211, %v53
    %v1213 = vpop.permute.xlu0 %1212
    %1214 = vset.pattern.permute.xlu0 22
    %1215 = vperm.xlu0 %1214, %v54
    %v1216 = vpop.permute.xlu0 %1215
    %1217 = vset.pattern.permute.xlu0 22
    %1218 = vperm.xlu0 %1217, %v55
    %v1219 = vpop.permute.xlu0 %1218
    %1220 = vset.pattern.permute.xlu0 22
    %1221 = vperm.xlu0 %1220, %v56
    %v1222 = vpop.permute.xlu0 %1221
    %1223 = vset.pattern.permute.xlu0 22
    %1224 = vperm.xlu0 %1223, %v57
    %v1225 = vpop.permute.xlu0 %1224
    %vm1226 = vcmp.eq.s32.totalorder %v1204, %v49
    %vm1227 = vcmp.eq.s32.totalorder %v1207, %v49
    %vm1228 = vcmp.eq.s32.totalorder %v1210, %v49
    %vm1229 = vcmp.eq.s32.totalorder %v1213, %v49
    %vm1230 = vcmp.eq.s32.totalorder %v1216, %v49
    %vm1231 = vcmp.eq.s32.totalorder %v1219, %v49
    %vm1232 = vcmp.eq.s32.totalorder %v1222, %v49
    %vm1233 = vcmp.eq.s32.totalorder %v1225, %v49
    %v1234 = vlaneseq
    %v1235 = vshrl.u32 %v1234, 7
    %v1236 = vsub.s32 6, %v1235
    %v1237 = vrot.slane %v42, %v1236
    %v1238 = vsel %vm1226, %v1237, 0.0
    %v1239 = vsel %vm1227, %v1237, 0.0
    %v1240 = vsel %vm1228, %v1237, 0.0
    %v1241 = vsel %vm1229, %v1237, 0.0
    %v1242 = vsel %vm1230, %v1237, 0.0
    %v1243 = vsel %vm1231, %v1237, 0.0
    %v1244 = vsel %vm1232, %v1237, 0.0
    %v1245 = vsel %vm1233, %v1237, 0.0
    %v1246 = vadd.f32 %v1194, %v1238
    %v1247 = vadd.f32 %v1195, %v1239
    %v1248 = vadd.f32 %v1196, %v1240
    %v1249 = vadd.f32 %v1197, %v1241
    %v1250 = vadd.f32 %v1198, %v1242
    %v1251 = vadd.f32 %v1199, %v1243
    %v1252 = vadd.f32 %v1200, %v1244
    %v1253 = vadd.f32 %v1201, %v1245
    %1254 = vset.pattern.permute.xlu0 23
    %1255 = vperm.xlu0 %1254, %v50
    %v1256 = vpop.permute.xlu0 %1255
    %1257 = vset.pattern.permute.xlu0 23
    %1258 = vperm.xlu0 %1257, %v51
    %v1259 = vpop.permute.xlu0 %1258
    %1260 = vset.pattern.permute.xlu0 23
    %1261 = vperm.xlu0 %1260, %v52
    %v1262 = vpop.permute.xlu0 %1261
    %1263 = vset.pattern.permute.xlu0 23
    %1264 = vperm.xlu0 %1263, %v53
    %v1265 = vpop.permute.xlu0 %1264
    %1266 = vset.pattern.permute.xlu0 23
    %1267 = vperm.xlu0 %1266, %v54
    %v1268 = vpop.permute.xlu0 %1267
    %1269 = vset.pattern.permute.xlu0 23
    %1270 = vperm.xlu0 %1269, %v55
    %v1271 = vpop.permute.xlu0 %1270
    %1272 = vset.pattern.permute.xlu0 23
    %1273 = vperm.xlu0 %1272, %v56
    %v1274 = vpop.permute.xlu0 %1273
    %1275 = vset.pattern.permute.xlu0 23
    %1276 = vperm.xlu0 %1275, %v57
    %v1277 = vpop.permute.xlu0 %1276
    %vm1278 = vcmp.eq.s32.totalorder %v1256, %v49
    %vm1279 = vcmp.eq.s32.totalorder %v1259, %v49
    %vm1280 = vcmp.eq.s32.totalorder %v1262, %v49
    %vm1281 = vcmp.eq.s32.totalorder %v1265, %v49
    %vm1282 = vcmp.eq.s32.totalorder %v1268, %v49
    %vm1283 = vcmp.eq.s32.totalorder %v1271, %v49
    %vm1284 = vcmp.eq.s32.totalorder %v1274, %v49
    %vm1285 = vcmp.eq.s32.totalorder %v1277, %v49
    %v1286 = vlaneseq
    %v1287 = vshrl.u32 %v1286, 7
    %v1288 = vsub.s32 7, %v1287
    %v1289 = vrot.slane %v42, %v1288
    %v1290 = vsel %vm1278, %v1289, 0.0
    %v1291 = vsel %vm1279, %v1289, 0.0
    %v1292 = vsel %vm1280, %v1289, 0.0
    %v1293 = vsel %vm1281, %v1289, 0.0
    %v1294 = vsel %vm1282, %v1289, 0.0
    %v1295 = vsel %vm1283, %v1289, 0.0
    %v1296 = vsel %vm1284, %v1289, 0.0
    %v1297 = vsel %vm1285, %v1289, 0.0
    %v1298 = vadd.f32 %v1246, %v1290
    %v1299 = vadd.f32 %v1247, %v1291
    %v1300 = vadd.f32 %v1248, %v1292
    %v1301 = vadd.f32 %v1249, %v1293
    %v1302 = vadd.f32 %v1250, %v1294
    %v1303 = vadd.f32 %v1251, %v1295
    %v1304 = vadd.f32 %v1252, %v1296
    %v1305 = vadd.f32 %v1253, %v1297
    %1306 = vset.pattern.permute.xlu0 24
    %1307 = vperm.xlu0 %1306, %v50
    %v1308 = vpop.permute.xlu0 %1307
    %1309 = vset.pattern.permute.xlu0 24
    %1310 = vperm.xlu0 %1309, %v51
    %v1311 = vpop.permute.xlu0 %1310
    %1312 = vset.pattern.permute.xlu0 24
    %1313 = vperm.xlu0 %1312, %v52
    %v1314 = vpop.permute.xlu0 %1313
    %1315 = vset.pattern.permute.xlu0 24
    %1316 = vperm.xlu0 %1315, %v53
    %v1317 = vpop.permute.xlu0 %1316
    %1318 = vset.pattern.permute.xlu0 24
    %1319 = vperm.xlu0 %1318, %v54
    %v1320 = vpop.permute.xlu0 %1319
    %1321 = vset.pattern.permute.xlu0 24
    %1322 = vperm.xlu0 %1321, %v55
    %v1323 = vpop.permute.xlu0 %1322
    %1324 = vset.pattern.permute.xlu0 24
    %1325 = vperm.xlu0 %1324, %v56
    %v1326 = vpop.permute.xlu0 %1325
    %1327 = vset.pattern.permute.xlu0 24
    %1328 = vperm.xlu0 %1327, %v57
    %v1329 = vpop.permute.xlu0 %1328
    %vm1330 = vcmp.eq.s32.totalorder %v1308, %v49
    %vm1331 = vcmp.eq.s32.totalorder %v1311, %v49
    %vm1332 = vcmp.eq.s32.totalorder %v1314, %v49
    %vm1333 = vcmp.eq.s32.totalorder %v1317, %v49
    %vm1334 = vcmp.eq.s32.totalorder %v1320, %v49
    %vm1335 = vcmp.eq.s32.totalorder %v1323, %v49
    %vm1336 = vcmp.eq.s32.totalorder %v1326, %v49
    %vm1337 = vcmp.eq.s32.totalorder %v1329, %v49
    %v1338 = vlaneseq
    %v1339 = vshrl.u32 %v1338, 7
    %v1340 = vsub.s32 0, %v1339
    %v1341 = vrot.slane %v43, %v1340
    %v1342 = vsel %vm1330, %v1341, 0.0
    %v1343 = vsel %vm1331, %v1341, 0.0
    %v1344 = vsel %vm1332, %v1341, 0.0
    %v1345 = vsel %vm1333, %v1341, 0.0
    %v1346 = vsel %vm1334, %v1341, 0.0
    %v1347 = vsel %vm1335, %v1341, 0.0
    %v1348 = vsel %vm1336, %v1341, 0.0
    %v1349 = vsel %vm1337, %v1341, 0.0
    %v1350 = vadd.f32 %v1298, %v1342
    %v1351 = vadd.f32 %v1299, %v1343
    %v1352 = vadd.f32 %v1300, %v1344
    %v1353 = vadd.f32 %v1301, %v1345
    %v1354 = vadd.f32 %v1302, %v1346
    %v1355 = vadd.f32 %v1303, %v1347
    %v1356 = vadd.f32 %v1304, %v1348
    %v1357 = vadd.f32 %v1305, %v1349
    %1358 = vset.pattern.permute.xlu0 25
    %1359 = vperm.xlu0 %1358, %v50
    %v1360 = vpop.permute.xlu0 %1359
    %1361 = vset.pattern.permute.xlu0 25
    %1362 = vperm.xlu0 %1361, %v51
    %v1363 = vpop.permute.xlu0 %1362
    %1364 = vset.pattern.permute.xlu0 25
    %1365 = vperm.xlu0 %1364, %v52
    %v1366 = vpop.permute.xlu0 %1365
    %1367 = vset.pattern.permute.xlu0 25
    %1368 = vperm.xlu0 %1367, %v53
    %v1369 = vpop.permute.xlu0 %1368
    %1370 = vset.pattern.permute.xlu0 25
    %1371 = vperm.xlu0 %1370, %v54
    %v1372 = vpop.permute.xlu0 %1371
    %1373 = vset.pattern.permute.xlu0 25
    %1374 = vperm.xlu0 %1373, %v55
    %v1375 = vpop.permute.xlu0 %1374
    %1376 = vset.pattern.permute.xlu0 25
    %1377 = vperm.xlu0 %1376, %v56
    %v1378 = vpop.permute.xlu0 %1377
    %1379 = vset.pattern.permute.xlu0 25
    %1380 = vperm.xlu0 %1379, %v57
    %v1381 = vpop.permute.xlu0 %1380
    %vm1382 = vcmp.eq.s32.totalorder %v1360, %v49
    %vm1383 = vcmp.eq.s32.totalorder %v1363, %v49
    %vm1384 = vcmp.eq.s32.totalorder %v1366, %v49
    %vm1385 = vcmp.eq.s32.totalorder %v1369, %v49
    %vm1386 = vcmp.eq.s32.totalorder %v1372, %v49
    %vm1387 = vcmp.eq.s32.totalorder %v1375, %v49
    %vm1388 = vcmp.eq.s32.totalorder %v1378, %v49
    %vm1389 = vcmp.eq.s32.totalorder %v1381, %v49
    %v1390 = vlaneseq
    %v1391 = vshrl.u32 %v1390, 7
    %v1392 = vsub.s32 1, %v1391
    %v1393 = vrot.slane %v43, %v1392
    %v1394 = vsel %vm1382, %v1393, 0.0
    %v1395 = vsel %vm1383, %v1393, 0.0
    %v1396 = vsel %vm1384, %v1393, 0.0
    %v1397 = vsel %vm1385, %v1393, 0.0
    %v1398 = vsel %vm1386, %v1393, 0.0
    %v1399 = vsel %vm1387, %v1393, 0.0
    %v1400 = vsel %vm1388, %v1393, 0.0
    %v1401 = vsel %vm1389, %v1393, 0.0
    %v1402 = vadd.f32 %v1350, %v1394
    %v1403 = vadd.f32 %v1351, %v1395
    %v1404 = vadd.f32 %v1352, %v1396
    %v1405 = vadd.f32 %v1353, %v1397
    %v1406 = vadd.f32 %v1354, %v1398
    %v1407 = vadd.f32 %v1355, %v1399
    %v1408 = vadd.f32 %v1356, %v1400
    %v1409 = vadd.f32 %v1357, %v1401
    %1410 = vset.pattern.permute.xlu0 26
    %1411 = vperm.xlu0 %1410, %v50
    %v1412 = vpop.permute.xlu0 %1411
    %1413 = vset.pattern.permute.xlu0 26
    %1414 = vperm.xlu0 %1413, %v51
    %v1415 = vpop.permute.xlu0 %1414
    %1416 = vset.pattern.permute.xlu0 26
    %1417 = vperm.xlu0 %1416, %v52
    %v1418 = vpop.permute.xlu0 %1417
    %1419 = vset.pattern.permute.xlu0 26
    %1420 = vperm.xlu0 %1419, %v53
    %v1421 = vpop.permute.xlu0 %1420
    %1422 = vset.pattern.permute.xlu0 26
    %1423 = vperm.xlu0 %1422, %v54
    %v1424 = vpop.permute.xlu0 %1423
    %1425 = vset.pattern.permute.xlu0 26
    %1426 = vperm.xlu0 %1425, %v55
    %v1427 = vpop.permute.xlu0 %1426
    %1428 = vset.pattern.permute.xlu0 26
    %1429 = vperm.xlu0 %1428, %v56
    %v1430 = vpop.permute.xlu0 %1429
    %1431 = vset.pattern.permute.xlu0 26
    %1432 = vperm.xlu0 %1431, %v57
    %v1433 = vpop.permute.xlu0 %1432
    %vm1434 = vcmp.eq.s32.totalorder %v1412, %v49
    %vm1435 = vcmp.eq.s32.totalorder %v1415, %v49
    %vm1436 = vcmp.eq.s32.totalorder %v1418, %v49
    %vm1437 = vcmp.eq.s32.totalorder %v1421, %v49
    %vm1438 = vcmp.eq.s32.totalorder %v1424, %v49
    %vm1439 = vcmp.eq.s32.totalorder %v1427, %v49
    %vm1440 = vcmp.eq.s32.totalorder %v1430, %v49
    %vm1441 = vcmp.eq.s32.totalorder %v1433, %v49
    %v1442 = vlaneseq
    %v1443 = vshrl.u32 %v1442, 7
    %v1444 = vsub.s32 2, %v1443
    %v1445 = vrot.slane %v43, %v1444
    %v1446 = vsel %vm1434, %v1445, 0.0
    %v1447 = vsel %vm1435, %v1445, 0.0
    %v1448 = vsel %vm1436, %v1445, 0.0
    %v1449 = vsel %vm1437, %v1445, 0.0
    %v1450 = vsel %vm1438, %v1445, 0.0
    %v1451 = vsel %vm1439, %v1445, 0.0
    %v1452 = vsel %vm1440, %v1445, 0.0
    %v1453 = vsel %vm1441, %v1445, 0.0
    %v1454 = vadd.f32 %v1402, %v1446
    %v1455 = vadd.f32 %v1403, %v1447
    %v1456 = vadd.f32 %v1404, %v1448
    %v1457 = vadd.f32 %v1405, %v1449
    %v1458 = vadd.f32 %v1406, %v1450
    %v1459 = vadd.f32 %v1407, %v1451
    %v1460 = vadd.f32 %v1408, %v1452
    %v1461 = vadd.f32 %v1409, %v1453
    %1462 = vset.pattern.permute.xlu0 27
    %1463 = vperm.xlu0 %1462, %v50
    %v1464 = vpop.permute.xlu0 %1463
    %1465 = vset.pattern.permute.xlu0 27
    %1466 = vperm.xlu0 %1465, %v51
    %v1467 = vpop.permute.xlu0 %1466
    %1468 = vset.pattern.permute.xlu0 27
    %1469 = vperm.xlu0 %1468, %v52
    %v1470 = vpop.permute.xlu0 %1469
    %1471 = vset.pattern.permute.xlu0 27
    %1472 = vperm.xlu0 %1471, %v53
    %v1473 = vpop.permute.xlu0 %1472
    %1474 = vset.pattern.permute.xlu0 27
    %1475 = vperm.xlu0 %1474, %v54
    %v1476 = vpop.permute.xlu0 %1475
    %1477 = vset.pattern.permute.xlu0 27
    %1478 = vperm.xlu0 %1477, %v55
    %v1479 = vpop.permute.xlu0 %1478
    %1480 = vset.pattern.permute.xlu0 27
    %1481 = vperm.xlu0 %1480, %v56
    %v1482 = vpop.permute.xlu0 %1481
    %1483 = vset.pattern.permute.xlu0 27
    %1484 = vperm.xlu0 %1483, %v57
    %v1485 = vpop.permute.xlu0 %1484
    %vm1486 = vcmp.eq.s32.totalorder %v1464, %v49
    %vm1487 = vcmp.eq.s32.totalorder %v1467, %v49
    %vm1488 = vcmp.eq.s32.totalorder %v1470, %v49
    %vm1489 = vcmp.eq.s32.totalorder %v1473, %v49
    %vm1490 = vcmp.eq.s32.totalorder %v1476, %v49
    %vm1491 = vcmp.eq.s32.totalorder %v1479, %v49
    %vm1492 = vcmp.eq.s32.totalorder %v1482, %v49
    %vm1493 = vcmp.eq.s32.totalorder %v1485, %v49
    %v1494 = vlaneseq
    %v1495 = vshrl.u32 %v1494, 7
    %v1496 = vsub.s32 3, %v1495
    %v1497 = vrot.slane %v43, %v1496
    %v1498 = vsel %vm1486, %v1497, 0.0
    %v1499 = vsel %vm1487, %v1497, 0.0
    %v1500 = vsel %vm1488, %v1497, 0.0
    %v1501 = vsel %vm1489, %v1497, 0.0
    %v1502 = vsel %vm1490, %v1497, 0.0
    %v1503 = vsel %vm1491, %v1497, 0.0
    %v1504 = vsel %vm1492, %v1497, 0.0
    %v1505 = vsel %vm1493, %v1497, 0.0
    %v1506 = vadd.f32 %v1454, %v1498
    %v1507 = vadd.f32 %v1455, %v1499
    %v1508 = vadd.f32 %v1456, %v1500
    %v1509 = vadd.f32 %v1457, %v1501
    %v1510 = vadd.f32 %v1458, %v1502
    %v1511 = vadd.f32 %v1459, %v1503
    %v1512 = vadd.f32 %v1460, %v1504
    %v1513 = vadd.f32 %v1461, %v1505
    %1514 = vset.pattern.permute.xlu0 28
    %1515 = vperm.xlu0 %1514, %v50
    %v1516 = vpop.permute.xlu0 %1515
    %1517 = vset.pattern.permute.xlu0 28
    %1518 = vperm.xlu0 %1517, %v51
    %v1519 = vpop.permute.xlu0 %1518
    %1520 = vset.pattern.permute.xlu0 28
    %1521 = vperm.xlu0 %1520, %v52
    %v1522 = vpop.permute.xlu0 %1521
    %1523 = vset.pattern.permute.xlu0 28
    %1524 = vperm.xlu0 %1523, %v53
    %v1525 = vpop.permute.xlu0 %1524
    %1526 = vset.pattern.permute.xlu0 28
    %1527 = vperm.xlu0 %1526, %v54
    %v1528 = vpop.permute.xlu0 %1527
    %1529 = vset.pattern.permute.xlu0 28
    %1530 = vperm.xlu0 %1529, %v55
    %v1531 = vpop.permute.xlu0 %1530
    %1532 = vset.pattern.permute.xlu0 28
    %1533 = vperm.xlu0 %1532, %v56
    %v1534 = vpop.permute.xlu0 %1533
    %1535 = vset.pattern.permute.xlu0 28
    %1536 = vperm.xlu0 %1535, %v57
    %v1537 = vpop.permute.xlu0 %1536
    %vm1538 = vcmp.eq.s32.totalorder %v1516, %v49
    %vm1539 = vcmp.eq.s32.totalorder %v1519, %v49
    %vm1540 = vcmp.eq.s32.totalorder %v1522, %v49
    %vm1541 = vcmp.eq.s32.totalorder %v1525, %v49
    %vm1542 = vcmp.eq.s32.totalorder %v1528, %v49
    %vm1543 = vcmp.eq.s32.totalorder %v1531, %v49
    %vm1544 = vcmp.eq.s32.totalorder %v1534, %v49
    %vm1545 = vcmp.eq.s32.totalorder %v1537, %v49
    %v1546 = vlaneseq
    %v1547 = vshrl.u32 %v1546, 7
    %v1548 = vsub.s32 4, %v1547
    %v1549 = vrot.slane %v43, %v1548
    %v1550 = vsel %vm1538, %v1549, 0.0
    %v1551 = vsel %vm1539, %v1549, 0.0
    %v1552 = vsel %vm1540, %v1549, 0.0
    %v1553 = vsel %vm1541, %v1549, 0.0
    %v1554 = vsel %vm1542, %v1549, 0.0
    %v1555 = vsel %vm1543, %v1549, 0.0
    %v1556 = vsel %vm1544, %v1549, 0.0
    %v1557 = vsel %vm1545, %v1549, 0.0
    %v1558 = vadd.f32 %v1506, %v1550
    %v1559 = vadd.f32 %v1507, %v1551
    %v1560 = vadd.f32 %v1508, %v1552
    %v1561 = vadd.f32 %v1509, %v1553
    %v1562 = vadd.f32 %v1510, %v1554
    %v1563 = vadd.f32 %v1511, %v1555
    %v1564 = vadd.f32 %v1512, %v1556
    %v1565 = vadd.f32 %v1513, %v1557
    %1566 = vset.pattern.permute.xlu0 29
    %1567 = vperm.xlu0 %1566, %v50
    %v1568 = vpop.permute.xlu0 %1567
    %1569 = vset.pattern.permute.xlu0 29
    %1570 = vperm.xlu0 %1569, %v51
    %v1571 = vpop.permute.xlu0 %1570
    %1572 = vset.pattern.permute.xlu0 29
    %1573 = vperm.xlu0 %1572, %v52
    %v1574 = vpop.permute.xlu0 %1573
    %1575 = vset.pattern.permute.xlu0 29
    %1576 = vperm.xlu0 %1575, %v53
    %v1577 = vpop.permute.xlu0 %1576
    %1578 = vset.pattern.permute.xlu0 29
    %1579 = vperm.xlu0 %1578, %v54
    %v1580 = vpop.permute.xlu0 %1579
    %1581 = vset.pattern.permute.xlu0 29
    %1582 = vperm.xlu0 %1581, %v55
    %v1583 = vpop.permute.xlu0 %1582
    %1584 = vset.pattern.permute.xlu0 29
    %1585 = vperm.xlu0 %1584, %v56
    %v1586 = vpop.permute.xlu0 %1585
    %1587 = vset.pattern.permute.xlu0 29
    %1588 = vperm.xlu0 %1587, %v57
    %v1589 = vpop.permute.xlu0 %1588
    %vm1590 = vcmp.eq.s32.totalorder %v1568, %v49
    %vm1591 = vcmp.eq.s32.totalorder %v1571, %v49
    %vm1592 = vcmp.eq.s32.totalorder %v1574, %v49
    %vm1593 = vcmp.eq.s32.totalorder %v1577, %v49
    %vm1594 = vcmp.eq.s32.totalorder %v1580, %v49
    %vm1595 = vcmp.eq.s32.totalorder %v1583, %v49
    %vm1596 = vcmp.eq.s32.totalorder %v1586, %v49
    %vm1597 = vcmp.eq.s32.totalorder %v1589, %v49
    %v1598 = vlaneseq
    %v1599 = vshrl.u32 %v1598, 7
    %v1600 = vsub.s32 5, %v1599
    %v1601 = vrot.slane %v43, %v1600
    %v1602 = vsel %vm1590, %v1601, 0.0
    %v1603 = vsel %vm1591, %v1601, 0.0
    %v1604 = vsel %vm1592, %v1601, 0.0
    %v1605 = vsel %vm1593, %v1601, 0.0
    %v1606 = vsel %vm1594, %v1601, 0.0
    %v1607 = vsel %vm1595, %v1601, 0.0
    %v1608 = vsel %vm1596, %v1601, 0.0
    %v1609 = vsel %vm1597, %v1601, 0.0
    %v1610 = vadd.f32 %v1558, %v1602
    %v1611 = vadd.f32 %v1559, %v1603
    %v1612 = vadd.f32 %v1560, %v1604
    %v1613 = vadd.f32 %v1561, %v1605
    %v1614 = vadd.f32 %v1562, %v1606
    %v1615 = vadd.f32 %v1563, %v1607
    %v1616 = vadd.f32 %v1564, %v1608
    %v1617 = vadd.f32 %v1565, %v1609
    %1618 = vset.pattern.permute.xlu0 30
    %1619 = vperm.xlu0 %1618, %v50
    %v1620 = vpop.permute.xlu0 %1619
    %1621 = vset.pattern.permute.xlu0 30
    %1622 = vperm.xlu0 %1621, %v51
    %v1623 = vpop.permute.xlu0 %1622
    %1624 = vset.pattern.permute.xlu0 30
    %1625 = vperm.xlu0 %1624, %v52
    %v1626 = vpop.permute.xlu0 %1625
    %1627 = vset.pattern.permute.xlu0 30
    %1628 = vperm.xlu0 %1627, %v53
    %v1629 = vpop.permute.xlu0 %1628
    %1630 = vset.pattern.permute.xlu0 30
    %1631 = vperm.xlu0 %1630, %v54
    %v1632 = vpop.permute.xlu0 %1631
    %1633 = vset.pattern.permute.xlu0 30
    %1634 = vperm.xlu0 %1633, %v55
    %v1635 = vpop.permute.xlu0 %1634
    %1636 = vset.pattern.permute.xlu0 30
    %1637 = vperm.xlu0 %1636, %v56
    %v1638 = vpop.permute.xlu0 %1637
    %1639 = vset.pattern.permute.xlu0 30
    %1640 = vperm.xlu0 %1639, %v57
    %v1641 = vpop.permute.xlu0 %1640
    %vm1642 = vcmp.eq.s32.totalorder %v1620, %v49
    %vm1643 = vcmp.eq.s32.totalorder %v1623, %v49
    %vm1644 = vcmp.eq.s32.totalorder %v1626, %v49
    %vm1645 = vcmp.eq.s32.totalorder %v1629, %v49
    %vm1646 = vcmp.eq.s32.totalorder %v1632, %v49
    %vm1647 = vcmp.eq.s32.totalorder %v1635, %v49
    %vm1648 = vcmp.eq.s32.totalorder %v1638, %v49
    %vm1649 = vcmp.eq.s32.totalorder %v1641, %v49
    %v1650 = vlaneseq
    %v1651 = vshrl.u32 %v1650, 7
    %v1652 = vsub.s32 6, %v1651
    %v1653 = vrot.slane %v43, %v1652
    %v1654 = vsel %vm1642, %v1653, 0.0
    %v1655 = vsel %vm1643, %v1653, 0.0
    %v1656 = vsel %vm1644, %v1653, 0.0
    %v1657 = vsel %vm1645, %v1653, 0.0
    %v1658 = vsel %vm1646, %v1653, 0.0
    %v1659 = vsel %vm1647, %v1653, 0.0
    %v1660 = vsel %vm1648, %v1653, 0.0
    %v1661 = vsel %vm1649, %v1653, 0.0
    %v1662 = vadd.f32 %v1610, %v1654
    %v1663 = vadd.f32 %v1611, %v1655
    %v1664 = vadd.f32 %v1612, %v1656
    %v1665 = vadd.f32 %v1613, %v1657
    %v1666 = vadd.f32 %v1614, %v1658
    %v1667 = vadd.f32 %v1615, %v1659
    %v1668 = vadd.f32 %v1616, %v1660
    %v1669 = vadd.f32 %v1617, %v1661
    %1670 = vset.pattern.permute.xlu0 31
    %1671 = vperm.xlu0 %1670, %v50
    %v1672 = vpop.permute.xlu0 %1671
    %1673 = vset.pattern.permute.xlu0 31
    %1674 = vperm.xlu0 %1673, %v51
    %v1675 = vpop.permute.xlu0 %1674
    %1676 = vset.pattern.permute.xlu0 31
    %1677 = vperm.xlu0 %1676, %v52
    %v1678 = vpop.permute.xlu0 %1677
    %1679 = vset.pattern.permute.xlu0 31
    %1680 = vperm.xlu0 %1679, %v53
    %v1681 = vpop.permute.xlu0 %1680
    %1682 = vset.pattern.permute.xlu0 31
    %1683 = vperm.xlu0 %1682, %v54
    %v1684 = vpop.permute.xlu0 %1683
    %1685 = vset.pattern.permute.xlu0 31
    %1686 = vperm.xlu0 %1685, %v55
    %v1687 = vpop.permute.xlu0 %1686
    %1688 = vset.pattern.permute.xlu0 31
    %1689 = vperm.xlu0 %1688, %v56
    %v1690 = vpop.permute.xlu0 %1689
    %1691 = vset.pattern.permute.xlu0 31
    %1692 = vperm.xlu0 %1691, %v57
    %v1693 = vpop.permute.xlu0 %1692
    %vm1694 = vcmp.eq.s32.totalorder %v1672, %v49
    %vm1695 = vcmp.eq.s32.totalorder %v1675, %v49
    %vm1696 = vcmp.eq.s32.totalorder %v1678, %v49
    %vm1697 = vcmp.eq.s32.totalorder %v1681, %v49
    %vm1698 = vcmp.eq.s32.totalorder %v1684, %v49
    %vm1699 = vcmp.eq.s32.totalorder %v1687, %v49
    %vm1700 = vcmp.eq.s32.totalorder %v1690, %v49
    %vm1701 = vcmp.eq.s32.totalorder %v1693, %v49
    %v1702 = vlaneseq
    %v1703 = vshrl.u32 %v1702, 7
    %v1704 = vsub.s32 7, %v1703
    %v1705 = vrot.slane %v43, %v1704
    %v1706 = vsel %vm1694, %v1705, 0.0
    %v1707 = vsel %vm1695, %v1705, 0.0
    %v1708 = vsel %vm1696, %v1705, 0.0
    %v1709 = vsel %vm1697, %v1705, 0.0
    %v1710 = vsel %vm1698, %v1705, 0.0
    %v1711 = vsel %vm1699, %v1705, 0.0
    %v1712 = vsel %vm1700, %v1705, 0.0
    %v1713 = vsel %vm1701, %v1705, 0.0
    %v1714 = vadd.f32 %v1662, %v1706
    %v1715 = vadd.f32 %v1663, %v1707
    %v1716 = vadd.f32 %v1664, %v1708
    %v1717 = vadd.f32 %v1665, %v1709
    %v1718 = vadd.f32 %v1666, %v1710
    %v1719 = vadd.f32 %v1667, %v1711
    %v1720 = vadd.f32 %v1668, %v1712
    %v1721 = vadd.f32 %v1669, %v1713
    %1722 = vset.pattern.permute.xlu0 32
    %1723 = vperm.xlu0 %1722, %v50
    %v1724 = vpop.permute.xlu0 %1723
    %1725 = vset.pattern.permute.xlu0 32
    %1726 = vperm.xlu0 %1725, %v51
    %v1727 = vpop.permute.xlu0 %1726
    %1728 = vset.pattern.permute.xlu0 32
    %1729 = vperm.xlu0 %1728, %v52
    %v1730 = vpop.permute.xlu0 %1729
    %1731 = vset.pattern.permute.xlu0 32
    %1732 = vperm.xlu0 %1731, %v53
    %v1733 = vpop.permute.xlu0 %1732
    %1734 = vset.pattern.permute.xlu0 32
    %1735 = vperm.xlu0 %1734, %v54
    %v1736 = vpop.permute.xlu0 %1735
    %1737 = vset.pattern.permute.xlu0 32
    %1738 = vperm.xlu0 %1737, %v55
    %v1739 = vpop.permute.xlu0 %1738
    %1740 = vset.pattern.permute.xlu0 32
    %1741 = vperm.xlu0 %1740, %v56
    %v1742 = vpop.permute.xlu0 %1741
    %1743 = vset.pattern.permute.xlu0 32
    %1744 = vperm.xlu0 %1743, %v57
    %v1745 = vpop.permute.xlu0 %1744
    %vm1746 = vcmp.eq.s32.totalorder %v1724, %v49
    %vm1747 = vcmp.eq.s32.totalorder %v1727, %v49
    %vm1748 = vcmp.eq.s32.totalorder %v1730, %v49
    %vm1749 = vcmp.eq.s32.totalorder %v1733, %v49
    %vm1750 = vcmp.eq.s32.totalorder %v1736, %v49
    %vm1751 = vcmp.eq.s32.totalorder %v1739, %v49
    %vm1752 = vcmp.eq.s32.totalorder %v1742, %v49
    %vm1753 = vcmp.eq.s32.totalorder %v1745, %v49
    %v1754 = vlaneseq
    %v1755 = vshrl.u32 %v1754, 7
    %v1756 = vsub.s32 0, %v1755
    %v1757 = vrot.slane %v44, %v1756
    %v1758 = vsel %vm1746, %v1757, 0.0
    %v1759 = vsel %vm1747, %v1757, 0.0
    %v1760 = vsel %vm1748, %v1757, 0.0
    %v1761 = vsel %vm1749, %v1757, 0.0
    %v1762 = vsel %vm1750, %v1757, 0.0
    %v1763 = vsel %vm1751, %v1757, 0.0
    %v1764 = vsel %vm1752, %v1757, 0.0
    %v1765 = vsel %vm1753, %v1757, 0.0
    %v1766 = vadd.f32 %v1714, %v1758
    %v1767 = vadd.f32 %v1715, %v1759
    %v1768 = vadd.f32 %v1716, %v1760
    %v1769 = vadd.f32 %v1717, %v1761
    %v1770 = vadd.f32 %v1718, %v1762
    %v1771 = vadd.f32 %v1719, %v1763
    %v1772 = vadd.f32 %v1720, %v1764
    %v1773 = vadd.f32 %v1721, %v1765
    %1774 = vset.pattern.permute.xlu0 33
    %1775 = vperm.xlu0 %1774, %v50
    %v1776 = vpop.permute.xlu0 %1775
    %1777 = vset.pattern.permute.xlu0 33
    %1778 = vperm.xlu0 %1777, %v51
    %v1779 = vpop.permute.xlu0 %1778
    %1780 = vset.pattern.permute.xlu0 33
    %1781 = vperm.xlu0 %1780, %v52
    %v1782 = vpop.permute.xlu0 %1781
    %1783 = vset.pattern.permute.xlu0 33
    %1784 = vperm.xlu0 %1783, %v53
    %v1785 = vpop.permute.xlu0 %1784
    %1786 = vset.pattern.permute.xlu0 33
    %1787 = vperm.xlu0 %1786, %v54
    %v1788 = vpop.permute.xlu0 %1787
    %1789 = vset.pattern.permute.xlu0 33
    %1790 = vperm.xlu0 %1789, %v55
    %v1791 = vpop.permute.xlu0 %1790
    %1792 = vset.pattern.permute.xlu0 33
    %1793 = vperm.xlu0 %1792, %v56
    %v1794 = vpop.permute.xlu0 %1793
    %1795 = vset.pattern.permute.xlu0 33
    %1796 = vperm.xlu0 %1795, %v57
    %v1797 = vpop.permute.xlu0 %1796
    %vm1798 = vcmp.eq.s32.totalorder %v1776, %v49
    %vm1799 = vcmp.eq.s32.totalorder %v1779, %v49
    %vm1800 = vcmp.eq.s32.totalorder %v1782, %v49
    %vm1801 = vcmp.eq.s32.totalorder %v1785, %v49
    %vm1802 = vcmp.eq.s32.totalorder %v1788, %v49
    %vm1803 = vcmp.eq.s32.totalorder %v1791, %v49
    %vm1804 = vcmp.eq.s32.totalorder %v1794, %v49
    %vm1805 = vcmp.eq.s32.totalorder %v1797, %v49
    %v1806 = vlaneseq
    %v1807 = vshrl.u32 %v1806, 7
    %v1808 = vsub.s32 1, %v1807
    %v1809 = vrot.slane %v44, %v1808
    %v1810 = vsel %vm1798, %v1809, 0.0
    %v1811 = vsel %vm1799, %v1809, 0.0
    %v1812 = vsel %vm1800, %v1809, 0.0
    %v1813 = vsel %vm1801, %v1809, 0.0
    %v1814 = vsel %vm1802, %v1809, 0.0
    %v1815 = vsel %vm1803, %v1809, 0.0
    %v1816 = vsel %vm1804, %v1809, 0.0
    %v1817 = vsel %vm1805, %v1809, 0.0
    %v1818 = vadd.f32 %v1766, %v1810
    %v1819 = vadd.f32 %v1767, %v1811
    %v1820 = vadd.f32 %v1768, %v1812
    %v1821 = vadd.f32 %v1769, %v1813
    %v1822 = vadd.f32 %v1770, %v1814
    %v1823 = vadd.f32 %v1771, %v1815
    %v1824 = vadd.f32 %v1772, %v1816
    %v1825 = vadd.f32 %v1773, %v1817
    %1826 = vset.pattern.permute.xlu0 34
    %1827 = vperm.xlu0 %1826, %v50
    %v1828 = vpop.permute.xlu0 %1827
    %1829 = vset.pattern.permute.xlu0 34
    %1830 = vperm.xlu0 %1829, %v51
    %v1831 = vpop.permute.xlu0 %1830
    %1832 = vset.pattern.permute.xlu0 34
    %1833 = vperm.xlu0 %1832, %v52
    %v1834 = vpop.permute.xlu0 %1833
    %1835 = vset.pattern.permute.xlu0 34
    %1836 = vperm.xlu0 %1835, %v53
    %v1837 = vpop.permute.xlu0 %1836
    %1838 = vset.pattern.permute.xlu0 34
    %1839 = vperm.xlu0 %1838, %v54
    %v1840 = vpop.permute.xlu0 %1839
    %1841 = vset.pattern.permute.xlu0 34
    %1842 = vperm.xlu0 %1841, %v55
    %v1843 = vpop.permute.xlu0 %1842
    %1844 = vset.pattern.permute.xlu0 34
    %1845 = vperm.xlu0 %1844, %v56
    %v1846 = vpop.permute.xlu0 %1845
    %1847 = vset.pattern.permute.xlu0 34
    %1848 = vperm.xlu0 %1847, %v57
    %v1849 = vpop.permute.xlu0 %1848
    %vm1850 = vcmp.eq.s32.totalorder %v1828, %v49
    %vm1851 = vcmp.eq.s32.totalorder %v1831, %v49
    %vm1852 = vcmp.eq.s32.totalorder %v1834, %v49
    %vm1853 = vcmp.eq.s32.totalorder %v1837, %v49
    %vm1854 = vcmp.eq.s32.totalorder %v1840, %v49
    %vm1855 = vcmp.eq.s32.totalorder %v1843, %v49
    %vm1856 = vcmp.eq.s32.totalorder %v1846, %v49
    %vm1857 = vcmp.eq.s32.totalorder %v1849, %v49
    %v1858 = vlaneseq
    %v1859 = vshrl.u32 %v1858, 7
    %v1860 = vsub.s32 2, %v1859
    %v1861 = vrot.slane %v44, %v1860
    %v1862 = vsel %vm1850, %v1861, 0.0
    %v1863 = vsel %vm1851, %v1861, 0.0
    %v1864 = vsel %vm1852, %v1861, 0.0
    %v1865 = vsel %vm1853, %v1861, 0.0
    %v1866 = vsel %vm1854, %v1861, 0.0
    %v1867 = vsel %vm1855, %v1861, 0.0
    %v1868 = vsel %vm1856, %v1861, 0.0
    %v1869 = vsel %vm1857, %v1861, 0.0
    %v1870 = vadd.f32 %v1818, %v1862
    %v1871 = vadd.f32 %v1819, %v1863
    %v1872 = vadd.f32 %v1820, %v1864
    %v1873 = vadd.f32 %v1821, %v1865
    %v1874 = vadd.f32 %v1822, %v1866
    %v1875 = vadd.f32 %v1823, %v1867
    %v1876 = vadd.f32 %v1824, %v1868
    %v1877 = vadd.f32 %v1825, %v1869
    %1878 = vset.pattern.permute.xlu0 35
    %1879 = vperm.xlu0 %1878, %v50
    %v1880 = vpop.permute.xlu0 %1879
    %1881 = vset.pattern.permute.xlu0 35
    %1882 = vperm.xlu0 %1881, %v51
    %v1883 = vpop.permute.xlu0 %1882
    %1884 = vset.pattern.permute.xlu0 35
    %1885 = vperm.xlu0 %1884, %v52
    %v1886 = vpop.permute.xlu0 %1885
    %1887 = vset.pattern.permute.xlu0 35
    %1888 = vperm.xlu0 %1887, %v53
    %v1889 = vpop.permute.xlu0 %1888
    %1890 = vset.pattern.permute.xlu0 35
    %1891 = vperm.xlu0 %1890, %v54
    %v1892 = vpop.permute.xlu0 %1891
    %1893 = vset.pattern.permute.xlu0 35
    %1894 = vperm.xlu0 %1893, %v55
    %v1895 = vpop.permute.xlu0 %1894
    %1896 = vset.pattern.permute.xlu0 35
    %1897 = vperm.xlu0 %1896, %v56
    %v1898 = vpop.permute.xlu0 %1897
    %1899 = vset.pattern.permute.xlu0 35
    %1900 = vperm.xlu0 %1899, %v57
    %v1901 = vpop.permute.xlu0 %1900
    %vm1902 = vcmp.eq.s32.totalorder %v1880, %v49
    %vm1903 = vcmp.eq.s32.totalorder %v1883, %v49
    %vm1904 = vcmp.eq.s32.totalorder %v1886, %v49
    %vm1905 = vcmp.eq.s32.totalorder %v1889, %v49
    %vm1906 = vcmp.eq.s32.totalorder %v1892, %v49
    %vm1907 = vcmp.eq.s32.totalorder %v1895, %v49
    %vm1908 = vcmp.eq.s32.totalorder %v1898, %v49
    %vm1909 = vcmp.eq.s32.totalorder %v1901, %v49
    %v1910 = vlaneseq
    %v1911 = vshrl.u32 %v1910, 7
    %v1912 = vsub.s32 3, %v1911
    %v1913 = vrot.slane %v44, %v1912
    %v1914 = vsel %vm1902, %v1913, 0.0
    %v1915 = vsel %vm1903, %v1913, 0.0
    %v1916 = vsel %vm1904, %v1913, 0.0
    %v1917 = vsel %vm1905, %v1913, 0.0
    %v1918 = vsel %vm1906, %v1913, 0.0
    %v1919 = vsel %vm1907, %v1913, 0.0
    %v1920 = vsel %vm1908, %v1913, 0.0
    %v1921 = vsel %vm1909, %v1913, 0.0
    %v1922 = vadd.f32 %v1870, %v1914
    %v1923 = vadd.f32 %v1871, %v1915
    %v1924 = vadd.f32 %v1872, %v1916
    %v1925 = vadd.f32 %v1873, %v1917
    %v1926 = vadd.f32 %v1874, %v1918
    %v1927 = vadd.f32 %v1875, %v1919
    %v1928 = vadd.f32 %v1876, %v1920
    %v1929 = vadd.f32 %v1877, %v1921
    %1930 = vset.pattern.permute.xlu0 36
    %1931 = vperm.xlu0 %1930, %v50
    %v1932 = vpop.permute.xlu0 %1931
    %1933 = vset.pattern.permute.xlu0 36
    %1934 = vperm.xlu0 %1933, %v51
    %v1935 = vpop.permute.xlu0 %1934
    %1936 = vset.pattern.permute.xlu0 36
    %1937 = vperm.xlu0 %1936, %v52
    %v1938 = vpop.permute.xlu0 %1937
    %1939 = vset.pattern.permute.xlu0 36
    %1940 = vperm.xlu0 %1939, %v53
    %v1941 = vpop.permute.xlu0 %1940
    %1942 = vset.pattern.permute.xlu0 36
    %1943 = vperm.xlu0 %1942, %v54
    %v1944 = vpop.permute.xlu0 %1943
    %1945 = vset.pattern.permute.xlu0 36
    %1946 = vperm.xlu0 %1945, %v55
    %v1947 = vpop.permute.xlu0 %1946
    %1948 = vset.pattern.permute.xlu0 36
    %1949 = vperm.xlu0 %1948, %v56
    %v1950 = vpop.permute.xlu0 %1949
    %1951 = vset.pattern.permute.xlu0 36
    %1952 = vperm.xlu0 %1951, %v57
    %v1953 = vpop.permute.xlu0 %1952
    %vm1954 = vcmp.eq.s32.totalorder %v1932, %v49
    %vm1955 = vcmp.eq.s32.totalorder %v1935, %v49
    %vm1956 = vcmp.eq.s32.totalorder %v1938, %v49
    %vm1957 = vcmp.eq.s32.totalorder %v1941, %v49
    %vm1958 = vcmp.eq.s32.totalorder %v1944, %v49
    %vm1959 = vcmp.eq.s32.totalorder %v1947, %v49
    %vm1960 = vcmp.eq.s32.totalorder %v1950, %v49
    %vm1961 = vcmp.eq.s32.totalorder %v1953, %v49
    %v1962 = vlaneseq
    %v1963 = vshrl.u32 %v1962, 7
    %v1964 = vsub.s32 4, %v1963
    %v1965 = vrot.slane %v44, %v1964
    %v1966 = vsel %vm1954, %v1965, 0.0
    %v1967 = vsel %vm1955, %v1965, 0.0
    %v1968 = vsel %vm1956, %v1965, 0.0
    %v1969 = vsel %vm1957, %v1965, 0.0
    %v1970 = vsel %vm1958, %v1965, 0.0
    %v1971 = vsel %vm1959, %v1965, 0.0
    %v1972 = vsel %vm1960, %v1965, 0.0
    %v1973 = vsel %vm1961, %v1965, 0.0
    %v1974 = vadd.f32 %v1922, %v1966
    %v1975 = vadd.f32 %v1923, %v1967
    %v1976 = vadd.f32 %v1924, %v1968
    %v1977 = vadd.f32 %v1925, %v1969
    %v1978 = vadd.f32 %v1926, %v1970
    %v1979 = vadd.f32 %v1927, %v1971
    %v1980 = vadd.f32 %v1928, %v1972
    %v1981 = vadd.f32 %v1929, %v1973
    %1982 = vset.pattern.permute.xlu0 37
    %1983 = vperm.xlu0 %1982, %v50
    %v1984 = vpop.permute.xlu0 %1983
    %1985 = vset.pattern.permute.xlu0 37
    %1986 = vperm.xlu0 %1985, %v51
    %v1987 = vpop.permute.xlu0 %1986
    %1988 = vset.pattern.permute.xlu0 37
    %1989 = vperm.xlu0 %1988, %v52
    %v1990 = vpop.permute.xlu0 %1989
    %1991 = vset.pattern.permute.xlu0 37
    %1992 = vperm.xlu0 %1991, %v53
    %v1993 = vpop.permute.xlu0 %1992
    %1994 = vset.pattern.permute.xlu0 37
    %1995 = vperm.xlu0 %1994, %v54
    %v1996 = vpop.permute.xlu0 %1995
    %1997 = vset.pattern.permute.xlu0 37
    %1998 = vperm.xlu0 %1997, %v55
    %v1999 = vpop.permute.xlu0 %1998
    %2000 = vset.pattern.permute.xlu0 37
    %2001 = vperm.xlu0 %2000, %v56
    %v2002 = vpop.permute.xlu0 %2001
    %2003 = vset.pattern.permute.xlu0 37
    %2004 = vperm.xlu0 %2003, %v57
    %v2005 = vpop.permute.xlu0 %2004
    %vm2006 = vcmp.eq.s32.totalorder %v1984, %v49
    %vm2007 = vcmp.eq.s32.totalorder %v1987, %v49
    %vm2008 = vcmp.eq.s32.totalorder %v1990, %v49
    %vm2009 = vcmp.eq.s32.totalorder %v1993, %v49
    %vm2010 = vcmp.eq.s32.totalorder %v1996, %v49
    %vm2011 = vcmp.eq.s32.totalorder %v1999, %v49
    %vm2012 = vcmp.eq.s32.totalorder %v2002, %v49
    %vm2013 = vcmp.eq.s32.totalorder %v2005, %v49
    %v2014 = vlaneseq
    %v2015 = vshrl.u32 %v2014, 7
    %v2016 = vsub.s32 5, %v2015
    %v2017 = vrot.slane %v44, %v2016
    %v2018 = vsel %vm2006, %v2017, 0.0
    %v2019 = vsel %vm2007, %v2017, 0.0
    %v2020 = vsel %vm2008, %v2017, 0.0
    %v2021 = vsel %vm2009, %v2017, 0.0
    %v2022 = vsel %vm2010, %v2017, 0.0
    %v2023 = vsel %vm2011, %v2017, 0.0
    %v2024 = vsel %vm2012, %v2017, 0.0
    %v2025 = vsel %vm2013, %v2017, 0.0
    %v2026 = vadd.f32 %v1974, %v2018
    %v2027 = vadd.f32 %v1975, %v2019
    %v2028 = vadd.f32 %v1976, %v2020
    %v2029 = vadd.f32 %v1977, %v2021
    %v2030 = vadd.f32 %v1978, %v2022
    %v2031 = vadd.f32 %v1979, %v2023
    %v2032 = vadd.f32 %v1980, %v2024
    %v2033 = vadd.f32 %v1981, %v2025
    %2034 = vset.pattern.permute.xlu0 38
    %2035 = vperm.xlu0 %2034, %v50
    %v2036 = vpop.permute.xlu0 %2035
    %2037 = vset.pattern.permute.xlu0 38
    %2038 = vperm.xlu0 %2037, %v51
    %v2039 = vpop.permute.xlu0 %2038
    %2040 = vset.pattern.permute.xlu0 38
    %2041 = vperm.xlu0 %2040, %v52
    %v2042 = vpop.permute.xlu0 %2041
    %2043 = vset.pattern.permute.xlu0 38
    %2044 = vperm.xlu0 %2043, %v53
    %v2045 = vpop.permute.xlu0 %2044
    %2046 = vset.pattern.permute.xlu0 38
    %2047 = vperm.xlu0 %2046, %v54
    %v2048 = vpop.permute.xlu0 %2047
    %2049 = vset.pattern.permute.xlu0 38
    %2050 = vperm.xlu0 %2049, %v55
    %v2051 = vpop.permute.xlu0 %2050
    %2052 = vset.pattern.permute.xlu0 38
    %2053 = vperm.xlu0 %2052, %v56
    %v2054 = vpop.permute.xlu0 %2053
    %2055 = vset.pattern.permute.xlu0 38
    %2056 = vperm.xlu0 %2055, %v57
    %v2057 = vpop.permute.xlu0 %2056
    %vm2058 = vcmp.eq.s32.totalorder %v2036, %v49
    %vm2059 = vcmp.eq.s32.totalorder %v2039, %v49
    %vm2060 = vcmp.eq.s32.totalorder %v2042, %v49
    %vm2061 = vcmp.eq.s32.totalorder %v2045, %v49
    %vm2062 = vcmp.eq.s32.totalorder %v2048, %v49
    %vm2063 = vcmp.eq.s32.totalorder %v2051, %v49
    %vm2064 = vcmp.eq.s32.totalorder %v2054, %v49
    %vm2065 = vcmp.eq.s32.totalorder %v2057, %v49
    %v2066 = vlaneseq
    %v2067 = vshrl.u32 %v2066, 7
    %v2068 = vsub.s32 6, %v2067
    %v2069 = vrot.slane %v44, %v2068
    %v2070 = vsel %vm2058, %v2069, 0.0
    %v2071 = vsel %vm2059, %v2069, 0.0
    %v2072 = vsel %vm2060, %v2069, 0.0
    %v2073 = vsel %vm2061, %v2069, 0.0
    %v2074 = vsel %vm2062, %v2069, 0.0
    %v2075 = vsel %vm2063, %v2069, 0.0
    %v2076 = vsel %vm2064, %v2069, 0.0
    %v2077 = vsel %vm2065, %v2069, 0.0
    %v2078 = vadd.f32 %v2026, %v2070
    %v2079 = vadd.f32 %v2027, %v2071
    %v2080 = vadd.f32 %v2028, %v2072
    %v2081 = vadd.f32 %v2029, %v2073
    %v2082 = vadd.f32 %v2030, %v2074
    %v2083 = vadd.f32 %v2031, %v2075
    %v2084 = vadd.f32 %v2032, %v2076
    %v2085 = vadd.f32 %v2033, %v2077
    %2086 = vset.pattern.permute.xlu0 39
    %2087 = vperm.xlu0 %2086, %v50
    %v2088 = vpop.permute.xlu0 %2087
    %2089 = vset.pattern.permute.xlu0 39
    %2090 = vperm.xlu0 %2089, %v51
    %v2091 = vpop.permute.xlu0 %2090
    %2092 = vset.pattern.permute.xlu0 39
    %2093 = vperm.xlu0 %2092, %v52
    %v2094 = vpop.permute.xlu0 %2093
    %2095 = vset.pattern.permute.xlu0 39
    %2096 = vperm.xlu0 %2095, %v53
    %v2097 = vpop.permute.xlu0 %2096
    %2098 = vset.pattern.permute.xlu0 39
    %2099 = vperm.xlu0 %2098, %v54
    %v2100 = vpop.permute.xlu0 %2099
    %2101 = vset.pattern.permute.xlu0 39
    %2102 = vperm.xlu0 %2101, %v55
    %v2103 = vpop.permute.xlu0 %2102
    %2104 = vset.pattern.permute.xlu0 39
    %2105 = vperm.xlu0 %2104, %v56
    %v2106 = vpop.permute.xlu0 %2105
    %2107 = vset.pattern.permute.xlu0 39
    %2108 = vperm.xlu0 %2107, %v57
    %v2109 = vpop.permute.xlu0 %2108
    %vm2110 = vcmp.eq.s32.totalorder %v2088, %v49
    %vm2111 = vcmp.eq.s32.totalorder %v2091, %v49
    %vm2112 = vcmp.eq.s32.totalorder %v2094, %v49
    %vm2113 = vcmp.eq.s32.totalorder %v2097, %v49
    %vm2114 = vcmp.eq.s32.totalorder %v2100, %v49
    %vm2115 = vcmp.eq.s32.totalorder %v2103, %v49
    %vm2116 = vcmp.eq.s32.totalorder %v2106, %v49
    %vm2117 = vcmp.eq.s32.totalorder %v2109, %v49
    %v2118 = vlaneseq
    %v2119 = vshrl.u32 %v2118, 7
    %v2120 = vsub.s32 7, %v2119
    %v2121 = vrot.slane %v44, %v2120
    %v2122 = vsel %vm2110, %v2121, 0.0
    %v2123 = vsel %vm2111, %v2121, 0.0
    %v2124 = vsel %vm2112, %v2121, 0.0
    %v2125 = vsel %vm2113, %v2121, 0.0
    %v2126 = vsel %vm2114, %v2121, 0.0
    %v2127 = vsel %vm2115, %v2121, 0.0
    %v2128 = vsel %vm2116, %v2121, 0.0
    %v2129 = vsel %vm2117, %v2121, 0.0
    %v2130 = vadd.f32 %v2078, %v2122
    %v2131 = vadd.f32 %v2079, %v2123
    %v2132 = vadd.f32 %v2080, %v2124
    %v2133 = vadd.f32 %v2081, %v2125
    %v2134 = vadd.f32 %v2082, %v2126
    %v2135 = vadd.f32 %v2083, %v2127
    %v2136 = vadd.f32 %v2084, %v2128
    %v2137 = vadd.f32 %v2085, %v2129
    %2138 = vset.pattern.permute.xlu0 40
    %2139 = vperm.xlu0 %2138, %v50
    %v2140 = vpop.permute.xlu0 %2139
    %2141 = vset.pattern.permute.xlu0 40
    %2142 = vperm.xlu0 %2141, %v51
    %v2143 = vpop.permute.xlu0 %2142
    %2144 = vset.pattern.permute.xlu0 40
    %2145 = vperm.xlu0 %2144, %v52
    %v2146 = vpop.permute.xlu0 %2145
    %2147 = vset.pattern.permute.xlu0 40
    %2148 = vperm.xlu0 %2147, %v53
    %v2149 = vpop.permute.xlu0 %2148
    %2150 = vset.pattern.permute.xlu0 40
    %2151 = vperm.xlu0 %2150, %v54
    %v2152 = vpop.permute.xlu0 %2151
    %2153 = vset.pattern.permute.xlu0 40
    %2154 = vperm.xlu0 %2153, %v55
    %v2155 = vpop.permute.xlu0 %2154
    %2156 = vset.pattern.permute.xlu0 40
    %2157 = vperm.xlu0 %2156, %v56
    %v2158 = vpop.permute.xlu0 %2157
    %2159 = vset.pattern.permute.xlu0 40
    %2160 = vperm.xlu0 %2159, %v57
    %v2161 = vpop.permute.xlu0 %2160
    %vm2162 = vcmp.eq.s32.totalorder %v2140, %v49
    %vm2163 = vcmp.eq.s32.totalorder %v2143, %v49
    %vm2164 = vcmp.eq.s32.totalorder %v2146, %v49
    %vm2165 = vcmp.eq.s32.totalorder %v2149, %v49
    %vm2166 = vcmp.eq.s32.totalorder %v2152, %v49
    %vm2167 = vcmp.eq.s32.totalorder %v2155, %v49
    %vm2168 = vcmp.eq.s32.totalorder %v2158, %v49
    %vm2169 = vcmp.eq.s32.totalorder %v2161, %v49
    %v2170 = vlaneseq
    %v2171 = vshrl.u32 %v2170, 7
    %v2172 = vsub.s32 0, %v2171
    %v2173 = vrot.slane %v45, %v2172
    %v2174 = vsel %vm2162, %v2173, 0.0
    %v2175 = vsel %vm2163, %v2173, 0.0
    %v2176 = vsel %vm2164, %v2173, 0.0
    %v2177 = vsel %vm2165, %v2173, 0.0
    %v2178 = vsel %vm2166, %v2173, 0.0
    %v2179 = vsel %vm2167, %v2173, 0.0
    %v2180 = vsel %vm2168, %v2173, 0.0
    %v2181 = vsel %vm2169, %v2173, 0.0
    %v2182 = vadd.f32 %v2130, %v2174
    %v2183 = vadd.f32 %v2131, %v2175
    %v2184 = vadd.f32 %v2132, %v2176
    %v2185 = vadd.f32 %v2133, %v2177
    %v2186 = vadd.f32 %v2134, %v2178
    %v2187 = vadd.f32 %v2135, %v2179
    %v2188 = vadd.f32 %v2136, %v2180
    %v2189 = vadd.f32 %v2137, %v2181
    %2190 = vset.pattern.permute.xlu0 41
    %2191 = vperm.xlu0 %2190, %v50
    %v2192 = vpop.permute.xlu0 %2191
    %2193 = vset.pattern.permute.xlu0 41
    %2194 = vperm.xlu0 %2193, %v51
    %v2195 = vpop.permute.xlu0 %2194
    %2196 = vset.pattern.permute.xlu0 41
    %2197 = vperm.xlu0 %2196, %v52
    %v2198 = vpop.permute.xlu0 %2197
    %2199 = vset.pattern.permute.xlu0 41
    %2200 = vperm.xlu0 %2199, %v53
    %v2201 = vpop.permute.xlu0 %2200
    %2202 = vset.pattern.permute.xlu0 41
    %2203 = vperm.xlu0 %2202, %v54
    %v2204 = vpop.permute.xlu0 %2203
    %2205 = vset.pattern.permute.xlu0 41
    %2206 = vperm.xlu0 %2205, %v55
    %v2207 = vpop.permute.xlu0 %2206
    %2208 = vset.pattern.permute.xlu0 41
    %2209 = vperm.xlu0 %2208, %v56
    %v2210 = vpop.permute.xlu0 %2209
    %2211 = vset.pattern.permute.xlu0 41
    %2212 = vperm.xlu0 %2211, %v57
    %v2213 = vpop.permute.xlu0 %2212
    %vm2214 = vcmp.eq.s32.totalorder %v2192, %v49
    %vm2215 = vcmp.eq.s32.totalorder %v2195, %v49
    %vm2216 = vcmp.eq.s32.totalorder %v2198, %v49
    %vm2217 = vcmp.eq.s32.totalorder %v2201, %v49
    %vm2218 = vcmp.eq.s32.totalorder %v2204, %v49
    %vm2219 = vcmp.eq.s32.totalorder %v2207, %v49
    %vm2220 = vcmp.eq.s32.totalorder %v2210, %v49
    %vm2221 = vcmp.eq.s32.totalorder %v2213, %v49
    %v2222 = vlaneseq
    %v2223 = vshrl.u32 %v2222, 7
    %v2224 = vsub.s32 1, %v2223
    %v2225 = vrot.slane %v45, %v2224
    %v2226 = vsel %vm2214, %v2225, 0.0
    %v2227 = vsel %vm2215, %v2225, 0.0
    %v2228 = vsel %vm2216, %v2225, 0.0
    %v2229 = vsel %vm2217, %v2225, 0.0
    %v2230 = vsel %vm2218, %v2225, 0.0
    %v2231 = vsel %vm2219, %v2225, 0.0
    %v2232 = vsel %vm2220, %v2225, 0.0
    %v2233 = vsel %vm2221, %v2225, 0.0
    %v2234 = vadd.f32 %v2182, %v2226
    %v2235 = vadd.f32 %v2183, %v2227
    %v2236 = vadd.f32 %v2184, %v2228
    %v2237 = vadd.f32 %v2185, %v2229
    %v2238 = vadd.f32 %v2186, %v2230
    %v2239 = vadd.f32 %v2187, %v2231
    %v2240 = vadd.f32 %v2188, %v2232
    %v2241 = vadd.f32 %v2189, %v2233
    %2242 = vset.pattern.permute.xlu0 42
    %2243 = vperm.xlu0 %2242, %v50
    %v2244 = vpop.permute.xlu0 %2243
    %2245 = vset.pattern.permute.xlu0 42
    %2246 = vperm.xlu0 %2245, %v51
    %v2247 = vpop.permute.xlu0 %2246
    %2248 = vset.pattern.permute.xlu0 42
    %2249 = vperm.xlu0 %2248, %v52
    %v2250 = vpop.permute.xlu0 %2249
    %2251 = vset.pattern.permute.xlu0 42
    %2252 = vperm.xlu0 %2251, %v53
    %v2253 = vpop.permute.xlu0 %2252
    %2254 = vset.pattern.permute.xlu0 42
    %2255 = vperm.xlu0 %2254, %v54
    %v2256 = vpop.permute.xlu0 %2255
    %2257 = vset.pattern.permute.xlu0 42
    %2258 = vperm.xlu0 %2257, %v55
    %v2259 = vpop.permute.xlu0 %2258
    %2260 = vset.pattern.permute.xlu0 42
    %2261 = vperm.xlu0 %2260, %v56
    %v2262 = vpop.permute.xlu0 %2261
    %2263 = vset.pattern.permute.xlu0 42
    %2264 = vperm.xlu0 %2263, %v57
    %v2265 = vpop.permute.xlu0 %2264
    %vm2266 = vcmp.eq.s32.totalorder %v2244, %v49
    %vm2267 = vcmp.eq.s32.totalorder %v2247, %v49
    %vm2268 = vcmp.eq.s32.totalorder %v2250, %v49
    %vm2269 = vcmp.eq.s32.totalorder %v2253, %v49
    %vm2270 = vcmp.eq.s32.totalorder %v2256, %v49
    %vm2271 = vcmp.eq.s32.totalorder %v2259, %v49
    %vm2272 = vcmp.eq.s32.totalorder %v2262, %v49
    %vm2273 = vcmp.eq.s32.totalorder %v2265, %v49
    %v2274 = vlaneseq
    %v2275 = vshrl.u32 %v2274, 7
    %v2276 = vsub.s32 2, %v2275
    %v2277 = vrot.slane %v45, %v2276
    %v2278 = vsel %vm2266, %v2277, 0.0
    %v2279 = vsel %vm2267, %v2277, 0.0
    %v2280 = vsel %vm2268, %v2277, 0.0
    %v2281 = vsel %vm2269, %v2277, 0.0
    %v2282 = vsel %vm2270, %v2277, 0.0
    %v2283 = vsel %vm2271, %v2277, 0.0
    %v2284 = vsel %vm2272, %v2277, 0.0
    %v2285 = vsel %vm2273, %v2277, 0.0
    %v2286 = vadd.f32 %v2234, %v2278
    %v2287 = vadd.f32 %v2235, %v2279
    %v2288 = vadd.f32 %v2236, %v2280
    %v2289 = vadd.f32 %v2237, %v2281
    %v2290 = vadd.f32 %v2238, %v2282
    %v2291 = vadd.f32 %v2239, %v2283
    %v2292 = vadd.f32 %v2240, %v2284
    %v2293 = vadd.f32 %v2241, %v2285
    %2294 = vset.pattern.permute.xlu0 43
    %2295 = vperm.xlu0 %2294, %v50
    %v2296 = vpop.permute.xlu0 %2295
    %2297 = vset.pattern.permute.xlu0 43
    %2298 = vperm.xlu0 %2297, %v51
    %v2299 = vpop.permute.xlu0 %2298
    %2300 = vset.pattern.permute.xlu0 43
    %2301 = vperm.xlu0 %2300, %v52
    %v2302 = vpop.permute.xlu0 %2301
    %2303 = vset.pattern.permute.xlu0 43
    %2304 = vperm.xlu0 %2303, %v53
    %v2305 = vpop.permute.xlu0 %2304
    %2306 = vset.pattern.permute.xlu0 43
    %2307 = vperm.xlu0 %2306, %v54
    %v2308 = vpop.permute.xlu0 %2307
    %2309 = vset.pattern.permute.xlu0 43
    %2310 = vperm.xlu0 %2309, %v55
    %v2311 = vpop.permute.xlu0 %2310
    %2312 = vset.pattern.permute.xlu0 43
    %2313 = vperm.xlu0 %2312, %v56
    %v2314 = vpop.permute.xlu0 %2313
    %2315 = vset.pattern.permute.xlu0 43
    %2316 = vperm.xlu0 %2315, %v57
    %v2317 = vpop.permute.xlu0 %2316
    %vm2318 = vcmp.eq.s32.totalorder %v2296, %v49
    %vm2319 = vcmp.eq.s32.totalorder %v2299, %v49
    %vm2320 = vcmp.eq.s32.totalorder %v2302, %v49
    %vm2321 = vcmp.eq.s32.totalorder %v2305, %v49
    %vm2322 = vcmp.eq.s32.totalorder %v2308, %v49
    %vm2323 = vcmp.eq.s32.totalorder %v2311, %v49
    %vm2324 = vcmp.eq.s32.totalorder %v2314, %v49
    %vm2325 = vcmp.eq.s32.totalorder %v2317, %v49
    %v2326 = vlaneseq
    %v2327 = vshrl.u32 %v2326, 7
    %v2328 = vsub.s32 3, %v2327
    %v2329 = vrot.slane %v45, %v2328
    %v2330 = vsel %vm2318, %v2329, 0.0
    %v2331 = vsel %vm2319, %v2329, 0.0
    %v2332 = vsel %vm2320, %v2329, 0.0
    %v2333 = vsel %vm2321, %v2329, 0.0
    %v2334 = vsel %vm2322, %v2329, 0.0
    %v2335 = vsel %vm2323, %v2329, 0.0
    %v2336 = vsel %vm2324, %v2329, 0.0
    %v2337 = vsel %vm2325, %v2329, 0.0
    %v2338 = vadd.f32 %v2286, %v2330
    %v2339 = vadd.f32 %v2287, %v2331
    %v2340 = vadd.f32 %v2288, %v2332
    %v2341 = vadd.f32 %v2289, %v2333
    %v2342 = vadd.f32 %v2290, %v2334
    %v2343 = vadd.f32 %v2291, %v2335
    %v2344 = vadd.f32 %v2292, %v2336
    %v2345 = vadd.f32 %v2293, %v2337
    %2346 = vset.pattern.permute.xlu0 44
    %2347 = vperm.xlu0 %2346, %v50
    %v2348 = vpop.permute.xlu0 %2347
    %2349 = vset.pattern.permute.xlu0 44
    %2350 = vperm.xlu0 %2349, %v51
    %v2351 = vpop.permute.xlu0 %2350
    %2352 = vset.pattern.permute.xlu0 44
    %2353 = vperm.xlu0 %2352, %v52
    %v2354 = vpop.permute.xlu0 %2353
    %2355 = vset.pattern.permute.xlu0 44
    %2356 = vperm.xlu0 %2355, %v53
    %v2357 = vpop.permute.xlu0 %2356
    %2358 = vset.pattern.permute.xlu0 44
    %2359 = vperm.xlu0 %2358, %v54
    %v2360 = vpop.permute.xlu0 %2359
    %2361 = vset.pattern.permute.xlu0 44
    %2362 = vperm.xlu0 %2361, %v55
    %v2363 = vpop.permute.xlu0 %2362
    %2364 = vset.pattern.permute.xlu0 44
    %2365 = vperm.xlu0 %2364, %v56
    %v2366 = vpop.permute.xlu0 %2365
    %2367 = vset.pattern.permute.xlu0 44
    %2368 = vperm.xlu0 %2367, %v57
    %v2369 = vpop.permute.xlu0 %2368
    %vm2370 = vcmp.eq.s32.totalorder %v2348, %v49
    %vm2371 = vcmp.eq.s32.totalorder %v2351, %v49
    %vm2372 = vcmp.eq.s32.totalorder %v2354, %v49
    %vm2373 = vcmp.eq.s32.totalorder %v2357, %v49
    %vm2374 = vcmp.eq.s32.totalorder %v2360, %v49
    %vm2375 = vcmp.eq.s32.totalorder %v2363, %v49
    %vm2376 = vcmp.eq.s32.totalorder %v2366, %v49
    %vm2377 = vcmp.eq.s32.totalorder %v2369, %v49
    %v2378 = vlaneseq
    %v2379 = vshrl.u32 %v2378, 7
    %v2380 = vsub.s32 4, %v2379
    %v2381 = vrot.slane %v45, %v2380
    %v2382 = vsel %vm2370, %v2381, 0.0
    %v2383 = vsel %vm2371, %v2381, 0.0
    %v2384 = vsel %vm2372, %v2381, 0.0
    %v2385 = vsel %vm2373, %v2381, 0.0
    %v2386 = vsel %vm2374, %v2381, 0.0
    %v2387 = vsel %vm2375, %v2381, 0.0
    %v2388 = vsel %vm2376, %v2381, 0.0
    %v2389 = vsel %vm2377, %v2381, 0.0
    %v2390 = vadd.f32 %v2338, %v2382
    %v2391 = vadd.f32 %v2339, %v2383
    %v2392 = vadd.f32 %v2340, %v2384
    %v2393 = vadd.f32 %v2341, %v2385
    %v2394 = vadd.f32 %v2342, %v2386
    %v2395 = vadd.f32 %v2343, %v2387
    %v2396 = vadd.f32 %v2344, %v2388
    %v2397 = vadd.f32 %v2345, %v2389
    %2398 = vset.pattern.permute.xlu0 45
    %2399 = vperm.xlu0 %2398, %v50
    %v2400 = vpop.permute.xlu0 %2399
    %2401 = vset.pattern.permute.xlu0 45
    %2402 = vperm.xlu0 %2401, %v51
    %v2403 = vpop.permute.xlu0 %2402
    %2404 = vset.pattern.permute.xlu0 45
    %2405 = vperm.xlu0 %2404, %v52
    %v2406 = vpop.permute.xlu0 %2405
    %2407 = vset.pattern.permute.xlu0 45
    %2408 = vperm.xlu0 %2407, %v53
    %v2409 = vpop.permute.xlu0 %2408
    %2410 = vset.pattern.permute.xlu0 45
    %2411 = vperm.xlu0 %2410, %v54
    %v2412 = vpop.permute.xlu0 %2411
    %2413 = vset.pattern.permute.xlu0 45
    %2414 = vperm.xlu0 %2413, %v55
    %v2415 = vpop.permute.xlu0 %2414
    %2416 = vset.pattern.permute.xlu0 45
    %2417 = vperm.xlu0 %2416, %v56
    %v2418 = vpop.permute.xlu0 %2417
    %2419 = vset.pattern.permute.xlu0 45
    %2420 = vperm.xlu0 %2419, %v57
    %v2421 = vpop.permute.xlu0 %2420
    %vm2422 = vcmp.eq.s32.totalorder %v2400, %v49
    %vm2423 = vcmp.eq.s32.totalorder %v2403, %v49
    %vm2424 = vcmp.eq.s32.totalorder %v2406, %v49
    %vm2425 = vcmp.eq.s32.totalorder %v2409, %v49
    %vm2426 = vcmp.eq.s32.totalorder %v2412, %v49
    %vm2427 = vcmp.eq.s32.totalorder %v2415, %v49
    %vm2428 = vcmp.eq.s32.totalorder %v2418, %v49
    %vm2429 = vcmp.eq.s32.totalorder %v2421, %v49
    %v2430 = vlaneseq
    %v2431 = vshrl.u32 %v2430, 7
    %v2432 = vsub.s32 5, %v2431
    %v2433 = vrot.slane %v45, %v2432
    %v2434 = vsel %vm2422, %v2433, 0.0
    %v2435 = vsel %vm2423, %v2433, 0.0
    %v2436 = vsel %vm2424, %v2433, 0.0
    %v2437 = vsel %vm2425, %v2433, 0.0
    %v2438 = vsel %vm2426, %v2433, 0.0
    %v2439 = vsel %vm2427, %v2433, 0.0
    %v2440 = vsel %vm2428, %v2433, 0.0
    %v2441 = vsel %vm2429, %v2433, 0.0
    %v2442 = vadd.f32 %v2390, %v2434
    %v2443 = vadd.f32 %v2391, %v2435
    %v2444 = vadd.f32 %v2392, %v2436
    %v2445 = vadd.f32 %v2393, %v2437
    %v2446 = vadd.f32 %v2394, %v2438
    %v2447 = vadd.f32 %v2395, %v2439
    %v2448 = vadd.f32 %v2396, %v2440
    %v2449 = vadd.f32 %v2397, %v2441
    %2450 = vset.pattern.permute.xlu0 46
    %2451 = vperm.xlu0 %2450, %v50
    %v2452 = vpop.permute.xlu0 %2451
    %2453 = vset.pattern.permute.xlu0 46
    %2454 = vperm.xlu0 %2453, %v51
    %v2455 = vpop.permute.xlu0 %2454
    %2456 = vset.pattern.permute.xlu0 46
    %2457 = vperm.xlu0 %2456, %v52
    %v2458 = vpop.permute.xlu0 %2457
    %2459 = vset.pattern.permute.xlu0 46
    %2460 = vperm.xlu0 %2459, %v53
    %v2461 = vpop.permute.xlu0 %2460
    %2462 = vset.pattern.permute.xlu0 46
    %2463 = vperm.xlu0 %2462, %v54
    %v2464 = vpop.permute.xlu0 %2463
    %2465 = vset.pattern.permute.xlu0 46
    %2466 = vperm.xlu0 %2465, %v55
    %v2467 = vpop.permute.xlu0 %2466
    %2468 = vset.pattern.permute.xlu0 46
    %2469 = vperm.xlu0 %2468, %v56
    %v2470 = vpop.permute.xlu0 %2469
    %2471 = vset.pattern.permute.xlu0 46
    %2472 = vperm.xlu0 %2471, %v57
    %v2473 = vpop.permute.xlu0 %2472
    %vm2474 = vcmp.eq.s32.totalorder %v2452, %v49
    %vm2475 = vcmp.eq.s32.totalorder %v2455, %v49
    %vm2476 = vcmp.eq.s32.totalorder %v2458, %v49
    %vm2477 = vcmp.eq.s32.totalorder %v2461, %v49
    %vm2478 = vcmp.eq.s32.totalorder %v2464, %v49
    %vm2479 = vcmp.eq.s32.totalorder %v2467, %v49
    %vm2480 = vcmp.eq.s32.totalorder %v2470, %v49
    %vm2481 = vcmp.eq.s32.totalorder %v2473, %v49
    %v2482 = vlaneseq
    %v2483 = vshrl.u32 %v2482, 7
    %v2484 = vsub.s32 6, %v2483
    %v2485 = vrot.slane %v45, %v2484
    %v2486 = vsel %vm2474, %v2485, 0.0
    %v2487 = vsel %vm2475, %v2485, 0.0
    %v2488 = vsel %vm2476, %v2485, 0.0
    %v2489 = vsel %vm2477, %v2485, 0.0
    %v2490 = vsel %vm2478, %v2485, 0.0
    %v2491 = vsel %vm2479, %v2485, 0.0
    %v2492 = vsel %vm2480, %v2485, 0.0
    %v2493 = vsel %vm2481, %v2485, 0.0
    %v2494 = vadd.f32 %v2442, %v2486
    %v2495 = vadd.f32 %v2443, %v2487
    %v2496 = vadd.f32 %v2444, %v2488
    %v2497 = vadd.f32 %v2445, %v2489
    %v2498 = vadd.f32 %v2446, %v2490
    %v2499 = vadd.f32 %v2447, %v2491
    %v2500 = vadd.f32 %v2448, %v2492
    %v2501 = vadd.f32 %v2449, %v2493
    %2502 = vset.pattern.permute.xlu0 47
    %2503 = vperm.xlu0 %2502, %v50
    %v2504 = vpop.permute.xlu0 %2503
    %2505 = vset.pattern.permute.xlu0 47
    %2506 = vperm.xlu0 %2505, %v51
    %v2507 = vpop.permute.xlu0 %2506
    %2508 = vset.pattern.permute.xlu0 47
    %2509 = vperm.xlu0 %2508, %v52
    %v2510 = vpop.permute.xlu0 %2509
    %2511 = vset.pattern.permute.xlu0 47
    %2512 = vperm.xlu0 %2511, %v53
    %v2513 = vpop.permute.xlu0 %2512
    %2514 = vset.pattern.permute.xlu0 47
    %2515 = vperm.xlu0 %2514, %v54
    %v2516 = vpop.permute.xlu0 %2515
    %2517 = vset.pattern.permute.xlu0 47
    %2518 = vperm.xlu0 %2517, %v55
    %v2519 = vpop.permute.xlu0 %2518
    %2520 = vset.pattern.permute.xlu0 47
    %2521 = vperm.xlu0 %2520, %v56
    %v2522 = vpop.permute.xlu0 %2521
    %2523 = vset.pattern.permute.xlu0 47
    %2524 = vperm.xlu0 %2523, %v57
    %v2525 = vpop.permute.xlu0 %2524
    %vm2526 = vcmp.eq.s32.totalorder %v2504, %v49
    %vm2527 = vcmp.eq.s32.totalorder %v2507, %v49
    %vm2528 = vcmp.eq.s32.totalorder %v2510, %v49
    %vm2529 = vcmp.eq.s32.totalorder %v2513, %v49
    %vm2530 = vcmp.eq.s32.totalorder %v2516, %v49
    %vm2531 = vcmp.eq.s32.totalorder %v2519, %v49
    %vm2532 = vcmp.eq.s32.totalorder %v2522, %v49
    %vm2533 = vcmp.eq.s32.totalorder %v2525, %v49
    %v2534 = vlaneseq
    %v2535 = vshrl.u32 %v2534, 7
    %v2536 = vsub.s32 7, %v2535
    %v2537 = vrot.slane %v45, %v2536
    %v2538 = vsel %vm2526, %v2537, 0.0
    %v2539 = vsel %vm2527, %v2537, 0.0
    %v2540 = vsel %vm2528, %v2537, 0.0
    %v2541 = vsel %vm2529, %v2537, 0.0
    %v2542 = vsel %vm2530, %v2537, 0.0
    %v2543 = vsel %vm2531, %v2537, 0.0
    %v2544 = vsel %vm2532, %v2537, 0.0
    %v2545 = vsel %vm2533, %v2537, 0.0
    %v2546 = vadd.f32 %v2494, %v2538
    %v2547 = vadd.f32 %v2495, %v2539
    %v2548 = vadd.f32 %v2496, %v2540
    %v2549 = vadd.f32 %v2497, %v2541
    %v2550 = vadd.f32 %v2498, %v2542
    %v2551 = vadd.f32 %v2499, %v2543
    %v2552 = vadd.f32 %v2500, %v2544
    %v2553 = vadd.f32 %v2501, %v2545
    %2554 = vset.pattern.permute.xlu0 48
    %2555 = vperm.xlu0 %2554, %v50
    %v2556 = vpop.permute.xlu0 %2555
    %2557 = vset.pattern.permute.xlu0 48
    %2558 = vperm.xlu0 %2557, %v51
    %v2559 = vpop.permute.xlu0 %2558
    %2560 = vset.pattern.permute.xlu0 48
    %2561 = vperm.xlu0 %2560, %v52
    %v2562 = vpop.permute.xlu0 %2561
    %2563 = vset.pattern.permute.xlu0 48
    %2564 = vperm.xlu0 %2563, %v53
    %v2565 = vpop.permute.xlu0 %2564
    %2566 = vset.pattern.permute.xlu0 48
    %2567 = vperm.xlu0 %2566, %v54
    %v2568 = vpop.permute.xlu0 %2567
    %2569 = vset.pattern.permute.xlu0 48
    %2570 = vperm.xlu0 %2569, %v55
    %v2571 = vpop.permute.xlu0 %2570
    %2572 = vset.pattern.permute.xlu0 48
    %2573 = vperm.xlu0 %2572, %v56
    %v2574 = vpop.permute.xlu0 %2573
    %2575 = vset.pattern.permute.xlu0 48
    %2576 = vperm.xlu0 %2575, %v57
    %v2577 = vpop.permute.xlu0 %2576
    %vm2578 = vcmp.eq.s32.totalorder %v2556, %v49
    %vm2579 = vcmp.eq.s32.totalorder %v2559, %v49
    %vm2580 = vcmp.eq.s32.totalorder %v2562, %v49
    %vm2581 = vcmp.eq.s32.totalorder %v2565, %v49
    %vm2582 = vcmp.eq.s32.totalorder %v2568, %v49
    %vm2583 = vcmp.eq.s32.totalorder %v2571, %v49
    %vm2584 = vcmp.eq.s32.totalorder %v2574, %v49
    %vm2585 = vcmp.eq.s32.totalorder %v2577, %v49
    %v2586 = vlaneseq
    %v2587 = vshrl.u32 %v2586, 7
    %v2588 = vsub.s32 0, %v2587
    %v2589 = vrot.slane %v46, %v2588
    %v2590 = vsel %vm2578, %v2589, 0.0
    %v2591 = vsel %vm2579, %v2589, 0.0
    %v2592 = vsel %vm2580, %v2589, 0.0
    %v2593 = vsel %vm2581, %v2589, 0.0
    %v2594 = vsel %vm2582, %v2589, 0.0
    %v2595 = vsel %vm2583, %v2589, 0.0
    %v2596 = vsel %vm2584, %v2589, 0.0
    %v2597 = vsel %vm2585, %v2589, 0.0
    %v2598 = vadd.f32 %v2546, %v2590
    %v2599 = vadd.f32 %v2547, %v2591
    %v2600 = vadd.f32 %v2548, %v2592
    %v2601 = vadd.f32 %v2549, %v2593
    %v2602 = vadd.f32 %v2550, %v2594
    %v2603 = vadd.f32 %v2551, %v2595
    %v2604 = vadd.f32 %v2552, %v2596
    %v2605 = vadd.f32 %v2553, %v2597
    %2606 = vset.pattern.permute.xlu0 49
    %2607 = vperm.xlu0 %2606, %v50
    %v2608 = vpop.permute.xlu0 %2607
    %2609 = vset.pattern.permute.xlu0 49
    %2610 = vperm.xlu0 %2609, %v51
    %v2611 = vpop.permute.xlu0 %2610
    %2612 = vset.pattern.permute.xlu0 49
    %2613 = vperm.xlu0 %2612, %v52
    %v2614 = vpop.permute.xlu0 %2613
    %2615 = vset.pattern.permute.xlu0 49
    %2616 = vperm.xlu0 %2615, %v53
    %v2617 = vpop.permute.xlu0 %2616
    %2618 = vset.pattern.permute.xlu0 49
    %2619 = vperm.xlu0 %2618, %v54
    %v2620 = vpop.permute.xlu0 %2619
    %2621 = vset.pattern.permute.xlu0 49
    %2622 = vperm.xlu0 %2621, %v55
    %v2623 = vpop.permute.xlu0 %2622
    %2624 = vset.pattern.permute.xlu0 49
    %2625 = vperm.xlu0 %2624, %v56
    %v2626 = vpop.permute.xlu0 %2625
    %2627 = vset.pattern.permute.xlu0 49
    %2628 = vperm.xlu0 %2627, %v57
    %v2629 = vpop.permute.xlu0 %2628
    %vm2630 = vcmp.eq.s32.totalorder %v2608, %v49
    %vm2631 = vcmp.eq.s32.totalorder %v2611, %v49
    %vm2632 = vcmp.eq.s32.totalorder %v2614, %v49
    %vm2633 = vcmp.eq.s32.totalorder %v2617, %v49
    %vm2634 = vcmp.eq.s32.totalorder %v2620, %v49
    %vm2635 = vcmp.eq.s32.totalorder %v2623, %v49
    %vm2636 = vcmp.eq.s32.totalorder %v2626, %v49
    %vm2637 = vcmp.eq.s32.totalorder %v2629, %v49
    %v2638 = vlaneseq
    %v2639 = vshrl.u32 %v2638, 7
    %v2640 = vsub.s32 1, %v2639
    %v2641 = vrot.slane %v46, %v2640
    %v2642 = vsel %vm2630, %v2641, 0.0
    %v2643 = vsel %vm2631, %v2641, 0.0
    %v2644 = vsel %vm2632, %v2641, 0.0
    %v2645 = vsel %vm2633, %v2641, 0.0
    %v2646 = vsel %vm2634, %v2641, 0.0
    %v2647 = vsel %vm2635, %v2641, 0.0
    %v2648 = vsel %vm2636, %v2641, 0.0
    %v2649 = vsel %vm2637, %v2641, 0.0
    %v2650 = vadd.f32 %v2598, %v2642
    %v2651 = vadd.f32 %v2599, %v2643
    %v2652 = vadd.f32 %v2600, %v2644
    %v2653 = vadd.f32 %v2601, %v2645
    %v2654 = vadd.f32 %v2602, %v2646
    %v2655 = vadd.f32 %v2603, %v2647
    %v2656 = vadd.f32 %v2604, %v2648
    %v2657 = vadd.f32 %v2605, %v2649
    %2658 = vset.pattern.permute.xlu0 50
    %2659 = vperm.xlu0 %2658, %v50
    %v2660 = vpop.permute.xlu0 %2659
    %2661 = vset.pattern.permute.xlu0 50
    %2662 = vperm.xlu0 %2661, %v51
    %v2663 = vpop.permute.xlu0 %2662
    %2664 = vset.pattern.permute.xlu0 50
    %2665 = vperm.xlu0 %2664, %v52
    %v2666 = vpop.permute.xlu0 %2665
    %2667 = vset.pattern.permute.xlu0 50
    %2668 = vperm.xlu0 %2667, %v53
    %v2669 = vpop.permute.xlu0 %2668
    %2670 = vset.pattern.permute.xlu0 50
    %2671 = vperm.xlu0 %2670, %v54
    %v2672 = vpop.permute.xlu0 %2671
    %2673 = vset.pattern.permute.xlu0 50
    %2674 = vperm.xlu0 %2673, %v55
    %v2675 = vpop.permute.xlu0 %2674
    %2676 = vset.pattern.permute.xlu0 50
    %2677 = vperm.xlu0 %2676, %v56
    %v2678 = vpop.permute.xlu0 %2677
    %2679 = vset.pattern.permute.xlu0 50
    %2680 = vperm.xlu0 %2679, %v57
    %v2681 = vpop.permute.xlu0 %2680
    %vm2682 = vcmp.eq.s32.totalorder %v2660, %v49
    %vm2683 = vcmp.eq.s32.totalorder %v2663, %v49
    %vm2684 = vcmp.eq.s32.totalorder %v2666, %v49
    %vm2685 = vcmp.eq.s32.totalorder %v2669, %v49
    %vm2686 = vcmp.eq.s32.totalorder %v2672, %v49
    %vm2687 = vcmp.eq.s32.totalorder %v2675, %v49
    %vm2688 = vcmp.eq.s32.totalorder %v2678, %v49
    %vm2689 = vcmp.eq.s32.totalorder %v2681, %v49
    %v2690 = vlaneseq
    %v2691 = vshrl.u32 %v2690, 7
    %v2692 = vsub.s32 2, %v2691
    %v2693 = vrot.slane %v46, %v2692
    %v2694 = vsel %vm2682, %v2693, 0.0
    %v2695 = vsel %vm2683, %v2693, 0.0
    %v2696 = vsel %vm2684, %v2693, 0.0
    %v2697 = vsel %vm2685, %v2693, 0.0
    %v2698 = vsel %vm2686, %v2693, 0.0
    %v2699 = vsel %vm2687, %v2693, 0.0
    %v2700 = vsel %vm2688, %v2693, 0.0
    %v2701 = vsel %vm2689, %v2693, 0.0
    %v2702 = vadd.f32 %v2650, %v2694
    %v2703 = vadd.f32 %v2651, %v2695
    %v2704 = vadd.f32 %v2652, %v2696
    %v2705 = vadd.f32 %v2653, %v2697
    %v2706 = vadd.f32 %v2654, %v2698
    %v2707 = vadd.f32 %v2655, %v2699
    %v2708 = vadd.f32 %v2656, %v2700
    %v2709 = vadd.f32 %v2657, %v2701
    %2710 = vset.pattern.permute.xlu0 51
    %2711 = vperm.xlu0 %2710, %v50
    %v2712 = vpop.permute.xlu0 %2711
    %2713 = vset.pattern.permute.xlu0 51
    %2714 = vperm.xlu0 %2713, %v51
    %v2715 = vpop.permute.xlu0 %2714
    %2716 = vset.pattern.permute.xlu0 51
    %2717 = vperm.xlu0 %2716, %v52
    %v2718 = vpop.permute.xlu0 %2717
    %2719 = vset.pattern.permute.xlu0 51
    %2720 = vperm.xlu0 %2719, %v53
    %v2721 = vpop.permute.xlu0 %2720
    %2722 = vset.pattern.permute.xlu0 51
    %2723 = vperm.xlu0 %2722, %v54
    %v2724 = vpop.permute.xlu0 %2723
    %2725 = vset.pattern.permute.xlu0 51
    %2726 = vperm.xlu0 %2725, %v55
    %v2727 = vpop.permute.xlu0 %2726
    %2728 = vset.pattern.permute.xlu0 51
    %2729 = vperm.xlu0 %2728, %v56
    %v2730 = vpop.permute.xlu0 %2729
    %2731 = vset.pattern.permute.xlu0 51
    %2732 = vperm.xlu0 %2731, %v57
    %v2733 = vpop.permute.xlu0 %2732
    %vm2734 = vcmp.eq.s32.totalorder %v2712, %v49
    %vm2735 = vcmp.eq.s32.totalorder %v2715, %v49
    %vm2736 = vcmp.eq.s32.totalorder %v2718, %v49
    %vm2737 = vcmp.eq.s32.totalorder %v2721, %v49
    %vm2738 = vcmp.eq.s32.totalorder %v2724, %v49
    %vm2739 = vcmp.eq.s32.totalorder %v2727, %v49
    %vm2740 = vcmp.eq.s32.totalorder %v2730, %v49
    %vm2741 = vcmp.eq.s32.totalorder %v2733, %v49
    %v2742 = vlaneseq
    %v2743 = vshrl.u32 %v2742, 7
    %v2744 = vsub.s32 3, %v2743
    %v2745 = vrot.slane %v46, %v2744
    %v2746 = vsel %vm2734, %v2745, 0.0
    %v2747 = vsel %vm2735, %v2745, 0.0
    %v2748 = vsel %vm2736, %v2745, 0.0
    %v2749 = vsel %vm2737, %v2745, 0.0
    %v2750 = vsel %vm2738, %v2745, 0.0
    %v2751 = vsel %vm2739, %v2745, 0.0
    %v2752 = vsel %vm2740, %v2745, 0.0
    %v2753 = vsel %vm2741, %v2745, 0.0
    %v2754 = vadd.f32 %v2702, %v2746
    %v2755 = vadd.f32 %v2703, %v2747
    %v2756 = vadd.f32 %v2704, %v2748
    %v2757 = vadd.f32 %v2705, %v2749
    %v2758 = vadd.f32 %v2706, %v2750
    %v2759 = vadd.f32 %v2707, %v2751
    %v2760 = vadd.f32 %v2708, %v2752
    %v2761 = vadd.f32 %v2709, %v2753
    %2762 = vset.pattern.permute.xlu0 52
    %2763 = vperm.xlu0 %2762, %v50
    %v2764 = vpop.permute.xlu0 %2763
    %2765 = vset.pattern.permute.xlu0 52
    %2766 = vperm.xlu0 %2765, %v51
    %v2767 = vpop.permute.xlu0 %2766
    %2768 = vset.pattern.permute.xlu0 52
    %2769 = vperm.xlu0 %2768, %v52
    %v2770 = vpop.permute.xlu0 %2769
    %2771 = vset.pattern.permute.xlu0 52
    %2772 = vperm.xlu0 %2771, %v53
    %v2773 = vpop.permute.xlu0 %2772
    %2774 = vset.pattern.permute.xlu0 52
    %2775 = vperm.xlu0 %2774, %v54
    %v2776 = vpop.permute.xlu0 %2775
    %2777 = vset.pattern.permute.xlu0 52
    %2778 = vperm.xlu0 %2777, %v55
    %v2779 = vpop.permute.xlu0 %2778
    %2780 = vset.pattern.permute.xlu0 52
    %2781 = vperm.xlu0 %2780, %v56
    %v2782 = vpop.permute.xlu0 %2781
    %2783 = vset.pattern.permute.xlu0 52
    %2784 = vperm.xlu0 %2783, %v57
    %v2785 = vpop.permute.xlu0 %2784
    %vm2786 = vcmp.eq.s32.totalorder %v2764, %v49
    %vm2787 = vcmp.eq.s32.totalorder %v2767, %v49
    %vm2788 = vcmp.eq.s32.totalorder %v2770, %v49
    %vm2789 = vcmp.eq.s32.totalorder %v2773, %v49
    %vm2790 = vcmp.eq.s32.totalorder %v2776, %v49
    %vm2791 = vcmp.eq.s32.totalorder %v2779, %v49
    %vm2792 = vcmp.eq.s32.totalorder %v2782, %v49
    %vm2793 = vcmp.eq.s32.totalorder %v2785, %v49
    %v2794 = vlaneseq
    %v2795 = vshrl.u32 %v2794, 7
    %v2796 = vsub.s32 4, %v2795
    %v2797 = vrot.slane %v46, %v2796
    %v2798 = vsel %vm2786, %v2797, 0.0
    %v2799 = vsel %vm2787, %v2797, 0.0
    %v2800 = vsel %vm2788, %v2797, 0.0
    %v2801 = vsel %vm2789, %v2797, 0.0
    %v2802 = vsel %vm2790, %v2797, 0.0
    %v2803 = vsel %vm2791, %v2797, 0.0
    %v2804 = vsel %vm2792, %v2797, 0.0
    %v2805 = vsel %vm2793, %v2797, 0.0
    %v2806 = vadd.f32 %v2754, %v2798
    %v2807 = vadd.f32 %v2755, %v2799
    %v2808 = vadd.f32 %v2756, %v2800
    %v2809 = vadd.f32 %v2757, %v2801
    %v2810 = vadd.f32 %v2758, %v2802
    %v2811 = vadd.f32 %v2759, %v2803
    %v2812 = vadd.f32 %v2760, %v2804
    %v2813 = vadd.f32 %v2761, %v2805
    %2814 = vset.pattern.permute.xlu0 53
    %2815 = vperm.xlu0 %2814, %v50
    %v2816 = vpop.permute.xlu0 %2815
    %2817 = vset.pattern.permute.xlu0 53
    %2818 = vperm.xlu0 %2817, %v51
    %v2819 = vpop.permute.xlu0 %2818
    %2820 = vset.pattern.permute.xlu0 53
    %2821 = vperm.xlu0 %2820, %v52
    %v2822 = vpop.permute.xlu0 %2821
    %2823 = vset.pattern.permute.xlu0 53
    %2824 = vperm.xlu0 %2823, %v53
    %v2825 = vpop.permute.xlu0 %2824
    %2826 = vset.pattern.permute.xlu0 53
    %2827 = vperm.xlu0 %2826, %v54
    %v2828 = vpop.permute.xlu0 %2827
    %2829 = vset.pattern.permute.xlu0 53
    %2830 = vperm.xlu0 %2829, %v55
    %v2831 = vpop.permute.xlu0 %2830
    %2832 = vset.pattern.permute.xlu0 53
    %2833 = vperm.xlu0 %2832, %v56
    %v2834 = vpop.permute.xlu0 %2833
    %2835 = vset.pattern.permute.xlu0 53
    %2836 = vperm.xlu0 %2835, %v57
    %v2837 = vpop.permute.xlu0 %2836
    %vm2838 = vcmp.eq.s32.totalorder %v2816, %v49
    %vm2839 = vcmp.eq.s32.totalorder %v2819, %v49
    %vm2840 = vcmp.eq.s32.totalorder %v2822, %v49
    %vm2841 = vcmp.eq.s32.totalorder %v2825, %v49
    %vm2842 = vcmp.eq.s32.totalorder %v2828, %v49
    %vm2843 = vcmp.eq.s32.totalorder %v2831, %v49
    %vm2844 = vcmp.eq.s32.totalorder %v2834, %v49
    %vm2845 = vcmp.eq.s32.totalorder %v2837, %v49
    %v2846 = vlaneseq
    %v2847 = vshrl.u32 %v2846, 7
    %v2848 = vsub.s32 5, %v2847
    %v2849 = vrot.slane %v46, %v2848
    %v2850 = vsel %vm2838, %v2849, 0.0
    %v2851 = vsel %vm2839, %v2849, 0.0
    %v2852 = vsel %vm2840, %v2849, 0.0
    %v2853 = vsel %vm2841, %v2849, 0.0
    %v2854 = vsel %vm2842, %v2849, 0.0
    %v2855 = vsel %vm2843, %v2849, 0.0
    %v2856 = vsel %vm2844, %v2849, 0.0
    %v2857 = vsel %vm2845, %v2849, 0.0
    %v2858 = vadd.f32 %v2806, %v2850
    %v2859 = vadd.f32 %v2807, %v2851
    %v2860 = vadd.f32 %v2808, %v2852
    %v2861 = vadd.f32 %v2809, %v2853
    %v2862 = vadd.f32 %v2810, %v2854
    %v2863 = vadd.f32 %v2811, %v2855
    %v2864 = vadd.f32 %v2812, %v2856
    %v2865 = vadd.f32 %v2813, %v2857
    %2866 = vset.pattern.permute.xlu0 54
    %2867 = vperm.xlu0 %2866, %v50
    %v2868 = vpop.permute.xlu0 %2867
    %2869 = vset.pattern.permute.xlu0 54
    %2870 = vperm.xlu0 %2869, %v51
    %v2871 = vpop.permute.xlu0 %2870
    %2872 = vset.pattern.permute.xlu0 54
    %2873 = vperm.xlu0 %2872, %v52
    %v2874 = vpop.permute.xlu0 %2873
    %2875 = vset.pattern.permute.xlu0 54
    %2876 = vperm.xlu0 %2875, %v53
    %v2877 = vpop.permute.xlu0 %2876
    %2878 = vset.pattern.permute.xlu0 54
    %2879 = vperm.xlu0 %2878, %v54
    %v2880 = vpop.permute.xlu0 %2879
    %2881 = vset.pattern.permute.xlu0 54
    %2882 = vperm.xlu0 %2881, %v55
    %v2883 = vpop.permute.xlu0 %2882
    %2884 = vset.pattern.permute.xlu0 54
    %2885 = vperm.xlu0 %2884, %v56
    %v2886 = vpop.permute.xlu0 %2885
    %2887 = vset.pattern.permute.xlu0 54
    %2888 = vperm.xlu0 %2887, %v57
    %v2889 = vpop.permute.xlu0 %2888
    %vm2890 = vcmp.eq.s32.totalorder %v2868, %v49
    %vm2891 = vcmp.eq.s32.totalorder %v2871, %v49
    %vm2892 = vcmp.eq.s32.totalorder %v2874, %v49
    %vm2893 = vcmp.eq.s32.totalorder %v2877, %v49
    %vm2894 = vcmp.eq.s32.totalorder %v2880, %v49
    %vm2895 = vcmp.eq.s32.totalorder %v2883, %v49
    %vm2896 = vcmp.eq.s32.totalorder %v2886, %v49
    %vm2897 = vcmp.eq.s32.totalorder %v2889, %v49
    %v2898 = vlaneseq
    %v2899 = vshrl.u32 %v2898, 7
    %v2900 = vsub.s32 6, %v2899
    %v2901 = vrot.slane %v46, %v2900
    %v2902 = vsel %vm2890, %v2901, 0.0
    %v2903 = vsel %vm2891, %v2901, 0.0
    %v2904 = vsel %vm2892, %v2901, 0.0
    %v2905 = vsel %vm2893, %v2901, 0.0
    %v2906 = vsel %vm2894, %v2901, 0.0
    %v2907 = vsel %vm2895, %v2901, 0.0
    %v2908 = vsel %vm2896, %v2901, 0.0
    %v2909 = vsel %vm2897, %v2901, 0.0
    %v2910 = vadd.f32 %v2858, %v2902
    %v2911 = vadd.f32 %v2859, %v2903
    %v2912 = vadd.f32 %v2860, %v2904
    %v2913 = vadd.f32 %v2861, %v2905
    %v2914 = vadd.f32 %v2862, %v2906
    %v2915 = vadd.f32 %v2863, %v2907
    %v2916 = vadd.f32 %v2864, %v2908
    %v2917 = vadd.f32 %v2865, %v2909
    %2918 = vset.pattern.permute.xlu0 55
    %2919 = vperm.xlu0 %2918, %v50
    %v2920 = vpop.permute.xlu0 %2919
    %2921 = vset.pattern.permute.xlu0 55
    %2922 = vperm.xlu0 %2921, %v51
    %v2923 = vpop.permute.xlu0 %2922
    %2924 = vset.pattern.permute.xlu0 55
    %2925 = vperm.xlu0 %2924, %v52
    %v2926 = vpop.permute.xlu0 %2925
    %2927 = vset.pattern.permute.xlu0 55
    %2928 = vperm.xlu0 %2927, %v53
    %v2929 = vpop.permute.xlu0 %2928
    %2930 = vset.pattern.permute.xlu0 55
    %2931 = vperm.xlu0 %2930, %v54
    %v2932 = vpop.permute.xlu0 %2931
    %2933 = vset.pattern.permute.xlu0 55
    %2934 = vperm.xlu0 %2933, %v55
    %v2935 = vpop.permute.xlu0 %2934
    %2936 = vset.pattern.permute.xlu0 55
    %2937 = vperm.xlu0 %2936, %v56
    %v2938 = vpop.permute.xlu0 %2937
    %2939 = vset.pattern.permute.xlu0 55
    %2940 = vperm.xlu0 %2939, %v57
    %v2941 = vpop.permute.xlu0 %2940
    %vm2942 = vcmp.eq.s32.totalorder %v2920, %v49
    %vm2943 = vcmp.eq.s32.totalorder %v2923, %v49
    %vm2944 = vcmp.eq.s32.totalorder %v2926, %v49
    %vm2945 = vcmp.eq.s32.totalorder %v2929, %v49
    %vm2946 = vcmp.eq.s32.totalorder %v2932, %v49
    %vm2947 = vcmp.eq.s32.totalorder %v2935, %v49
    %vm2948 = vcmp.eq.s32.totalorder %v2938, %v49
    %vm2949 = vcmp.eq.s32.totalorder %v2941, %v49
    %v2950 = vlaneseq
    %v2951 = vshrl.u32 %v2950, 7
    %v2952 = vsub.s32 7, %v2951
    %v2953 = vrot.slane %v46, %v2952
    %v2954 = vsel %vm2942, %v2953, 0.0
    %v2955 = vsel %vm2943, %v2953, 0.0
    %v2956 = vsel %vm2944, %v2953, 0.0
    %v2957 = vsel %vm2945, %v2953, 0.0
    %v2958 = vsel %vm2946, %v2953, 0.0
    %v2959 = vsel %vm2947, %v2953, 0.0
    %v2960 = vsel %vm2948, %v2953, 0.0
    %v2961 = vsel %vm2949, %v2953, 0.0
    %v2962 = vadd.f32 %v2910, %v2954
    %v2963 = vadd.f32 %v2911, %v2955
    %v2964 = vadd.f32 %v2912, %v2956
    %v2965 = vadd.f32 %v2913, %v2957
    %v2966 = vadd.f32 %v2914, %v2958
    %v2967 = vadd.f32 %v2915, %v2959
    %v2968 = vadd.f32 %v2916, %v2960
    %v2969 = vadd.f32 %v2917, %v2961
    %2970 = vset.pattern.permute.xlu0 56
    %2971 = vperm.xlu0 %2970, %v50
    %v2972 = vpop.permute.xlu0 %2971
    %2973 = vset.pattern.permute.xlu0 56
    %2974 = vperm.xlu0 %2973, %v51
    %v2975 = vpop.permute.xlu0 %2974
    %2976 = vset.pattern.permute.xlu0 56
    %2977 = vperm.xlu0 %2976, %v52
    %v2978 = vpop.permute.xlu0 %2977
    %2979 = vset.pattern.permute.xlu0 56
    %2980 = vperm.xlu0 %2979, %v53
    %v2981 = vpop.permute.xlu0 %2980
    %2982 = vset.pattern.permute.xlu0 56
    %2983 = vperm.xlu0 %2982, %v54
    %v2984 = vpop.permute.xlu0 %2983
    %2985 = vset.pattern.permute.xlu0 56
    %2986 = vperm.xlu0 %2985, %v55
    %v2987 = vpop.permute.xlu0 %2986
    %2988 = vset.pattern.permute.xlu0 56
    %2989 = vperm.xlu0 %2988, %v56
    %v2990 = vpop.permute.xlu0 %2989
    %2991 = vset.pattern.permute.xlu0 56
    %2992 = vperm.xlu0 %2991, %v57
    %v2993 = vpop.permute.xlu0 %2992
    %vm2994 = vcmp.eq.s32.totalorder %v2972, %v49
    %vm2995 = vcmp.eq.s32.totalorder %v2975, %v49
    %vm2996 = vcmp.eq.s32.totalorder %v2978, %v49
    %vm2997 = vcmp.eq.s32.totalorder %v2981, %v49
    %vm2998 = vcmp.eq.s32.totalorder %v2984, %v49
    %vm2999 = vcmp.eq.s32.totalorder %v2987, %v49
    %vm3000 = vcmp.eq.s32.totalorder %v2990, %v49
    %vm3001 = vcmp.eq.s32.totalorder %v2993, %v49
    %v3002 = vlaneseq
    %v3003 = vshrl.u32 %v3002, 7
    %v3004 = vsub.s32 0, %v3003
    %v3005 = vrot.slane %v47, %v3004
    %v3006 = vsel %vm2994, %v3005, 0.0
    %v3007 = vsel %vm2995, %v3005, 0.0
    %v3008 = vsel %vm2996, %v3005, 0.0
    %v3009 = vsel %vm2997, %v3005, 0.0
    %v3010 = vsel %vm2998, %v3005, 0.0
    %v3011 = vsel %vm2999, %v3005, 0.0
    %v3012 = vsel %vm3000, %v3005, 0.0
    %v3013 = vsel %vm3001, %v3005, 0.0
    %v3014 = vadd.f32 %v2962, %v3006
    %v3015 = vadd.f32 %v2963, %v3007
    %v3016 = vadd.f32 %v2964, %v3008
    %v3017 = vadd.f32 %v2965, %v3009
    %v3018 = vadd.f32 %v2966, %v3010
    %v3019 = vadd.f32 %v2967, %v3011
    %v3020 = vadd.f32 %v2968, %v3012
    %v3021 = vadd.f32 %v2969, %v3013
    %3022 = vset.pattern.permute.xlu0 57
    %3023 = vperm.xlu0 %3022, %v50
    %v3024 = vpop.permute.xlu0 %3023
    %3025 = vset.pattern.permute.xlu0 57
    %3026 = vperm.xlu0 %3025, %v51
    %v3027 = vpop.permute.xlu0 %3026
    %3028 = vset.pattern.permute.xlu0 57
    %3029 = vperm.xlu0 %3028, %v52
    %v3030 = vpop.permute.xlu0 %3029
    %3031 = vset.pattern.permute.xlu0 57
    %3032 = vperm.xlu0 %3031, %v53
    %v3033 = vpop.permute.xlu0 %3032
    %3034 = vset.pattern.permute.xlu0 57
    %3035 = vperm.xlu0 %3034, %v54
    %v3036 = vpop.permute.xlu0 %3035
    %3037 = vset.pattern.permute.xlu0 57
    %3038 = vperm.xlu0 %3037, %v55
    %v3039 = vpop.permute.xlu0 %3038
    %3040 = vset.pattern.permute.xlu0 57
    %3041 = vperm.xlu0 %3040, %v56
    %v3042 = vpop.permute.xlu0 %3041
    %3043 = vset.pattern.permute.xlu0 57
    %3044 = vperm.xlu0 %3043, %v57
    %v3045 = vpop.permute.xlu0 %3044
    %vm3046 = vcmp.eq.s32.totalorder %v3024, %v49
    %vm3047 = vcmp.eq.s32.totalorder %v3027, %v49
    %vm3048 = vcmp.eq.s32.totalorder %v3030, %v49
    %vm3049 = vcmp.eq.s32.totalorder %v3033, %v49
    %vm3050 = vcmp.eq.s32.totalorder %v3036, %v49
    %vm3051 = vcmp.eq.s32.totalorder %v3039, %v49
    %vm3052 = vcmp.eq.s32.totalorder %v3042, %v49
    %vm3053 = vcmp.eq.s32.totalorder %v3045, %v49
    %v3054 = vlaneseq
    %v3055 = vshrl.u32 %v3054, 7
    %v3056 = vsub.s32 1, %v3055
    %v3057 = vrot.slane %v47, %v3056
    %v3058 = vsel %vm3046, %v3057, 0.0
    %v3059 = vsel %vm3047, %v3057, 0.0
    %v3060 = vsel %vm3048, %v3057, 0.0
    %v3061 = vsel %vm3049, %v3057, 0.0
    %v3062 = vsel %vm3050, %v3057, 0.0
    %v3063 = vsel %vm3051, %v3057, 0.0
    %v3064 = vsel %vm3052, %v3057, 0.0
    %v3065 = vsel %vm3053, %v3057, 0.0
    %v3066 = vadd.f32 %v3014, %v3058
    %v3067 = vadd.f32 %v3015, %v3059
    %v3068 = vadd.f32 %v3016, %v3060
    %v3069 = vadd.f32 %v3017, %v3061
    %v3070 = vadd.f32 %v3018, %v3062
    %v3071 = vadd.f32 %v3019, %v3063
    %v3072 = vadd.f32 %v3020, %v3064
    %v3073 = vadd.f32 %v3021, %v3065
    %3074 = vset.pattern.permute.xlu0 58
    %3075 = vperm.xlu0 %3074, %v50
    %v3076 = vpop.permute.xlu0 %3075
    %3077 = vset.pattern.permute.xlu0 58
    %3078 = vperm.xlu0 %3077, %v51
    %v3079 = vpop.permute.xlu0 %3078
    %3080 = vset.pattern.permute.xlu0 58
    %3081 = vperm.xlu0 %3080, %v52
    %v3082 = vpop.permute.xlu0 %3081
    %3083 = vset.pattern.permute.xlu0 58
    %3084 = vperm.xlu0 %3083, %v53
    %v3085 = vpop.permute.xlu0 %3084
    %3086 = vset.pattern.permute.xlu0 58
    %3087 = vperm.xlu0 %3086, %v54
    %v3088 = vpop.permute.xlu0 %3087
    %3089 = vset.pattern.permute.xlu0 58
    %3090 = vperm.xlu0 %3089, %v55
    %v3091 = vpop.permute.xlu0 %3090
    %3092 = vset.pattern.permute.xlu0 58
    %3093 = vperm.xlu0 %3092, %v56
    %v3094 = vpop.permute.xlu0 %3093
    %3095 = vset.pattern.permute.xlu0 58
    %3096 = vperm.xlu0 %3095, %v57
    %v3097 = vpop.permute.xlu0 %3096
    %vm3098 = vcmp.eq.s32.totalorder %v3076, %v49
    %vm3099 = vcmp.eq.s32.totalorder %v3079, %v49
    %vm3100 = vcmp.eq.s32.totalorder %v3082, %v49
    %vm3101 = vcmp.eq.s32.totalorder %v3085, %v49
    %vm3102 = vcmp.eq.s32.totalorder %v3088, %v49
    %vm3103 = vcmp.eq.s32.totalorder %v3091, %v49
    %vm3104 = vcmp.eq.s32.totalorder %v3094, %v49
    %vm3105 = vcmp.eq.s32.totalorder %v3097, %v49
    %v3106 = vlaneseq
    %v3107 = vshrl.u32 %v3106, 7
    %v3108 = vsub.s32 2, %v3107
    %v3109 = vrot.slane %v47, %v3108
    %v3110 = vsel %vm3098, %v3109, 0.0
    %v3111 = vsel %vm3099, %v3109, 0.0
    %v3112 = vsel %vm3100, %v3109, 0.0
    %v3113 = vsel %vm3101, %v3109, 0.0
    %v3114 = vsel %vm3102, %v3109, 0.0
    %v3115 = vsel %vm3103, %v3109, 0.0
    %v3116 = vsel %vm3104, %v3109, 0.0
    %v3117 = vsel %vm3105, %v3109, 0.0
    %v3118 = vadd.f32 %v3066, %v3110
    %v3119 = vadd.f32 %v3067, %v3111
    %v3120 = vadd.f32 %v3068, %v3112
    %v3121 = vadd.f32 %v3069, %v3113
    %v3122 = vadd.f32 %v3070, %v3114
    %v3123 = vadd.f32 %v3071, %v3115
    %v3124 = vadd.f32 %v3072, %v3116
    %v3125 = vadd.f32 %v3073, %v3117
    %3126 = vset.pattern.permute.xlu0 59
    %3127 = vperm.xlu0 %3126, %v50
    %v3128 = vpop.permute.xlu0 %3127
    %3129 = vset.pattern.permute.xlu0 59
    %3130 = vperm.xlu0 %3129, %v51
    %v3131 = vpop.permute.xlu0 %3130
    %3132 = vset.pattern.permute.xlu0 59
    %3133 = vperm.xlu0 %3132, %v52
    %v3134 = vpop.permute.xlu0 %3133
    %3135 = vset.pattern.permute.xlu0 59
    %3136 = vperm.xlu0 %3135, %v53
    %v3137 = vpop.permute.xlu0 %3136
    %3138 = vset.pattern.permute.xlu0 59
    %3139 = vperm.xlu0 %3138, %v54
    %v3140 = vpop.permute.xlu0 %3139
    %3141 = vset.pattern.permute.xlu0 59
    %3142 = vperm.xlu0 %3141, %v55
    %v3143 = vpop.permute.xlu0 %3142
    %3144 = vset.pattern.permute.xlu0 59
    %3145 = vperm.xlu0 %3144, %v56
    %v3146 = vpop.permute.xlu0 %3145
    %3147 = vset.pattern.permute.xlu0 59
    %3148 = vperm.xlu0 %3147, %v57
    %v3149 = vpop.permute.xlu0 %3148
    %vm3150 = vcmp.eq.s32.totalorder %v3128, %v49
    %vm3151 = vcmp.eq.s32.totalorder %v3131, %v49
    %vm3152 = vcmp.eq.s32.totalorder %v3134, %v49
    %vm3153 = vcmp.eq.s32.totalorder %v3137, %v49
    %vm3154 = vcmp.eq.s32.totalorder %v3140, %v49
    %vm3155 = vcmp.eq.s32.totalorder %v3143, %v49
    %vm3156 = vcmp.eq.s32.totalorder %v3146, %v49
    %vm3157 = vcmp.eq.s32.totalorder %v3149, %v49
    %v3158 = vlaneseq
    %v3159 = vshrl.u32 %v3158, 7
    %v3160 = vsub.s32 3, %v3159
    %v3161 = vrot.slane %v47, %v3160
    %v3162 = vsel %vm3150, %v3161, 0.0
    %v3163 = vsel %vm3151, %v3161, 0.0
    %v3164 = vsel %vm3152, %v3161, 0.0
    %v3165 = vsel %vm3153, %v3161, 0.0
    %v3166 = vsel %vm3154, %v3161, 0.0
    %v3167 = vsel %vm3155, %v3161, 0.0
    %v3168 = vsel %vm3156, %v3161, 0.0
    %v3169 = vsel %vm3157, %v3161, 0.0
    %v3170 = vadd.f32 %v3118, %v3162
    %v3171 = vadd.f32 %v3119, %v3163
    %v3172 = vadd.f32 %v3120, %v3164
    %v3173 = vadd.f32 %v3121, %v3165
    %v3174 = vadd.f32 %v3122, %v3166
    %v3175 = vadd.f32 %v3123, %v3167
    %v3176 = vadd.f32 %v3124, %v3168
    %v3177 = vadd.f32 %v3125, %v3169
    %3178 = vset.pattern.permute.xlu0 60
    %3179 = vperm.xlu0 %3178, %v50
    %v3180 = vpop.permute.xlu0 %3179
    %3181 = vset.pattern.permute.xlu0 60
    %3182 = vperm.xlu0 %3181, %v51
    %v3183 = vpop.permute.xlu0 %3182
    %3184 = vset.pattern.permute.xlu0 60
    %3185 = vperm.xlu0 %3184, %v52
    %v3186 = vpop.permute.xlu0 %3185
    %3187 = vset.pattern.permute.xlu0 60
    %3188 = vperm.xlu0 %3187, %v53
    %v3189 = vpop.permute.xlu0 %3188
    %3190 = vset.pattern.permute.xlu0 60
    %3191 = vperm.xlu0 %3190, %v54
    %v3192 = vpop.permute.xlu0 %3191
    %3193 = vset.pattern.permute.xlu0 60
    %3194 = vperm.xlu0 %3193, %v55
    %v3195 = vpop.permute.xlu0 %3194
    %3196 = vset.pattern.permute.xlu0 60
    %3197 = vperm.xlu0 %3196, %v56
    %v3198 = vpop.permute.xlu0 %3197
    %3199 = vset.pattern.permute.xlu0 60
    %3200 = vperm.xlu0 %3199, %v57
    %v3201 = vpop.permute.xlu0 %3200
    %vm3202 = vcmp.eq.s32.totalorder %v3180, %v49
    %vm3203 = vcmp.eq.s32.totalorder %v3183, %v49
    %vm3204 = vcmp.eq.s32.totalorder %v3186, %v49
    %vm3205 = vcmp.eq.s32.totalorder %v3189, %v49
    %vm3206 = vcmp.eq.s32.totalorder %v3192, %v49
    %vm3207 = vcmp.eq.s32.totalorder %v3195, %v49
    %vm3208 = vcmp.eq.s32.totalorder %v3198, %v49
    %vm3209 = vcmp.eq.s32.totalorder %v3201, %v49
    %v3210 = vlaneseq
    %v3211 = vshrl.u32 %v3210, 7
    %v3212 = vsub.s32 4, %v3211
    %v3213 = vrot.slane %v47, %v3212
    %v3214 = vsel %vm3202, %v3213, 0.0
    %v3215 = vsel %vm3203, %v3213, 0.0
    %v3216 = vsel %vm3204, %v3213, 0.0
    %v3217 = vsel %vm3205, %v3213, 0.0
    %v3218 = vsel %vm3206, %v3213, 0.0
    %v3219 = vsel %vm3207, %v3213, 0.0
    %v3220 = vsel %vm3208, %v3213, 0.0
    %v3221 = vsel %vm3209, %v3213, 0.0
    %v3222 = vadd.f32 %v3170, %v3214
    %v3223 = vadd.f32 %v3171, %v3215
    %v3224 = vadd.f32 %v3172, %v3216
    %v3225 = vadd.f32 %v3173, %v3217
    %v3226 = vadd.f32 %v3174, %v3218
    %v3227 = vadd.f32 %v3175, %v3219
    %v3228 = vadd.f32 %v3176, %v3220
    %v3229 = vadd.f32 %v3177, %v3221
    %3230 = vset.pattern.permute.xlu0 61
    %3231 = vperm.xlu0 %3230, %v50
    %v3232 = vpop.permute.xlu0 %3231
    %3233 = vset.pattern.permute.xlu0 61
    %3234 = vperm.xlu0 %3233, %v51
    %v3235 = vpop.permute.xlu0 %3234
    %3236 = vset.pattern.permute.xlu0 61
    %3237 = vperm.xlu0 %3236, %v52
    %v3238 = vpop.permute.xlu0 %3237
    %3239 = vset.pattern.permute.xlu0 61
    %3240 = vperm.xlu0 %3239, %v53
    %v3241 = vpop.permute.xlu0 %3240
    %3242 = vset.pattern.permute.xlu0 61
    %3243 = vperm.xlu0 %3242, %v54
    %v3244 = vpop.permute.xlu0 %3243
    %3245 = vset.pattern.permute.xlu0 61
    %3246 = vperm.xlu0 %3245, %v55
    %v3247 = vpop.permute.xlu0 %3246
    %3248 = vset.pattern.permute.xlu0 61
    %3249 = vperm.xlu0 %3248, %v56
    %v3250 = vpop.permute.xlu0 %3249
    %3251 = vset.pattern.permute.xlu0 61
    %3252 = vperm.xlu0 %3251, %v57
    %v3253 = vpop.permute.xlu0 %3252
    %vm3254 = vcmp.eq.s32.totalorder %v3232, %v49
    %vm3255 = vcmp.eq.s32.totalorder %v3235, %v49
    %vm3256 = vcmp.eq.s32.totalorder %v3238, %v49
    %vm3257 = vcmp.eq.s32.totalorder %v3241, %v49
    %vm3258 = vcmp.eq.s32.totalorder %v3244, %v49
    %vm3259 = vcmp.eq.s32.totalorder %v3247, %v49
    %vm3260 = vcmp.eq.s32.totalorder %v3250, %v49
    %vm3261 = vcmp.eq.s32.totalorder %v3253, %v49
    %v3262 = vlaneseq
    %v3263 = vshrl.u32 %v3262, 7
    %v3264 = vsub.s32 5, %v3263
    %v3265 = vrot.slane %v47, %v3264
    %v3266 = vsel %vm3254, %v3265, 0.0
    %v3267 = vsel %vm3255, %v3265, 0.0
    %v3268 = vsel %vm3256, %v3265, 0.0
    %v3269 = vsel %vm3257, %v3265, 0.0
    %v3270 = vsel %vm3258, %v3265, 0.0
    %v3271 = vsel %vm3259, %v3265, 0.0
    %v3272 = vsel %vm3260, %v3265, 0.0
    %v3273 = vsel %vm3261, %v3265, 0.0
    %v3274 = vadd.f32 %v3222, %v3266
    %v3275 = vadd.f32 %v3223, %v3267
    %v3276 = vadd.f32 %v3224, %v3268
    %v3277 = vadd.f32 %v3225, %v3269
    %v3278 = vadd.f32 %v3226, %v3270
    %v3279 = vadd.f32 %v3227, %v3271
    %v3280 = vadd.f32 %v3228, %v3272
    %v3281 = vadd.f32 %v3229, %v3273
    %3282 = vset.pattern.permute.xlu0 62
    %3283 = vperm.xlu0 %3282, %v50
    %v3284 = vpop.permute.xlu0 %3283
    %3285 = vset.pattern.permute.xlu0 62
    %3286 = vperm.xlu0 %3285, %v51
    %v3287 = vpop.permute.xlu0 %3286
    %3288 = vset.pattern.permute.xlu0 62
    %3289 = vperm.xlu0 %3288, %v52
    %v3290 = vpop.permute.xlu0 %3289
    %3291 = vset.pattern.permute.xlu0 62
    %3292 = vperm.xlu0 %3291, %v53
    %v3293 = vpop.permute.xlu0 %3292
    %3294 = vset.pattern.permute.xlu0 62
    %3295 = vperm.xlu0 %3294, %v54
    %v3296 = vpop.permute.xlu0 %3295
    %3297 = vset.pattern.permute.xlu0 62
    %3298 = vperm.xlu0 %3297, %v55
    %v3299 = vpop.permute.xlu0 %3298
    %3300 = vset.pattern.permute.xlu0 62
    %3301 = vperm.xlu0 %3300, %v56
    %v3302 = vpop.permute.xlu0 %3301
    %3303 = vset.pattern.permute.xlu0 62
    %3304 = vperm.xlu0 %3303, %v57
    %v3305 = vpop.permute.xlu0 %3304
    %vm3306 = vcmp.eq.s32.totalorder %v3284, %v49
    %vm3307 = vcmp.eq.s32.totalorder %v3287, %v49
    %vm3308 = vcmp.eq.s32.totalorder %v3290, %v49
    %vm3309 = vcmp.eq.s32.totalorder %v3293, %v49
    %vm3310 = vcmp.eq.s32.totalorder %v3296, %v49
    %vm3311 = vcmp.eq.s32.totalorder %v3299, %v49
    %vm3312 = vcmp.eq.s32.totalorder %v3302, %v49
    %vm3313 = vcmp.eq.s32.totalorder %v3305, %v49
    %v3314 = vlaneseq
    %v3315 = vshrl.u32 %v3314, 7
    %v3316 = vsub.s32 6, %v3315
    %v3317 = vrot.slane %v47, %v3316
    %v3318 = vsel %vm3306, %v3317, 0.0
    %v3319 = vsel %vm3307, %v3317, 0.0
    %v3320 = vsel %vm3308, %v3317, 0.0
    %v3321 = vsel %vm3309, %v3317, 0.0
    %v3322 = vsel %vm3310, %v3317, 0.0
    %v3323 = vsel %vm3311, %v3317, 0.0
    %v3324 = vsel %vm3312, %v3317, 0.0
    %v3325 = vsel %vm3313, %v3317, 0.0
    %v3326 = vadd.f32 %v3274, %v3318
    %v3327 = vadd.f32 %v3275, %v3319
    %v3328 = vadd.f32 %v3276, %v3320
    %v3329 = vadd.f32 %v3277, %v3321
    %v3330 = vadd.f32 %v3278, %v3322
    %v3331 = vadd.f32 %v3279, %v3323
    %v3332 = vadd.f32 %v3280, %v3324
    %v3333 = vadd.f32 %v3281, %v3325
    %3334 = vset.pattern.permute.xlu0 63
    %3335 = vperm.xlu0 %3334, %v50
    %v3336 = vpop.permute.xlu0 %3335
    %3337 = vset.pattern.permute.xlu0 63
    %3338 = vperm.xlu0 %3337, %v51
    %v3339 = vpop.permute.xlu0 %3338
    %3340 = vset.pattern.permute.xlu0 63
    %3341 = vperm.xlu0 %3340, %v52
    %v3342 = vpop.permute.xlu0 %3341
    %3343 = vset.pattern.permute.xlu0 63
    %3344 = vperm.xlu0 %3343, %v53
    %v3345 = vpop.permute.xlu0 %3344
    %3346 = vset.pattern.permute.xlu0 63
    %3347 = vperm.xlu0 %3346, %v54
    %v3348 = vpop.permute.xlu0 %3347
    %3349 = vset.pattern.permute.xlu0 63
    %3350 = vperm.xlu0 %3349, %v55
    %v3351 = vpop.permute.xlu0 %3350
    %3352 = vset.pattern.permute.xlu0 63
    %3353 = vperm.xlu0 %3352, %v56
    %v3354 = vpop.permute.xlu0 %3353
    %3355 = vset.pattern.permute.xlu0 63
    %3356 = vperm.xlu0 %3355, %v57
    %v3357 = vpop.permute.xlu0 %3356
    %vm3358 = vcmp.eq.s32.totalorder %v3336, %v49
    %vm3359 = vcmp.eq.s32.totalorder %v3339, %v49
    %vm3360 = vcmp.eq.s32.totalorder %v3342, %v49
    %vm3361 = vcmp.eq.s32.totalorder %v3345, %v49
    %vm3362 = vcmp.eq.s32.totalorder %v3348, %v49
    %vm3363 = vcmp.eq.s32.totalorder %v3351, %v49
    %vm3364 = vcmp.eq.s32.totalorder %v3354, %v49
    %vm3365 = vcmp.eq.s32.totalorder %v3357, %v49
    %v3366 = vlaneseq
    %v3367 = vshrl.u32 %v3366, 7
    %v3368 = vsub.s32 7, %v3367
    %v3369 = vrot.slane %v47, %v3368
    %v3370 = vsel %vm3358, %v3369, 0.0
    %v3371 = vsel %vm3359, %v3369, 0.0
    %v3372 = vsel %vm3360, %v3369, 0.0
    %v3373 = vsel %vm3361, %v3369, 0.0
    %v3374 = vsel %vm3362, %v3369, 0.0
    %v3375 = vsel %vm3363, %v3369, 0.0
    %v3376 = vsel %vm3364, %v3369, 0.0
    %v3377 = vsel %vm3365, %v3369, 0.0
    %v3378 = vadd.f32 %v3326, %v3370
    %v3379 = vadd.f32 %v3327, %v3371
    %v3380 = vadd.f32 %v3328, %v3372
    %v3381 = vadd.f32 %v3329, %v3373
    %v3382 = vadd.f32 %v3330, %v3374
    %v3383 = vadd.f32 %v3331, %v3375
    %v3384 = vadd.f32 %v3332, %v3376
    %v3385 = vadd.f32 %v3333, %v3377
    %3386 = vadd.xlane.f32.xlu0 %v3378
    %v3387 = vpop.xlane.xlu0 %3386
    %3388 = vadd.xlane.f32.xlu0 %v3379
    %v3389 = vpop.xlane.xlu0 %3388
    %3390 = vadd.xlane.f32.xlu0 %v3380
    %v3391 = vpop.xlane.xlu0 %3390
    %3392 = vadd.xlane.f32.xlu0 %v3381
    %v3393 = vpop.xlane.xlu0 %3392
    %3394 = vadd.xlane.f32.xlu0 %v3382
    %v3395 = vpop.xlane.xlu0 %3394
    %3396 = vadd.xlane.f32.xlu0 %v3383
    %v3397 = vpop.xlane.xlu0 %3396
    %3398 = vadd.xlane.f32.xlu0 %v3384
    %v3399 = vpop.xlane.xlu0 %3398
    %3400 = vadd.xlane.f32.xlu0 %v3385
    %v3401 = vpop.xlane.xlu0 %3400
    %v3410 = vlaneseq
    %v3411 = vshrl.u32 %v3410, 7
    %v3412 = vsub.s32 %v49, %v3411
    %v3413 = vrot.slane %v3387, %v3412
    %v3414 = vadd.s32 %v49, 4294967288
    %v3415 = vlaneseq
    %v3416 = vshrl.u32 %v3415, 7
    %v3417 = vsub.s32 %v3414, %v3416
    %v3418 = vrot.slane %v3389, %v3417
    %vm3419 = vcmask 130112
    %v3420 = vsel %vm3419, %v3418, %v3413
    %v3421 = vadd.s32 %v49, 4294967280
    %v3422 = vlaneseq
    %v3423 = vshrl.u32 %v3422, 7
    %v3424 = vsub.s32 %v3421, %v3423
    %v3425 = vrot.slane %v3391, %v3424
    %vm3426 = vcmask 195712
    %v3427 = vsel %vm3426, %v3425, %v3420
    %v3428 = vadd.s32 %v49, 4294967272
    %v3429 = vlaneseq
    %v3430 = vshrl.u32 %v3429, 7
    %v3431 = vsub.s32 %v3428, %v3430
    %v3432 = vrot.slane %v3393, %v3431
    %vm3433 = vcmask 261312
    %v3434 = vsel %vm3433, %v3432, %v3427
    %v3435 = vadd.s32 %v49, 4294967264
    %v3436 = vlaneseq
    %v3437 = vshrl.u32 %v3436, 7
    %v3438 = vsub.s32 %v3435, %v3437
    %v3439 = vrot.slane %v3395, %v3438
    %vm3440 = vcmask 326912
    %v3441 = vsel %vm3440, %v3439, %v3434
    %v3442 = vadd.s32 %v49, 4294967256
    %v3443 = vlaneseq
    %v3444 = vshrl.u32 %v3443, 7
    %v3445 = vsub.s32 %v3442, %v3444
    %v3446 = vrot.slane %v3397, %v3445
    %vm3447 = vcmask 392512
    %v3448 = vsel %vm3447, %v3446, %v3441
    %v3449 = vadd.s32 %v49, 4294967248
    %v3450 = vlaneseq
    %v3451 = vshrl.u32 %v3450, 7
    %v3452 = vsub.s32 %v3449, %v3451
    %v3453 = vrot.slane %v3399, %v3452
    %vm3454 = vcmask 458112
    %v3455 = vsel %vm3454, %v3453, %v3448
    %v3456 = vadd.s32 %v49, 4294967240
    %v3457 = vlaneseq
    %v3458 = vshrl.u32 %v3457, 7
    %v3459 = vsub.s32 %v3456, %v3458
    %v3460 = vrot.slane %v3401, %v3459
    %vm3461 = vcmask 523712
    %v3462 = vsel %vm3461, %v3460, %v3455
    %vm3464 = vcmask 516096
    %3465 = vst.msk [vmem:[#allocation7] sm:$0x1] %vm3464, %v3462
    // Predicated region
    $region18: #{tpu_custom_call.1} parent=1 // pred_check
      _
    $region19: #{tpu_custom_call.1} parent=1 // pred_check_branch
      %3467 = sbr.rel (0) target = $region21
    $region20: #{tpu_custom_call.1} parent=1 // pred_region
      %s3469 = ssub.s32 16, 16
      %3470 = vsyncadd [#allocation4], %s3469
      %s3472 = sshll.u32 [#allocation7], 4
      %s3473 = int_to_ptr.vmem [resolvable:$true] %s3472
      %3475 = dma.vmem_to_hbm [thread:$0]  %s3473, 16, %s2, [#allocation4]
    $region21: #{tpu_custom_call.1} parent=1 // pred_fallthru
      _
    // Predicated region
    $region22: #{tpu_custom_call.1} parent=1 // pred_check
      _
    $region23: #{tpu_custom_call.1} parent=1 // pred_check_branch
      %3477 = sbr.rel (0) target = $region25
    $region24: #{tpu_custom_call.1} parent=1 // pred_region
      %3478 = dma.done [#allocation4], 16
    $region25: #{tpu_custom_call.1} parent=1 // pred_fallthru
      _
    %3479 = vsyncpa [#allocation3], 1
    %3480 = vsyncpa [#allocation6], 1
    %3481 = vsyncpa [#allocation4], 1

</llo_original>
